<compile_context>
chip_gen: v5e
topology: v5e:2x2
jax: 0.10.0
libtpu: 0.0.40
codegen_flags: <defaults>
</compile_context>

<pallas_src>
import jax
import jax.numpy as jnp
from jax.experimental import pallas as pl
from jax.experimental.pallas import tpu as pltpu


# ---------------------------------------------------------------------------
# Pallas kernels: one GCN propagation layer on the exact 0/1 adjacency.
#   acc = (A + I)[rows, :] @ Y          (bf16 MXU, f32 accumulate)
#   epilogue applies dinv[dst], bias, ReLU (and optionally the fused W2).
# grid = (destination-row tiles, reduction tiles over source columns)
# ---------------------------------------------------------------------------
def _prop_kernel(a_ref, y_ref, dinv_ref, b_ref, o_ref, acc_ref):
    """h = relu(dinv * ((A+I) @ y) + b)."""
    k = pl.program_id(1)
    tk = a_ref.shape[1]

    @pl.when(k == 0)
    def _():
        acc_ref[...] = jnp.zeros_like(acc_ref)

    off = pl.multiple_of(k * tk, tk)
    acc_ref[...] += jnp.dot(a_ref[...], y_ref[pl.ds(off, tk), :],
                            preferred_element_type=jnp.float32)

    @pl.when(k == pl.num_programs(1) - 1)
    def _():
        o_ref[...] = jnp.maximum(dinv_ref[...] * acc_ref[...] + b_ref[...],
                                 0.0).astype(o_ref.dtype)


def _prop_fused_w2_kernel(a_ref, y_ref, dinv_ref, b_ref, w2_ref, o_ref, acc_ref):
    """y2 = dinv * (relu(dinv * ((A+I) @ y1) + b1) @ W2)  — layer-1 + fused W2."""
    k = pl.program_id(1)
    tk = a_ref.shape[1]

    @pl.when(k == 0)
    def _():
        acc_ref[...] = jnp.zeros_like(acc_ref)

    off = pl.multiple_of(k * tk, tk)
    acc_ref[...] += jnp.dot(a_ref[...], y_ref[pl.ds(off, tk), :],
                            preferred_element_type=jnp.float32)

    @pl.when(k == pl.num_programs(1) - 1)
    def _():
        d = dinv_ref[...]                                          # (tm, 1) f32
        h1 = jnp.maximum(d * acc_ref[...] + b_ref[...], 0.0)       # (tm, H) f32
        y2 = d * jnp.dot(h1.astype(jnp.bfloat16), w2_ref[...],
                         preferred_element_type=jnp.float32)       # (tm, H) f32
        o_ref[...] = y2.astype(o_ref.dtype)


def gcn_propagate(a01, y, dinv_col, bias, w2=None, *, tm, tk, out_dtype):
    """One propagation layer.

    a01:      (n_pad, n_pad) bf16 exact 0/1 adjacency with self loops (padded).
    y:        (n_pad, H) bf16 features, ALREADY scaled by dinv[src] in wrapper.
    dinv_col: (n_pad, 1)  f32 destination-side D^-1/2 scale.
    bias:     (1, H)      f32.
    w2:       optional (H, H) bf16 — fused into the epilogue (layer 1 only).
    """
    n_pad, h = y.shape
    assert a01.shape == (n_pad, n_pad)
    assert n_pad % tm == 0 and n_pad % tk == 0 and h % 128 == 0
    assert w2 is None or w2.shape == (h, h)
    grid = (n_pad // tm, n_pad // tk)

    in_specs = [
        pl.BlockSpec((tm, tk), lambda i, k: (i, k)),       # A tile (dst, src)
        pl.BlockSpec((n_pad, h), lambda i, k: (0, 0)),     # Y: VMEM-resident, loaded once
        pl.BlockSpec((tm, 1), lambda i, k: (i, 0)),        # dinv rows (dst)
        pl.BlockSpec((1, h), lambda i, k: (0, 0)),         # bias (epilogue only)
    ]
    args = [a01, y, dinv_col, bias]
    kernel = _prop_kernel
    flops = 2 * n_pad * n_pad * h
    if w2 is not None:
        in_specs.append(pl.BlockSpec((h, h), lambda i, k: (0, 0)))  # W2 resident
        args.append(w2)
        kernel = _prop_fused_w2_kernel
        flops += 2 * n_pad * h * h

    bytes_accessed = (a01.size * a01.dtype.itemsize            # A streamed once
                      + y.size * y.dtype.itemsize              # Y resident: read once
                      + n_pad * h * jnp.dtype(out_dtype).itemsize)  # writeback

    return pl.pallas_call(
        kernel,
        out_shape=jax.ShapeDtypeStruct((n_pad, h), out_dtype),
        grid_spec=pltpu.PrefetchScalarGridSpec(
            num_scalar_prefetch=0,
            grid=grid,
            in_specs=in_specs,
            out_specs=pl.BlockSpec((tm, h), lambda i, k: (i, 0)),
            scratch_shapes=[pltpu.VMEM((tm, h), jnp.float32)],
        ),
        compiler_params=pltpu.CompilerParams(
            dimension_semantics=("parallel", "arbitrary"),
            vmem_limit_bytes=32 * 1024 * 1024,
        ),
        cost_estimate=pl.CostEstimate(flops=int(flops), transcendentals=0,
                                      bytes_accessed=int(bytes_accessed)),
    )(*args)


# ---------------------------------------------------------------------------
# Plain-JAX glue: graph-structure scatters, pooling matrix, padding helpers.
# ---------------------------------------------------------------------------
def build_gcn_structure(edge_index, num_nodes):
    """Exact (A + I) adjacency (A[dst, src] += 1 per edge) and D^-1/2 vector."""
    src, dst = edge_index[0], edge_index[1]
    a = jnp.zeros((num_nodes, num_nodes), jnp.float32)
    a = a.at[dst, src].add(1.0)
    a = a + jnp.eye(num_nodes, dtype=jnp.float32)            # self loops
    deg = jnp.sum(a, axis=1)
    dinv = jnp.where(deg > 0, 1.0 / jnp.sqrt(deg), 0.0)
    return a, dinv


def build_mean_pool(batch, num_graphs, num_nodes):
    onehot = (batch[None, :] == jnp.arange(num_graphs)[:, None]).astype(jnp.float32)
    counts = jnp.maximum(jnp.sum(onehot, axis=1, keepdims=True), 1.0)
    return onehot / counts                                    # (G, N)


def _round_up(x, m):
    return ((x + m - 1) // m) * m


def _pick_tiles(n_pad):
    """n_pad is a multiple of 512.  Rectangular (tm, tk): 512-deep reduction
    feeding the MXU, large row tiles, and an even row-tile count (>=2) so the
    v7x megacore splits the 'parallel' axis evenly."""
    tk = 512
    if n_pad % 2048 == 0:
        tm = 1024
    elif n_pad % 1024 == 0:
        tm = 512
    else:
        tm = 256
    return tm, tk


# ---------------------------------------------------------------------------
# Full forward pass (matches GNN.forward semantics).
# ---------------------------------------------------------------------------
def gnn_apply(params, x, edge_index, batch, *, num_graphs):
    w1, b1, w2, b2, w3, b3 = params
    n = x.shape[0]
    h1_dim = w1.shape[1]          # 128
    h2_dim = w2.shape[1]          # 64

    # Graph-structure glue (scatter-based), stays in XLA.
    a01, dinv = build_gcn_structure(edge_index, n)            # exact (A+I), D^-1/2
    pool = build_mean_pool(batch, num_graphs, n)               # (G, n) f32

    # Pad node count to a multiple of 512 -> large, even-count tiles.
    n_pad = _round_up(max(n, 512), 512)
    tm, tk = _pick_tiles(n_pad)

    a_pad = jnp.zeros((n_pad, n_pad), jnp.bfloat16).at[:n, :n].set(
        a01.astype(jnp.bfloat16))                              # 0/1/2 -> exact in bf16
    dinv_col = jnp.zeros((n_pad, 1), jnp.float32).at[:n, 0].set(dinv)

    h2_pad_dim = _round_up(h2_dim, 128)                        # 64 -> 128 lanes
    w2p = jnp.zeros((h1_dim, h2_pad_dim), jnp.bfloat16).at[:, :h2_dim].set(
        w2.astype(jnp.bfloat16))
    b2p = jnp.zeros((1, h2_pad_dim), jnp.float32).at[:, :h2_dim].set(b2)

    # ---- GCNConv 1: tiny-K (K=input_dim) transform + src-side dinv fold in XLA
    xw1 = jnp.dot(x, w1, preferred_element_type=jnp.float32)             # (n, 128)
    y1 = jnp.zeros((n_pad, h1_dim), jnp.bfloat16).at[:n].set(
        (dinv[:, None] * xw1).astype(jnp.bfloat16))

    # Propagation 1 with the W2 transform (+bias/ReLU/scales) fused in the
    # epilogue: outputs y2 = dinv * (relu(A_hat @ XW1 + b1) @ W2) directly.
    y2 = gcn_propagate(a_pad, y1, dinv_col, b1, w2p,
                       tm=tm, tk=tk, out_dtype=jnp.bfloat16)             # (n_pad, 128)

    # ---- GCNConv 2: propagation + ReLU; bf16 output halves writeback.
    h2 = gcn_propagate(a_pad, y2, dinv_col, b2p,
                       tm=tm, tk=tk, out_dtype=jnp.bfloat16)             # (n_pad, 128)

    # ---- global_mean_pool + fc + softmax: O(G*64) tail, kept in XLA.
    g = jnp.dot(pool, h2[:n, :h2_dim].astype(jnp.float32),
                preferred_element_type=jnp.float32)                      # (G, 64)
    logits = jnp.dot(g, w3, preferred_element_type=jnp.float32) + b3
    return jax.nn.softmax(logits, axis=1)


# ---------------------------------------------------------------------------
# Main
# ---------------------------------------------------------------------------
if __name__ == "__main__":
    num_nodes = 300           # pads to 512 -> 2x1 grid of (256, 512) tiles per layer
    input_dim = 8
    output_dim = 4
    num_graphs = 2
    nodes_per_graph = num_nodes // num_graphs

    key = jax.random.PRNGKey(0)
    k_x, k_w1, k_b1, k_w2, k_b2, k_w3, k_b3 = jax.random.split(key, 7)

    # Node features
    x = jax.random.normal(k_x, (num_nodes, input_dim), jnp.float32)

    # Two disjoint undirected ring graphs (both edge directions listed).
    src_list, dst_list = [], []
    for gidx in range(num_graphs):
        base = gidx * nodes_per_graph
        ids = jnp.arange(nodes_per_graph, dtype=jnp.int32) + base
        nxt = (jnp.arange(nodes_per_graph, dtype=jnp.int32) + 1) % nodes_per_graph + base
        src_list.append(jnp.concatenate([ids, nxt]))
        dst_list.append(jnp.concatenate([nxt, ids]))
    edge_index = jnp.stack([jnp.concatenate(src_list),
                            jnp.concatenate(dst_list)], axis=0)          # (2, 2*N)

    batch = jnp.repeat(jnp.arange(num_graphs, dtype=jnp.int32), nodes_per_graph)

    # Deterministic parameter init (GCNConv(input,128) / GCNConv(128,64) / Linear(64,out))
    w1 = jax.random.normal(k_w1, (input_dim, 128), jnp.float32) * 0.1
    b1 = jax.random.normal(k_b1, (1, 128), jnp.float32) * 0.01
    w2 = jax.random.normal(k_w2, (128, 64), jnp.float32) * 0.1
    b2 = jax.random.normal(k_b2, (1, 64), jnp.float32) * 0.01
    w3 = jax.random.normal(k_w3, (64, output_dim), jnp.float32) * 0.1
    b3 = jax.random.normal(k_b3, (1, output_dim), jnp.float32) * 0.01
    params = (w1, b1, w2, b2, w3, b3)

    fwd = jax.jit(gnn_apply, static_argnames=("num_graphs",))
    out = fwd(params, x, edge_index, batch, num_graphs=num_graphs)
    out = jax.block_until_ready(out)

    # Pure-JAX f32 reference (same semantics as the PyTorch module).
    a01_ref, dinv_ref = build_gcn_structure(edge_index, num_nodes)
    a_hat_ref = dinv_ref[:, None] * a01_ref * dinv_ref[None, :]
    p_ref = build_mean_pool(batch, num_graphs, num_nodes)
    h1_ref = jnp.maximum(a_hat_ref @ (x @ w1) + b1, 0.0)
    h2_ref = jnp.maximum(a_hat_ref @ (h1_ref @ w2) + b2, 0.0)
    ref = jax.nn.softmax(p_ref @ h2_ref @ w3 + b3, axis=1)

    assert out.shape == (num_graphs, output_dim)
    assert jnp.allclose(jnp.sum(out, axis=1), 1.0, atol=1e-5)
    assert float(jnp.max(jnp.abs(out - ref))) < 3e-2, float(jnp.max(jnp.abs(out - ref)))

    print("KERNEL_OK")
</pallas_src>

<mosaic_0001>
module attributes {stable_mosaic.version = 11 : i64} {
  func.func @_prop_fused_w2_kernel(%arg0: i32, %arg1: i32, %arg2: memref<256x512xbf16, #tpu.memory_space<vmem>>, %arg3: memref<512x128xbf16, #tpu.memory_space<vmem>>, %arg4: memref<256x1xf32, #tpu.memory_space<vmem>>, %arg5: memref<1x128xf32, #tpu.memory_space<vmem>>, %arg6: memref<128x128xbf16, #tpu.memory_space<vmem>>, %arg7: memref<256x128xbf16, #tpu.memory_space<vmem>>, %arg8: memref<256x128xf32, #tpu.memory_space<vmem>>) attributes {dimension_semantics = [#tpu.dimension_semantics<parallel>, #tpu.dimension_semantics<arbitrary>], iteration_bounds = array<i64: 2, 1>, scalar_prefetch = 0 : i64, scratch_operands = 1 : i64, tpu.core_type = #tpu.core_type<tc>, window_params = [{transform_indices = @transform_0, window_bounds = array<i64: 256, 512>}, {pipeline_mode = #tpu.pipeline_mode<synchronous>, transform_indices = @transform_1, window_bounds = array<i64: 512, 128>}, {transform_indices = @transform_2, window_bounds = array<i64: 256, 1>}, {pipeline_mode = #tpu.pipeline_mode<synchronous>, transform_indices = @transform_3, window_bounds = array<i64: 1, 128>}, {pipeline_mode = #tpu.pipeline_mode<synchronous>, transform_indices = @transform_4, window_bounds = array<i64: 128, 128>}, {transform_indices = @transform_5, window_bounds = array<i64: 256, 128>}]} {
    %c0_i32 = arith.constant 0 : i32
    %0 = arith.cmpi eq, %arg1, %c0_i32 : i32
    %1 = arith.extui %0 : i1 to i32
    %c0_i32_0 = arith.constant 0 : i32
    %2 = arith.cmpi ne, %1, %c0_i32_0 : i32
    scf.if %2 {
      %cst_9 = arith.constant 0.000000e+00 : f32
      %15 = vector.broadcast %cst_9 : f32 to vector<256x128xf32>
      %c0_10 = arith.constant 0 : index
      %c0_11 = arith.constant 0 : index
      %16 = vector.load %arg8[%c0_10, %c0_11] : memref<256x128xf32, #tpu.memory_space<vmem>>, vector<256x128xf32>
      tpu.vector_store %arg8[%c0_10, %c0_11], %15 {strides = array<i32>} : memref<256x128xf32, #tpu.memory_space<vmem>>, vector<256x128xf32>,
    } else {
    }
    %c512_i32 = arith.constant 512 : i32
    %3 = arith.muli %arg1, %c512_i32 : i32
    %4 = tpu.assume_multiple %3, 512 : i32
    %c0 = arith.constant 0 : index
    %c0_1 = arith.constant 0 : index
    %5 = vector.load %arg8[%c0, %c0_1] : memref<256x128xf32, #tpu.memory_space<vmem>>, vector<256x128xf32>
    %c0_2 = arith.constant 0 : index
    %c0_3 = arith.constant 0 : index
    %6 = vector.load %arg2[%c0_2, %c0_3] : memref<256x512xbf16, #tpu.memory_space<vmem>>, vector<256x512xbf16>
    %7 = arith.index_cast %4 : i32 to index
    %c0_4 = arith.constant 0 : index
    %8 = vector.load %arg3[%7, %c0_4] : memref<512x128xbf16, #tpu.memory_space<vmem>>, vector<512x128xbf16>
    %cst = arith.constant dense<0.000000e+00> : vector<256x128xf32>
    %9 = tpu.matmul %6, %8, %cst {dimension_numbers = #tpu.dot_dimension_numbers<[1], [0], [0], [1], [0, 0, 1, 1], [], []>} : vector<256x512xbf16>, vector<512x128xbf16>, vector<256x128xf32> -> vector<256x128xf32>
    %10 = arith.addf %5, %9 : vector<256x128xf32>
    %c0_5 = arith.constant 0 : index
    %c0_6 = arith.constant 0 : index
    %11 = vector.load %arg8[%c0_5, %c0_6] : memref<256x128xf32, #tpu.memory_space<vmem>>, vector<256x128xf32>
    tpu.vector_store %arg8[%c0_5, %c0_6], %10 {strides = array<i32>} : memref<256x128xf32, #tpu.memory_space<vmem>>, vector<256x128xf32>,
    %c0_i32_7 = arith.constant 0 : i32
    %12 = arith.cmpi eq, %arg1, %c0_i32_7 : i32
    %13 = arith.extui %12 : i1 to i32
    %c0_i32_8 = arith.constant 0 : i32
    %14 = arith.cmpi ne, %13, %c0_i32_8 : i32
    scf.if %14 {
      %c0_9 = arith.constant 0 : index
      %c0_10 = arith.constant 0 : index
      %15 = vector.load %arg4[%c0_9, %c0_10] : memref<256x1xf32, #tpu.memory_space<vmem>>, vector<256x1xf32>
      %c0_11 = arith.constant 0 : index
      %c0_12 = arith.constant 0 : index
      %16 = vector.load %arg8[%c0_11, %c0_12] : memref<256x128xf32, #tpu.memory_space<vmem>>, vector<256x128xf32>
      %17 = vector.broadcast %15 : vector<256x1xf32> to vector<256x128xf32>
      %18 = arith.mulf %17, %16 : vector<256x128xf32>
      %c0_13 = arith.constant 0 : index
      %c0_14 = arith.constant 0 : index
      %19 = vector.load %arg5[%c0_13, %c0_14] : memref<1x128xf32, #tpu.memory_space<vmem>>, vector<1x128xf32>
      %20 = vector.broadcast %19 : vector<1x128xf32> to vector<256x128xf32>
      %21 = arith.addf %18, %20 : vector<256x128xf32>
      %cst_15 = arith.constant 0.000000e+00 : f32
      %22 = vector.broadcast %cst_15 : f32 to vector<256x128xf32>
      %23 = arith.maximumf %21, %22 : vector<256x128xf32>
      %24 = arith.truncf %23 : vector<256x128xf32> to vector<256x128xbf16>
      %c0_16 = arith.constant 0 : index
      %c0_17 = arith.constant 0 : index
      %25 = vector.load %arg6[%c0_16, %c0_17] : memref<128x128xbf16, #tpu.memory_space<vmem>>, vector<128x128xbf16>
      %cst_18 = arith.constant dense<0.000000e+00> : vector<256x128xf32>
      %26 = tpu.matmul %24, %25, %cst_18 {dimension_numbers = #tpu.dot_dimension_numbers<[1], [0], [0], [1], [0, 0, 1, 1], [], []>} : vector<256x128xbf16>, vector<128x128xbf16>, vector<256x128xf32> -> vector<256x128xf32>
      %27 = vector.broadcast %15 : vector<256x1xf32> to vector<256x128xf32>
      %28 = arith.mulf %27, %26 : vector<256x128xf32>
      %29 = arith.truncf %28 : vector<256x128xf32> to vector<256x128xbf16>
      %c0_19 = arith.constant 0 : index
      %c0_20 = arith.constant 0 : index
      %30 = vector.load %arg7[%c0_19, %c0_20] : memref<256x128xbf16, #tpu.memory_space<vmem>>, vector<256x128xbf16>
      tpu.vector_store %arg7[%c0_19, %c0_20], %29 {strides = array<i32>} : memref<256x128xbf16, #tpu.memory_space<vmem>>, vector<256x128xbf16>,
    } else {
    }
    return
  }
  func.func @transform_0(%arg0: i32, %arg1: i32) -> (i32, i32) {
    %c0_i32 = arith.constant 0 : i32
    return %arg0, %arg1 : i32, i32
  }
  func.func @transform_1(%arg0: i32, %arg1: i32) -> (i32, i32) {
    %c0_i32 = arith.constant 0 : i32
    %c0_i32_0 = arith.constant 0 : i32
    %c0_i32_1 = arith.constant 0 : i32
    return %c0_i32, %c0_i32_0 : i32, i32
  }
  func.func @transform_2(%arg0: i32, %arg1: i32) -> (i32, i32) {
    %c0_i32 = arith.constant 0 : i32
    %c0_i32_0 = arith.constant 0 : i32
    return %arg0, %c0_i32 : i32, i32
  }
  func.func @transform_3(%arg0: i32, %arg1: i32) -> (i32, i32) {
    %c0_i32 = arith.constant 0 : i32
    %c0_i32_0 = arith.constant 0 : i32
    %c0_i32_1 = arith.constant 0 : i32
    return %c0_i32, %c0_i32_0 : i32, i32
  }
  func.func @transform_4(%arg0: i32, %arg1: i32) -> (i32, i32) {
    %c0_i32 = arith.constant 0 : i32
    %c0_i32_0 = arith.constant 0 : i32
    %c0_i32_1 = arith.constant 0 : i32
    return %c0_i32, %c0_i32_0 : i32, i32
  }
  func.func @transform_5(%arg0: i32, %arg1: i32) -> (i32, i32) {
    %c0_i32 = arith.constant 0 : i32
    %c0_i32_0 = arith.constant 0 : i32
    return %arg0, %c0_i32 : i32, i32
  }
}

module attributes {stable_mosaic.version = 11 : i64} {
  func.func @_prop_kernel(%arg0: i32, %arg1: i32, %arg2: memref<256x512xbf16, #tpu.memory_space<vmem>>, %arg3: memref<512x128xbf16, #tpu.memory_space<vmem>>, %arg4: memref<256x1xf32, #tpu.memory_space<vmem>>, %arg5: memref<1x128xf32, #tpu.memory_space<vmem>>, %arg6: memref<256x128xbf16, #tpu.memory_space<vmem>>, %arg7: memref<256x128xf32, #tpu.memory_space<vmem>>) attributes {dimension_semantics = [#tpu.dimension_semantics<parallel>, #tpu.dimension_semantics<arbitrary>], iteration_bounds = array<i64: 2, 1>, scalar_prefetch = 0 : i64, scratch_operands = 1 : i64, tpu.core_type = #tpu.core_type<tc>, window_params = [{transform_indices = @transform_0, window_bounds = array<i64: 256, 512>}, {pipeline_mode = #tpu.pipeline_mode<synchronous>, transform_indices = @transform_1, window_bounds = array<i64: 512, 128>}, {transform_indices = @transform_2, window_bounds = array<i64: 256, 1>}, {pipeline_mode = #tpu.pipeline_mode<synchronous>, transform_indices = @transform_3, window_bounds = array<i64: 1, 128>}, {transform_indices = @transform_4, window_bounds = array<i64: 256, 128>}]} {
    %c0_i32 = arith.constant 0 : i32
    %0 = arith.cmpi eq, %arg1, %c0_i32 : i32
    %1 = arith.extui %0 : i1 to i32
    %c0_i32_0 = arith.constant 0 : i32
    %2 = arith.cmpi ne, %1, %c0_i32_0 : i32
    scf.if %2 {
      %cst_9 = arith.constant 0.000000e+00 : f32
      %15 = vector.broadcast %cst_9 : f32 to vector<256x128xf32>
      %c0_10 = arith.constant 0 : index
      %c0_11 = arith.constant 0 : index
      %16 = vector.load %arg7[%c0_10, %c0_11] : memref<256x128xf32, #tpu.memory_space<vmem>>, vector<256x128xf32>
      tpu.vector_store %arg7[%c0_10, %c0_11], %15 {strides = array<i32>} : memref<256x128xf32, #tpu.memory_space<vmem>>, vector<256x128xf32>,
    } else {
    }
    %c512_i32 = arith.constant 512 : i32
    %3 = arith.muli %arg1, %c512_i32 : i32
    %4 = tpu.assume_multiple %3, 512 : i32
    %c0 = arith.constant 0 : index
    %c0_1 = arith.constant 0 : index
    %5 = vector.load %arg7[%c0, %c0_1] : memref<256x128xf32, #tpu.memory_space<vmem>>, vector<256x128xf32>
    %c0_2 = arith.constant 0 : index
    %c0_3 = arith.constant 0 : index
    %6 = vector.load %arg2[%c0_2, %c0_3] : memref<256x512xbf16, #tpu.memory_space<vmem>>, vector<256x512xbf16>
    %7 = arith.index_cast %4 : i32 to index
    %c0_4 = arith.constant 0 : index
    %8 = vector.load %arg3[%7, %c0_4] : memref<512x128xbf16, #tpu.memory_space<vmem>>, vector<512x128xbf16>
    %cst = arith.constant dense<0.000000e+00> : vector<256x128xf32>
    %9 = tpu.matmul %6, %8, %cst {dimension_numbers = #tpu.dot_dimension_numbers<[1], [0], [0], [1], [0, 0, 1, 1], [], []>} : vector<256x512xbf16>, vector<512x128xbf16>, vector<256x128xf32> -> vector<256x128xf32>
    %10 = arith.addf %5, %9 : vector<256x128xf32>
    %c0_5 = arith.constant 0 : index
    %c0_6 = arith.constant 0 : index
    %11 = vector.load %arg7[%c0_5, %c0_6] : memref<256x128xf32, #tpu.memory_space<vmem>>, vector<256x128xf32>
    tpu.vector_store %arg7[%c0_5, %c0_6], %10 {strides = array<i32>} : memref<256x128xf32, #tpu.memory_space<vmem>>, vector<256x128xf32>,
    %c0_i32_7 = arith.constant 0 : i32
    %12 = arith.cmpi eq, %arg1, %c0_i32_7 : i32
    %13 = arith.extui %12 : i1 to i32
    %c0_i32_8 = arith.constant 0 : i32
    %14 = arith.cmpi ne, %13, %c0_i32_8 : i32
    scf.if %14 {
      %c0_9 = arith.constant 0 : index
      %c0_10 = arith.constant 0 : index
      %15 = vector.load %arg4[%c0_9, %c0_10] : memref<256x1xf32, #tpu.memory_space<vmem>>, vector<256x1xf32>
      %c0_11 = arith.constant 0 : index
      %c0_12 = arith.constant 0 : index
      %16 = vector.load %arg7[%c0_11, %c0_12] : memref<256x128xf32, #tpu.memory_space<vmem>>, vector<256x128xf32>
      %17 = vector.broadcast %15 : vector<256x1xf32> to vector<256x128xf32>
      %18 = arith.mulf %17, %16 : vector<256x128xf32>
      %c0_13 = arith.constant 0 : index
      %c0_14 = arith.constant 0 : index
      %19 = vector.load %arg5[%c0_13, %c0_14] : memref<1x128xf32, #tpu.memory_space<vmem>>, vector<1x128xf32>
      %20 = vector.broadcast %19 : vector<1x128xf32> to vector<256x128xf32>
      %21 = arith.addf %18, %20 : vector<256x128xf32>
      %cst_15 = arith.constant 0.000000e+00 : f32
      %22 = vector.broadcast %cst_15 : f32 to vector<256x128xf32>
      %23 = arith.maximumf %21, %22 : vector<256x128xf32>
      %24 = arith.truncf %23 : vector<256x128xf32> to vector<256x128xbf16>
      %c0_16 = arith.constant 0 : index
      %c0_17 = arith.constant 0 : index
      %25 = vector.load %arg6[%c0_16, %c0_17] : memref<256x128xbf16, #tpu.memory_space<vmem>>, vector<256x128xbf16>
      tpu.vector_store %arg6[%c0_16, %c0_17], %24 {strides = array<i32>} : memref<256x128xbf16, #tpu.memory_space<vmem>>, vector<256x128xbf16>,
    } else {
    }
    return
  }
  func.func @transform_0(%arg0: i32, %arg1: i32) -> (i32, i32) {
    %c0_i32 = arith.constant 0 : i32
    return %arg0, %arg1 : i32, i32
  }
  func.func @transform_1(%arg0: i32, %arg1: i32) -> (i32, i32) {
    %c0_i32 = arith.constant 0 : i32
    %c0_i32_0 = arith.constant 0 : i32
    %c0_i32_1 = arith.constant 0 : i32
    return %c0_i32, %c0_i32_0 : i32, i32
  }
  func.func @transform_2(%arg0: i32, %arg1: i32) -> (i32, i32) {
    %c0_i32 = arith.constant 0 : i32
    %c0_i32_0 = arith.constant 0 : i32
    return %arg0, %c0_i32 : i32, i32
  }
  func.func @transform_3(%arg0: i32, %arg1: i32) -> (i32, i32) {
    %c0_i32 = arith.constant 0 : i32
    %c0_i32_0 = arith.constant 0 : i32
    %c0_i32_1 = arith.constant 0 : i32
    return %c0_i32, %c0_i32_0 : i32, i32
  }
  func.func @transform_4(%arg0: i32, %arg1: i32) -> (i32, i32) {
    %c0_i32 = arith.constant 0 : i32
    %c0_i32_0 = arith.constant 0 : i32
    return %arg0, %c0_i32 : i32, i32
  }
}

</mosaic_0001>

<llo_original>
// kernel: gnn_apply.3
$region0: #{gnn_apply.3}
  #allocation0 [shape = 'u32[]', space=smem, size = 0x4, offset = 0x4, fixed_abs, tag = 'smem constant byte address 0x4 - core index']
  #allocation1 [shape = 'u32[72,128]{1,0:T(1,128)}', space=vmem, size = 0x9000, scoped, tag = 'internal scratch']
  #allocation2 [shape = 'f32[256,128]{1,0:T(8,128)}', space=vmem, size = 0x20000, scoped, tag = 'scratch operand']
  %s0 = inlined_call_operand.vmem [shape: bf16[512,512], index: 0, kind: input, shape index: {}]
  %s1 = inlined_call_operand.vmem [shape: bf16[512,128], index: 1, kind: input, shape index: {}]
  %s2 = inlined_call_operand.vmem [shape: f32[512,1], index: 2, kind: input, shape index: {}]
  %s3 = inlined_call_operand.vmem [shape: f32[1,128], index: 3, kind: input, shape index: {}]
  %s4 = inlined_call_operand.vmem [shape: bf16[512,128], index: 4, kind: output, shape index: {}]
  %s5 = sld [smem:[#allocation0]]
  $region57: #{gnn_apply.3} parent=0
    _
  %s7 = ssub.s32 1, %s5
  %s8 = scalar_select 0, %s7, %s5
  loop: start=0, step=1, limit=4
  $region2: #{gnn_apply.3} parent=0 // loop_pre_header
    _
  $region3: #{gnn_apply.3} parent=0 // loop_header
    %s10 = sphi 0, %s14
    %p11 = scmp.ge.s32.totalorder %s10, 4
    %s17 = sphi 0, %s29
    %s18 = sphi 0, %s25
    %s19 = sphi 0, %s17
    %s20 = sphi 0, %s18
    %s21 = sphi 0, %s19
    %s22 = sphi 0, %s20
    %s34 = sphi 0, %s36
    %s37 = sphi 0, %s34
    %s38 = sphi 0, %s37
    %s54 = sphi 0, %s38
    %s58 = sphi 0, %s58
    %s60 = sphi 0, %s58
    %s61 = sphi 0, %s60
    %s75 = sphi 0, %s61
    %s81 = sphi 0, %s83
    %s84 = sphi 0, %s81
    %s85 = sphi 0, %s84
    %s101 = sphi 0, %s85
    %s105 = sphi 0, %s105
    %s107 = sphi 0, %s105
    %s108 = sphi 0, %s107
    %s122 = sphi 0, %s108
    %s128 = sphi 0, %s130
    %s131 = sphi 0, %s128
    %s132 = sphi 0, %s131
    %s148 = sphi 0, %s132
  $region4: #{gnn_apply.3} parent=0 // loop_header_branch
    %13 = sbr.rel (%p11) target = $region8
  $region5: #{gnn_apply.3} parent=0 // loop_body
    %s15 = ssub.s32 %s10, 1
    %s16 = ssub.s32 %s10, 2
    %s23 = sadd.s32 1, %s18
    %p24 = scmp.ge.s32.totalorder %s23, 1
    %s25 = scalar_select %p24, 0, %s23
    %s26 = sadd.s32 1, %s17
    %s27 = scalar_select %p24, %s26, %s17
    %p28 = scmp.ge.s32.totalorder %s27, 2
    %s29 = scalar_select %p28, 0, %s27
    %s30 = ssub.s32 %s17, %s29
    %s31 = ssub.s32 %s18, %s25
    %s32 = sor.u32 %s30, %s31
    %p33 = scmp.eq.s32.totalorder %s32, 0
    %s35 = sadd.s32 %s34, 1
    %s36 = scalar_select %p33, %s34, %s35
    %p39 = pneg %p33
    %p40 = scmp.eq.s32.totalorder %s10, 1
    %p41 = por %p39, %p40
    %p42 = scmp.ne.s32.totalorder %s34, %s37
    %p43 = scmp.eq.s32.totalorder %s10, 0
    %p44 = por %p42, %p43
    %p45 = scmp.ne.s32.totalorder %s34, %s37
    %p46 = scmp.eq.s32.totalorder %s15, 1
    %p47 = por %p45, %p46
    %p48 = scmp.ne.s32.totalorder %s37, %s38
    %p49 = scmp.eq.s32.totalorder %s15, 0
    %p50 = por %p48, %p49
    %p51 = scmp.ne.s32.totalorder %s37, %s38
    %p52 = scmp.eq.s32.totalorder %s16, 1
    %p53 = por %p51, %p52
    %p55 = scmp.ne.s32.totalorder %s38, %s54
    %p56 = scmp.eq.s32.totalorder %s16, 0
    %p57 = por %p55, %p56
    %s59 = sadd.s32 %s58, 1
    %p62 = scmp.eq.s32.totalorder %s10, 1
    %p63 = scmp.ne.s32.totalorder %s58, %s60
    %p64 = scmp.eq.s32.totalorder %s10, 0
    %p65 = por %p63, %p64
    %p66 = scmp.ne.s32.totalorder %s58, %s60
    %p67 = scmp.eq.s32.totalorder %s15, 1
    %p68 = por %p66, %p67
    %p69 = scmp.ne.s32.totalorder %s60, %s61
    %p70 = scmp.eq.s32.totalorder %s15, 0
    %p71 = por %p69, %p70
    %p72 = scmp.ne.s32.totalorder %s60, %s61
    %p73 = scmp.eq.s32.totalorder %s16, 1
    %p74 = por %p72, %p73
    %p76 = scmp.ne.s32.totalorder %s61, %s75
    %p77 = scmp.eq.s32.totalorder %s16, 0
    %p78 = por %p76, %p77
    %s79 = ssub.s32 %s17, %s29
    %p80 = scmp.eq.s32.totalorder %s79, 0
    %s82 = sadd.s32 %s81, 1
    %s83 = scalar_select %p80, %s81, %s82
    %p86 = pneg %p80
    %p87 = scmp.eq.s32.totalorder %s10, 1
    %p88 = por %p86, %p87
    %p89 = scmp.ne.s32.totalorder %s81, %s84
    %p90 = scmp.eq.s32.totalorder %s10, 0
    %p91 = por %p89, %p90
    %p92 = scmp.ne.s32.totalorder %s81, %s84
    %p93 = scmp.eq.s32.totalorder %s15, 1
    %p94 = por %p92, %p93
    %p95 = scmp.ne.s32.totalorder %s84, %s85
    %p96 = scmp.eq.s32.totalorder %s15, 0
    %p97 = por %p95, %p96
    %p98 = scmp.ne.s32.totalorder %s84, %s85
    %p99 = scmp.eq.s32.totalorder %s16, 1
    %p100 = por %p98, %p99
    %p102 = scmp.ne.s32.totalorder %s85, %s101
    %p103 = scmp.eq.s32.totalorder %s16, 0
    %p104 = por %p102, %p103
    %s106 = sadd.s32 %s105, 1
    %p109 = scmp.eq.s32.totalorder %s10, 1
    %p110 = scmp.ne.s32.totalorder %s105, %s107
    %p111 = scmp.eq.s32.totalorder %s10, 0
    %p112 = por %p110, %p111
    %p113 = scmp.ne.s32.totalorder %s105, %s107
    %p114 = scmp.eq.s32.totalorder %s15, 1
    %p115 = por %p113, %p114
    %p116 = scmp.ne.s32.totalorder %s107, %s108
    %p117 = scmp.eq.s32.totalorder %s15, 0
    %p118 = por %p116, %p117
    %p119 = scmp.ne.s32.totalorder %s107, %s108
    %p120 = scmp.eq.s32.totalorder %s16, 1
    %p121 = por %p119, %p120
    %p123 = scmp.ne.s32.totalorder %s108, %s122
    %p124 = scmp.eq.s32.totalorder %s16, 0
    %p125 = por %p123, %p124
    %s126 = ssub.s32 %s17, %s29
    %p127 = scmp.eq.s32.totalorder %s126, 0
    %s129 = sadd.s32 %s128, 1
    %s130 = scalar_select %p127, %s128, %s129
    %p133 = pneg %p127
    %p134 = scmp.eq.s32.totalorder %s10, 1
    %p135 = por %p133, %p134
    %p136 = scmp.ne.s32.totalorder %s128, %s131
    %p137 = scmp.eq.s32.totalorder %s10, 0
    %p138 = por %p136, %p137
    %p139 = scmp.ne.s32.totalorder %s128, %s131
    %p140 = scmp.eq.s32.totalorder %s15, 1
    %p141 = por %p139, %p140
    %p142 = scmp.ne.s32.totalorder %s131, %s132
    %p143 = scmp.eq.s32.totalorder %s15, 0
    %p144 = por %p142, %p143
    %p145 = scmp.ne.s32.totalorder %s131, %s132
    %p146 = scmp.eq.s32.totalorder %s16, 1
    %p147 = por %p145, %p146
    %p149 = scmp.ne.s32.totalorder %s132, %s148
    %p150 = scmp.eq.s32.totalorder %s16, 0
    %p151 = por %p149, %p150
    %p152 = scmp.le.s32.totalorder 1, %s10
    %p153 = scmp.lt.s32.totalorder %s10, 3
    %p154 = pnand %p152, %p153
    %p155 = pneg %p154
    // Predicated region
    $region9: #{gnn_apply.3} parent=5 // pred_check
      _
    $region10: #{gnn_apply.3} parent=5 // pred_check_branch
      %157 = sbr.rel (%p154) target = $region12
    $region11: #{gnn_apply.3} parent=5 // pred_region
      %s158 = ssub.s32 %s10, 1
      // Predicated region
      $region13: #{gnn_apply.3} parent=11 // pred_check
        %p159 = pneg %p71
      $region14: #{gnn_apply.3} parent=11 // pred_check_branch
        %161 = sbr.rel (%p159) target = $region16
      $region15: #{gnn_apply.3} parent=11 // pred_region
        _
      $region16: #{gnn_apply.3} parent=11 // pred_fallthru
        _
      // Predicated region
      $region17: #{gnn_apply.3} parent=11 // pred_check
        %p162 = pneg %p118
      $region18: #{gnn_apply.3} parent=11 // pred_check_branch
        %164 = sbr.rel (%p162) target = $region20
      $region19: #{gnn_apply.3} parent=11 // pred_region
        _
      $region20: #{gnn_apply.3} parent=11 // pred_fallthru
        _
    $region12: #{gnn_apply.3} parent=5 // pred_fallthru
      _
    %p165 = scmp.lt.s32.totalorder %s10, 2
    // Predicated region
    $region21: #{gnn_apply.3} parent=5 // pred_check
      %p166 = pneg %p165
    $region22: #{gnn_apply.3} parent=5 // pred_check_branch
      %168 = sbr.rel (%p166) target = $region24
    $region23: #{gnn_apply.3} parent=5 // pred_region
      // Predicated region
      $region25: #{gnn_apply.3} parent=23 // pred_check
        %p169 = pneg %p44
      $region26: #{gnn_apply.3} parent=23 // pred_check_branch
        %171 = sbr.rel (%p169) target = $region28
      $region27: #{gnn_apply.3} parent=23 // pred_region
        %s172 = smul.u32 32, %s17
        %s173 = smul.u32 4, %s18
        %p174 = scmp.lt.s32.totalorder %s172, 63
        %s175 = scalar_select %p174, %s172, 63
        %p176 = scmp.lt.s32.totalorder %s173, 3
        %s177 = scalar_select %p176, %s173, 3
        %s178 = smul.addr %s175, 4
        %s179 = sadd.s32 %s177, %s178
        %s180 = smul.addr %s179, 4
        %s181 = scalar_lea.vmem %s0, %s180
        %s182 = smul.u32 32, %s17
        %s183 = smul.u32 4, %s18
      $region28: #{gnn_apply.3} parent=23 // pred_fallthru
        _
      // Predicated region
      $region29: #{gnn_apply.3} parent=23 // pred_check
        %p184 = pneg %p91
      $region30: #{gnn_apply.3} parent=23 // pred_check_branch
        %186 = sbr.rel (%p184) target = $region32
      $region31: #{gnn_apply.3} parent=23 // pred_region
        %s187 = smul.u32 32, %s17
        %p188 = scmp.lt.s32.totalorder %s187, 63
        %s189 = scalar_select %p188, %s187, 63
        %s190 = smul.addr %s189, 8
        %s191 = scalar_lea.vmem %s2, %s190
        %s192 = smul.u32 32, %s17
      $region32: #{gnn_apply.3} parent=23 // pred_fallthru
        _
    $region24: #{gnn_apply.3} parent=5 // pred_fallthru
      _
    %p193 = scmp.le.s32.totalorder 1, %s10
    %p194 = scmp.lt.s32.totalorder %s10, 3
    %p195 = pnand %p193, %p194
    %p196 = pneg %p195
    // Predicated region
    $region33: #{gnn_apply.3} parent=5 // pred_check
      _
    $region34: #{gnn_apply.3} parent=5 // pred_check_branch
      %198 = sbr.rel (%p195) target = $region36
    $region35: #{gnn_apply.3} parent=5 // pred_region
      %s199 = ssub.s32 %s10, 1
      %s200 = smul.u32 32, %s19
      %s201 = smul.u32 4, %s20
      %p202 = scmp.lt.s32.totalorder %s200, 63
      %s203 = scalar_select %p202, %s200, 63
      %p204 = scmp.lt.s32.totalorder %s201, 3
      %s205 = scalar_select %p204, %s201, 3
      %s206 = smul.addr %s203, 4
      %s207 = sadd.s32 %s205, %s206
      %s208 = smul.addr %s207, 4
      %s209 = scalar_lea.vmem %s0, %s208
      %p210 = pneg %p50
      %p211 = pneg %p47
      %p212 = pneg %p71
      %p213 = pneg %p68
      %s214 = smul.u32 32, %s19
      %p215 = scmp.lt.s32.totalorder %s214, 63
      %s216 = scalar_select %p215, %s214, 63
      %s217 = smul.addr %s216, 8
      %s218 = scalar_lea.vmem %s2, %s217
      %p219 = pneg %p97
      %p220 = pneg %p94
      %p221 = pneg %p118
      %p222 = pneg %p115
      %p223 = pneg %p144
      %p224 = pneg %p141
      %s225 = smul.u32 32, %s19
      %p226 = scmp.lt.s32.totalorder %s225, 63
      %s227 = scalar_select %p226, %s225, 63
      %s228 = smul.addr %s227, 4
      %s229 = scalar_lea.vmem %s4, %s228
      %s230 = smul.u32 32, %s19
      %s231 = smul.u32 4, %s20
      %p232 = scmp.lt.s32.totalorder %s230, 63
      %s233 = scalar_select %p232, %s230, 63
      %p234 = scmp.lt.s32.totalorder %s231, 3
      %s235 = scalar_select %p234, %s231, 3
      %s236 = smul.addr %s233, 4
      %s237 = sadd.s32 %s235, %s236
      %s238 = smul.addr %s237, 4
      %s239 = scalar_lea.vmem %s0, %s238
      %s240 = smul.u32 32, %s19
      %s241 = smul.u32 4, %s20
      %s242 = smul.u32 32, %s19
      %p243 = scmp.lt.s32.totalorder %s242, 63
      %s244 = scalar_select %p243, %s242, 63
      %s245 = smul.addr %s244, 8
      %s246 = scalar_lea.vmem %s2, %s245
      %s247 = smul.u32 32, %s19
      %s248 = smul.u32 32, %s19
      %p249 = scmp.lt.s32.totalorder %s248, 63
      %s250 = scalar_select %p249, %s248, 63
      %s251 = smul.addr %s250, 4
      %s252 = scalar_lea.vmem %s4, %s251
      %s253 = smul.u32 32, %s19
      %p254 = scmp.eq.s32.totalorder %s20, 0
      // Predicated region
      $region37: #{gnn_apply.3} parent=35 // pred_check
        %p255 = pneg %p254
      $region38: #{gnn_apply.3} parent=35 // pred_check_branch
        %257 = sbr.rel (%p255) target = $region40
      $region39: #{gnn_apply.3} parent=35 // pred_region
        %258 = vst [vmem:[#allocation2] sm:$0xff] 0.0
        %259 = vst [vmem:[#allocation2 + $0x8] sm:$0xff] 0.0
        %260 = vst [vmem:[#allocation2 + $0x10] sm:$0xff] 0.0
        %261 = vst [vmem:[#allocation2 + $0x18] sm:$0xff] 0.0
        %262 = vst [vmem:[#allocation2 + $0x20] sm:$0xff] 0.0
        %263 = vst [vmem:[#allocation2 + $0x28] sm:$0xff] 0.0
        %264 = vst [vmem:[#allocation2 + $0x30] sm:$0xff] 0.0
        %265 = vst [vmem:[#allocation2 + $0x38] sm:$0xff] 0.0
        %266 = vst [vmem:[#allocation2 + $0x40] sm:$0xff] 0.0
        %267 = vst [vmem:[#allocation2 + $0x48] sm:$0xff] 0.0
        %268 = vst [vmem:[#allocation2 + $0x50] sm:$0xff] 0.0
        %269 = vst [vmem:[#allocation2 + $0x58] sm:$0xff] 0.0
        %270 = vst [vmem:[#allocation2 + $0x60] sm:$0xff] 0.0
        %271 = vst [vmem:[#allocation2 + $0x68] sm:$0xff] 0.0
        %272 = vst [vmem:[#allocation2 + $0x70] sm:$0xff] 0.0
        %273 = vst [vmem:[#allocation2 + $0x78] sm:$0xff] 0.0
        %274 = vst [vmem:[#allocation2 + $0x80] sm:$0xff] 0.0
        %275 = vst [vmem:[#allocation2 + $0x88] sm:$0xff] 0.0
        %276 = vst [vmem:[#allocation2 + $0x90] sm:$0xff] 0.0
        %277 = vst [vmem:[#allocation2 + $0x98] sm:$0xff] 0.0
        %278 = vst [vmem:[#allocation2 + $0xa0] sm:$0xff] 0.0
        %279 = vst [vmem:[#allocation2 + $0xa8] sm:$0xff] 0.0
        %280 = vst [vmem:[#allocation2 + $0xb0] sm:$0xff] 0.0
        %281 = vst [vmem:[#allocation2 + $0xb8] sm:$0xff] 0.0
        %282 = vst [vmem:[#allocation2 + $0xc0] sm:$0xff] 0.0
        %283 = vst [vmem:[#allocation2 + $0xc8] sm:$0xff] 0.0
        %284 = vst [vmem:[#allocation2 + $0xd0] sm:$0xff] 0.0
        %285 = vst [vmem:[#allocation2 + $0xd8] sm:$0xff] 0.0
        %286 = vst [vmem:[#allocation2 + $0xe0] sm:$0xff] 0.0
        %287 = vst [vmem:[#allocation2 + $0xe8] sm:$0xff] 0.0
        %288 = vst [vmem:[#allocation2 + $0xf0] sm:$0xff] 0.0
        %289 = vst [vmem:[#allocation2 + $0xf8] sm:$0xff] 0.0
      $region40: #{gnn_apply.3} parent=35 // pred_fallthru
        _
      %s290 = smul.u32 %s20, 512
      %v291 = vld [vmem:[#allocation2] sm:$0xff]
      %v292 = vld [vmem:[#allocation2 + $0x8] sm:$0xff]
      %v293 = vld [vmem:[#allocation2 + $0x10] sm:$0xff]
      %v294 = vld [vmem:[#allocation2 + $0x18] sm:$0xff]
      %v295 = vld [vmem:[#allocation2 + $0x20] sm:$0xff]
      %v296 = vld [vmem:[#allocation2 + $0x28] sm:$0xff]
      %v297 = vld [vmem:[#allocation2 + $0x30] sm:$0xff]
      %v298 = vld [vmem:[#allocation2 + $0x38] sm:$0xff]
      %v299 = vld [vmem:[#allocation2 + $0x40] sm:$0xff]
      %v300 = vld [vmem:[#allocation2 + $0x48] sm:$0xff]
      %v301 = vld [vmem:[#allocation2 + $0x50] sm:$0xff]
      %v302 = vld [vmem:[#allocation2 + $0x58] sm:$0xff]
      %v303 = vld [vmem:[#allocation2 + $0x60] sm:$0xff]
      %v304 = vld [vmem:[#allocation2 + $0x68] sm:$0xff]
      %v305 = vld [vmem:[#allocation2 + $0x70] sm:$0xff]
      %v306 = vld [vmem:[#allocation2 + $0x78] sm:$0xff]
      %v307 = vld [vmem:[#allocation2 + $0x80] sm:$0xff]
      %v308 = vld [vmem:[#allocation2 + $0x88] sm:$0xff]
      %v309 = vld [vmem:[#allocation2 + $0x90] sm:$0xff]
      %v310 = vld [vmem:[#allocation2 + $0x98] sm:$0xff]
      %v311 = vld [vmem:[#allocation2 + $0xa0] sm:$0xff]
      %v312 = vld [vmem:[#allocation2 + $0xa8] sm:$0xff]
      %v313 = vld [vmem:[#allocation2 + $0xb0] sm:$0xff]
      %v314 = vld [vmem:[#allocation2 + $0xb8] sm:$0xff]
      %v315 = vld [vmem:[#allocation2 + $0xc0] sm:$0xff]
      %v316 = vld [vmem:[#allocation2 + $0xc8] sm:$0xff]
      %v317 = vld [vmem:[#allocation2 + $0xd0] sm:$0xff]
      %v318 = vld [vmem:[#allocation2 + $0xd8] sm:$0xff]
      %v319 = vld [vmem:[#allocation2 + $0xe0] sm:$0xff]
      %v320 = vld [vmem:[#allocation2 + $0xe8] sm:$0xff]
      %v321 = vld [vmem:[#allocation2 + $0xf0] sm:$0xff]
      %v322 = vld [vmem:[#allocation2 + $0xf8] sm:$0xff]
      %v323 = vld [vmem:[%s239] sm:$0xff]
      %v324 = vld [vmem:[%s239 + $0x8] sm:$0xff]
      %v325 = vld [vmem:[%s239 + $0x10] sm:$0xff]
      %v326 = vld [vmem:[%s239 + $0x18] sm:$0xff]
      %v327 = vld [vmem:[%s239 + $0x20] sm:$0xff]
      %v328 = vld [vmem:[%s239 + $0x28] sm:$0xff]
      %v329 = vld [vmem:[%s239 + $0x30] sm:$0xff]
      %v330 = vld [vmem:[%s239 + $0x38] sm:$0xff]
      %v331 = vld [vmem:[%s239 + $0x40] sm:$0xff]
      %v332 = vld [vmem:[%s239 + $0x48] sm:$0xff]
      %v333 = vld [vmem:[%s239 + $0x50] sm:$0xff]
      %v334 = vld [vmem:[%s239 + $0x58] sm:$0xff]
      %v335 = vld [vmem:[%s239 + $0x60] sm:$0xff]
      %v336 = vld [vmem:[%s239 + $0x68] sm:$0xff]
      %v337 = vld [vmem:[%s239 + $0x70] sm:$0xff]
      %v338 = vld [vmem:[%s239 + $0x78] sm:$0xff]
      %v339 = vld [vmem:[%s239 + $0x80] sm:$0xff]
      %v340 = vld [vmem:[%s239 + $0x88] sm:$0xff]
      %v341 = vld [vmem:[%s239 + $0x90] sm:$0xff]
      %v342 = vld [vmem:[%s239 + $0x98] sm:$0xff]
      %v343 = vld [vmem:[%s239 + $0xa0] sm:$0xff]
      %v344 = vld [vmem:[%s239 + $0xa8] sm:$0xff]
      %v345 = vld [vmem:[%s239 + $0xb0] sm:$0xff]
      %v346 = vld [vmem:[%s239 + $0xb8] sm:$0xff]
      %v347 = vld [vmem:[%s239 + $0xc0] sm:$0xff]
      %v348 = vld [vmem:[%s239 + $0xc8] sm:$0xff]
      %v349 = vld [vmem:[%s239 + $0xd0] sm:$0xff]
      %v350 = vld [vmem:[%s239 + $0xd8] sm:$0xff]
      %v351 = vld [vmem:[%s239 + $0xe0] sm:$0xff]
      %v352 = vld [vmem:[%s239 + $0xe8] sm:$0xff]
      %v353 = vld [vmem:[%s239 + $0xf0] sm:$0xff]
      %v354 = vld [vmem:[%s239 + $0xf8] sm:$0xff]
      %v355 = vld [vmem:[%s239 + $0x100] sm:$0xff]
      %v356 = vld [vmem:[%s239 + $0x108] sm:$0xff]
      %v357 = vld [vmem:[%s239 + $0x110] sm:$0xff]
      %v358 = vld [vmem:[%s239 + $0x118] sm:$0xff]
      %v359 = vld [vmem:[%s239 + $0x120] sm:$0xff]
      %v360 = vld [vmem:[%s239 + $0x128] sm:$0xff]
      %v361 = vld [vmem:[%s239 + $0x130] sm:$0xff]
      %v362 = vld [vmem:[%s239 + $0x138] sm:$0xff]
      %v363 = vld [vmem:[%s239 + $0x140] sm:$0xff]
      %v364 = vld [vmem:[%s239 + $0x148] sm:$0xff]
      %v365 = vld [vmem:[%s239 + $0x150] sm:$0xff]
      %v366 = vld [vmem:[%s239 + $0x158] sm:$0xff]
      %v367 = vld [vmem:[%s239 + $0x160] sm:$0xff]
      %v368 = vld [vmem:[%s239 + $0x168] sm:$0xff]
      %v369 = vld [vmem:[%s239 + $0x170] sm:$0xff]
      %v370 = vld [vmem:[%s239 + $0x178] sm:$0xff]
      %v371 = vld [vmem:[%s239 + $0x180] sm:$0xff]
      %v372 = vld [vmem:[%s239 + $0x188] sm:$0xff]
      %v373 = vld [vmem:[%s239 + $0x190] sm:$0xff]
      %v374 = vld [vmem:[%s239 + $0x198] sm:$0xff]
      %v375 = vld [vmem:[%s239 + $0x1a0] sm:$0xff]
      %v376 = vld [vmem:[%s239 + $0x1a8] sm:$0xff]
      %v377 = vld [vmem:[%s239 + $0x1b0] sm:$0xff]
      %v378 = vld [vmem:[%s239 + $0x1b8] sm:$0xff]
      %v379 = vld [vmem:[%s239 + $0x1c0] sm:$0xff]
      %v380 = vld [vmem:[%s239 + $0x1c8] sm:$0xff]
      %v381 = vld [vmem:[%s239 + $0x1d0] sm:$0xff]
      %v382 = vld [vmem:[%s239 + $0x1d8] sm:$0xff]
      %v383 = vld [vmem:[%s239 + $0x1e0] sm:$0xff]
      %v384 = vld [vmem:[%s239 + $0x1e8] sm:$0xff]
      %v385 = vld [vmem:[%s239 + $0x1f0] sm:$0xff]
      %v386 = vld [vmem:[%s239 + $0x1f8] sm:$0xff]
      %s387 = sshra.s32 %s290, 3
      %s388 = sand.u32 %s290, 7
      %s389 = smul.addr %s387, 4
      %s390 = scalar_lea.vmem %s1, %s389
      %v391 = vld [vmem:[%s390] sm:$0xf]
      %v392 = vld [vmem:[%s390 + $0x4] sm:$0xf]
      %v393 = vld [vmem:[%s390 + $0x8] sm:$0xf]
      %v394 = vld [vmem:[%s390 + $0xc] sm:$0xf]
      %v395 = vld [vmem:[%s390 + $0x10] sm:$0xf]
      %v396 = vld [vmem:[%s390 + $0x14] sm:$0xf]
      %v397 = vld [vmem:[%s390 + $0x18] sm:$0xf]
      %v398 = vld [vmem:[%s390 + $0x1c] sm:$0xf]
      %v399 = vld [vmem:[%s390 + $0x20] sm:$0xf]
      %v400 = vld [vmem:[%s390 + $0x24] sm:$0xf]
      %v401 = vld [vmem:[%s390 + $0x28] sm:$0xf]
      %v402 = vld [vmem:[%s390 + $0x2c] sm:$0xf]
      %v403 = vld [vmem:[%s390 + $0x30] sm:$0xf]
      %v404 = vld [vmem:[%s390 + $0x34] sm:$0xf]
      %v405 = vld [vmem:[%s390 + $0x38] sm:$0xf]
      %v406 = vld [vmem:[%s390 + $0x3c] sm:$0xf]
      %v407 = vld [vmem:[%s390 + $0x40] sm:$0xf]
      %v408 = vld [vmem:[%s390 + $0x44] sm:$0xf]
      %v409 = vld [vmem:[%s390 + $0x48] sm:$0xf]
      %v410 = vld [vmem:[%s390 + $0x4c] sm:$0xf]
      %v411 = vld [vmem:[%s390 + $0x50] sm:$0xf]
      %v412 = vld [vmem:[%s390 + $0x54] sm:$0xf]
      %v413 = vld [vmem:[%s390 + $0x58] sm:$0xf]
      %v414 = vld [vmem:[%s390 + $0x5c] sm:$0xf]
      %v415 = vld [vmem:[%s390 + $0x60] sm:$0xf]
      %v416 = vld [vmem:[%s390 + $0x64] sm:$0xf]
      %v417 = vld [vmem:[%s390 + $0x68] sm:$0xf]
      %v418 = vld [vmem:[%s390 + $0x6c] sm:$0xf]
      %v419 = vld [vmem:[%s390 + $0x70] sm:$0xf]
      %v420 = vld [vmem:[%s390 + $0x74] sm:$0xf]
      %v421 = vld [vmem:[%s390 + $0x78] sm:$0xf]
      %v422 = vld [vmem:[%s390 + $0x7c] sm:$0xf]
      %v423 = vld [vmem:[%s390 + $0x80] sm:$0xf]
      %v424 = vld [vmem:[%s390 + $0x84] sm:$0xf]
      %v425 = vld [vmem:[%s390 + $0x88] sm:$0xf]
      %v426 = vld [vmem:[%s390 + $0x8c] sm:$0xf]
      %v427 = vld [vmem:[%s390 + $0x90] sm:$0xf]
      %v428 = vld [vmem:[%s390 + $0x94] sm:$0xf]
      %v429 = vld [vmem:[%s390 + $0x98] sm:$0xf]
      %v430 = vld [vmem:[%s390 + $0x9c] sm:$0xf]
      %v431 = vld [vmem:[%s390 + $0xa0] sm:$0xf]
      %v432 = vld [vmem:[%s390 + $0xa4] sm:$0xf]
      %v433 = vld [vmem:[%s390 + $0xa8] sm:$0xf]
      %v434 = vld [vmem:[%s390 + $0xac] sm:$0xf]
      %v435 = vld [vmem:[%s390 + $0xb0] sm:$0xf]
      %v436 = vld [vmem:[%s390 + $0xb4] sm:$0xf]
      %v437 = vld [vmem:[%s390 + $0xb8] sm:$0xf]
      %v438 = vld [vmem:[%s390 + $0xbc] sm:$0xf]
      %v439 = vld [vmem:[%s390 + $0xc0] sm:$0xf]
      %v440 = vld [vmem:[%s390 + $0xc4] sm:$0xf]
      %v441 = vld [vmem:[%s390 + $0xc8] sm:$0xf]
      %v442 = vld [vmem:[%s390 + $0xcc] sm:$0xf]
      %v443 = vld [vmem:[%s390 + $0xd0] sm:$0xf]
      %v444 = vld [vmem:[%s390 + $0xd4] sm:$0xf]
      %v445 = vld [vmem:[%s390 + $0xd8] sm:$0xf]
      %v446 = vld [vmem:[%s390 + $0xdc] sm:$0xf]
      %v447 = vld [vmem:[%s390 + $0xe0] sm:$0xf]
      %v448 = vld [vmem:[%s390 + $0xe4] sm:$0xf]
      %v449 = vld [vmem:[%s390 + $0xe8] sm:$0xf]
      %v450 = vld [vmem:[%s390 + $0xec] sm:$0xf]
      %v451 = vld [vmem:[%s390 + $0xf0] sm:$0xf]
      %v452 = vld [vmem:[%s390 + $0xf4] sm:$0xf]
      %v453 = vld [vmem:[%s390 + $0xf8] sm:$0xf]
      %v454 = vld [vmem:[%s390 + $0xfc] sm:$0xf]
      %v519 = vunpack.c.l.b16 %v323
      %v520 = vunpack.c.h.b16 %v323
      %v521 = vunpack.c.l.b16 %v324
      %v522 = vunpack.c.h.b16 %v324
      %v523 = vunpack.c.l.b16 %v325
      %v524 = vunpack.c.h.b16 %v325
      %v525 = vunpack.c.l.b16 %v326
      %v526 = vunpack.c.h.b16 %v326
      %v527 = vunpack.c.l.b16 %v327
      %v528 = vunpack.c.h.b16 %v327
      %v529 = vunpack.c.l.b16 %v328
      %v530 = vunpack.c.h.b16 %v328
      %v531 = vunpack.c.l.b16 %v329
      %v532 = vunpack.c.h.b16 %v329
      %v533 = vunpack.c.l.b16 %v330
      %v534 = vunpack.c.h.b16 %v330
      %v535 = vunpack.c.l.b16 %v331
      %v536 = vunpack.c.h.b16 %v331
      %v537 = vunpack.c.l.b16 %v332
      %v538 = vunpack.c.h.b16 %v332
      %v539 = vunpack.c.l.b16 %v333
      %v540 = vunpack.c.h.b16 %v333
      %v541 = vunpack.c.l.b16 %v334
      %v542 = vunpack.c.h.b16 %v334
      %v543 = vunpack.c.l.b16 %v335
      %v544 = vunpack.c.h.b16 %v335
      %v545 = vunpack.c.l.b16 %v336
      %v546 = vunpack.c.h.b16 %v336
      %v547 = vunpack.c.l.b16 %v337
      %v548 = vunpack.c.h.b16 %v337
      %v549 = vunpack.c.l.b16 %v338
      %v550 = vunpack.c.h.b16 %v338
      %v551 = vunpack.c.l.b16 %v339
      %v552 = vunpack.c.h.b16 %v339
      %v553 = vunpack.c.l.b16 %v340
      %v554 = vunpack.c.h.b16 %v340
      %v555 = vunpack.c.l.b16 %v341
      %v556 = vunpack.c.h.b16 %v341
      %v557 = vunpack.c.l.b16 %v342
      %v558 = vunpack.c.h.b16 %v342
      %v559 = vunpack.c.l.b16 %v343
      %v560 = vunpack.c.h.b16 %v343
      %v561 = vunpack.c.l.b16 %v344
      %v562 = vunpack.c.h.b16 %v344
      %v563 = vunpack.c.l.b16 %v345
      %v564 = vunpack.c.h.b16 %v345
      %v565 = vunpack.c.l.b16 %v346
      %v566 = vunpack.c.h.b16 %v346
      %v567 = vunpack.c.l.b16 %v347
      %v568 = vunpack.c.h.b16 %v347
      %v569 = vunpack.c.l.b16 %v348
      %v570 = vunpack.c.h.b16 %v348
      %v571 = vunpack.c.l.b16 %v349
      %v572 = vunpack.c.h.b16 %v349
      %v573 = vunpack.c.l.b16 %v350
      %v574 = vunpack.c.h.b16 %v350
      %v575 = vunpack.c.l.b16 %v351
      %v576 = vunpack.c.h.b16 %v351
      %v577 = vunpack.c.l.b16 %v352
      %v578 = vunpack.c.h.b16 %v352
      %v579 = vunpack.c.l.b16 %v353
      %v580 = vunpack.c.h.b16 %v353
      %v581 = vunpack.c.l.b16 %v354
      %v582 = vunpack.c.h.b16 %v354
      %v583 = vunpack.c.l.b16 %v355
      %v584 = vunpack.c.h.b16 %v355
      %v585 = vunpack.c.l.b16 %v356
      %v586 = vunpack.c.h.b16 %v356
      %v587 = vunpack.c.l.b16 %v357
      %v588 = vunpack.c.h.b16 %v357
      %v589 = vunpack.c.l.b16 %v358
      %v590 = vunpack.c.h.b16 %v358
      %v591 = vunpack.c.l.b16 %v359
      %v592 = vunpack.c.h.b16 %v359
      %v593 = vunpack.c.l.b16 %v360
      %v594 = vunpack.c.h.b16 %v360
      %v595 = vunpack.c.l.b16 %v361
      %v596 = vunpack.c.h.b16 %v361
      %v597 = vunpack.c.l.b16 %v362
      %v598 = vunpack.c.h.b16 %v362
      %v599 = vunpack.c.l.b16 %v363
      %v600 = vunpack.c.h.b16 %v363
      %v601 = vunpack.c.l.b16 %v364
      %v602 = vunpack.c.h.b16 %v364
      %v603 = vunpack.c.l.b16 %v365
      %v604 = vunpack.c.h.b16 %v365
      %v605 = vunpack.c.l.b16 %v366
      %v606 = vunpack.c.h.b16 %v366
      %v607 = vunpack.c.l.b16 %v367
      %v608 = vunpack.c.h.b16 %v367
      %v609 = vunpack.c.l.b16 %v368
      %v610 = vunpack.c.h.b16 %v368
      %v611 = vunpack.c.l.b16 %v369
      %v612 = vunpack.c.h.b16 %v369
      %v613 = vunpack.c.l.b16 %v370
      %v614 = vunpack.c.h.b16 %v370
      %v615 = vunpack.c.l.b16 %v371
      %v616 = vunpack.c.h.b16 %v371
      %v617 = vunpack.c.l.b16 %v372
      %v618 = vunpack.c.h.b16 %v372
      %v619 = vunpack.c.l.b16 %v373
      %v620 = vunpack.c.h.b16 %v373
      %v621 = vunpack.c.l.b16 %v374
      %v622 = vunpack.c.h.b16 %v374
      %v623 = vunpack.c.l.b16 %v375
      %v624 = vunpack.c.h.b16 %v375
      %v625 = vunpack.c.l.b16 %v376
      %v626 = vunpack.c.h.b16 %v376
      %v627 = vunpack.c.l.b16 %v377
      %v628 = vunpack.c.h.b16 %v377
      %v629 = vunpack.c.l.b16 %v378
      %v630 = vunpack.c.h.b16 %v378
      %v631 = vunpack.c.l.b16 %v379
      %v632 = vunpack.c.h.b16 %v379
      %v633 = vunpack.c.l.b16 %v380
      %v634 = vunpack.c.h.b16 %v380
      %v635 = vunpack.c.l.b16 %v381
      %v636 = vunpack.c.h.b16 %v381
      %v637 = vunpack.c.l.b16 %v382
      %v638 = vunpack.c.h.b16 %v382
      %v639 = vunpack.c.l.b16 %v383
      %v640 = vunpack.c.h.b16 %v383
      %v641 = vunpack.c.l.b16 %v384
      %v642 = vunpack.c.h.b16 %v384
      %v643 = vunpack.c.l.b16 %v385
      %v644 = vunpack.c.h.b16 %v385
      %v645 = vunpack.c.l.b16 %v386
      %v646 = vunpack.c.h.b16 %v386
      %v647 = vpack.c.b16 %v523, %v519
      %v648 = vpack.c.b16 %v524, %v520
      %v649 = vpack.c.b16 %v525, %v521
      %v650 = vpack.c.b16 %v526, %v522
      %v651 = vpack.c.b16 %v531, %v527
      %v652 = vpack.c.b16 %v532, %v528
      %v653 = vpack.c.b16 %v533, %v529
      %v654 = vpack.c.b16 %v534, %v530
      %v655 = vpack.c.b16 %v539, %v535
      %v656 = vpack.c.b16 %v540, %v536
      %v657 = vpack.c.b16 %v541, %v537
      %v658 = vpack.c.b16 %v542, %v538
      %v659 = vpack.c.b16 %v547, %v543
      %v660 = vpack.c.b16 %v548, %v544
      %v661 = vpack.c.b16 %v549, %v545
      %v662 = vpack.c.b16 %v550, %v546
      %v663 = vpack.c.b16 %v555, %v551
      %v664 = vpack.c.b16 %v556, %v552
      %v665 = vpack.c.b16 %v557, %v553
      %v666 = vpack.c.b16 %v558, %v554
      %v667 = vpack.c.b16 %v563, %v559
      %v668 = vpack.c.b16 %v564, %v560
      %v669 = vpack.c.b16 %v565, %v561
      %v670 = vpack.c.b16 %v566, %v562
      %v671 = vpack.c.b16 %v571, %v567
      %v672 = vpack.c.b16 %v572, %v568
      %v673 = vpack.c.b16 %v573, %v569
      %v674 = vpack.c.b16 %v574, %v570
      %v675 = vpack.c.b16 %v579, %v575
      %v676 = vpack.c.b16 %v580, %v576
      %v677 = vpack.c.b16 %v581, %v577
      %v678 = vpack.c.b16 %v582, %v578
      %v679 = vpack.c.b16 %v587, %v583
      %v680 = vpack.c.b16 %v588, %v584
      %v681 = vpack.c.b16 %v589, %v585
      %v682 = vpack.c.b16 %v590, %v586
      %v683 = vpack.c.b16 %v595, %v591
      %v684 = vpack.c.b16 %v596, %v592
      %v685 = vpack.c.b16 %v597, %v593
      %v686 = vpack.c.b16 %v598, %v594
      %v687 = vpack.c.b16 %v603, %v599
      %v688 = vpack.c.b16 %v604, %v600
      %v689 = vpack.c.b16 %v605, %v601
      %v690 = vpack.c.b16 %v606, %v602
      %v691 = vpack.c.b16 %v611, %v607
      %v692 = vpack.c.b16 %v612, %v608
      %v693 = vpack.c.b16 %v613, %v609
      %v694 = vpack.c.b16 %v614, %v610
      %v695 = vpack.c.b16 %v619, %v615
      %v696 = vpack.c.b16 %v620, %v616
      %v697 = vpack.c.b16 %v621, %v617
      %v698 = vpack.c.b16 %v622, %v618
      %v699 = vpack.c.b16 %v627, %v623
      %v700 = vpack.c.b16 %v628, %v624
      %v701 = vpack.c.b16 %v629, %v625
      %v702 = vpack.c.b16 %v630, %v626
      %v703 = vpack.c.b16 %v635, %v631
      %v704 = vpack.c.b16 %v636, %v632
      %v705 = vpack.c.b16 %v637, %v633
      %v706 = vpack.c.b16 %v638, %v634
      %v707 = vpack.c.b16 %v643, %v639
      %v708 = vpack.c.b16 %v644, %v640
      %v709 = vpack.c.b16 %v645, %v641
      %v710 = vpack.c.b16 %v646, %v642
      %v839 = vunpack.c.l.b16 %v391
      %v840 = vunpack.c.l.b16 %v392
      %v841 = vunpack.c.l.b16 %v393
      %v842 = vunpack.c.l.b16 %v394
      %v843 = vunpack.c.l.b16 %v395
      %v844 = vunpack.c.l.b16 %v396
      %v845 = vunpack.c.l.b16 %v397
      %v846 = vunpack.c.l.b16 %v398
      %v847 = vunpack.c.l.b16 %v399
      %v848 = vunpack.c.l.b16 %v400
      %v849 = vunpack.c.l.b16 %v401
      %v850 = vunpack.c.l.b16 %v402
      %v851 = vunpack.c.l.b16 %v403
      %v852 = vunpack.c.l.b16 %v404
      %v853 = vunpack.c.l.b16 %v405
      %v854 = vunpack.c.l.b16 %v406
      %v855 = vunpack.c.l.b16 %v407
      %v856 = vunpack.c.l.b16 %v408
      %v857 = vunpack.c.l.b16 %v409
      %v858 = vunpack.c.l.b16 %v410
      %v859 = vunpack.c.l.b16 %v411
      %v860 = vunpack.c.l.b16 %v412
      %v861 = vunpack.c.l.b16 %v413
      %v862 = vunpack.c.l.b16 %v414
      %v863 = vunpack.c.l.b16 %v415
      %v864 = vunpack.c.l.b16 %v416
      %v865 = vunpack.c.l.b16 %v417
      %v866 = vunpack.c.l.b16 %v418
      %v867 = vunpack.c.l.b16 %v419
      %v868 = vunpack.c.l.b16 %v420
      %v869 = vunpack.c.l.b16 %v421
      %v870 = vunpack.c.l.b16 %v422
      %v871 = vunpack.c.l.b16 %v423
      %v872 = vunpack.c.l.b16 %v424
      %v873 = vunpack.c.l.b16 %v425
      %v874 = vunpack.c.l.b16 %v426
      %v875 = vunpack.c.l.b16 %v427
      %v876 = vunpack.c.l.b16 %v428
      %v877 = vunpack.c.l.b16 %v429
      %v878 = vunpack.c.l.b16 %v430
      %v879 = vunpack.c.l.b16 %v431
      %v880 = vunpack.c.l.b16 %v432
      %v881 = vunpack.c.l.b16 %v433
      %v882 = vunpack.c.l.b16 %v434
      %v883 = vunpack.c.l.b16 %v435
      %v884 = vunpack.c.l.b16 %v436
      %v885 = vunpack.c.l.b16 %v437
      %v886 = vunpack.c.l.b16 %v438
      %v887 = vunpack.c.l.b16 %v439
      %v888 = vunpack.c.l.b16 %v440
      %v889 = vunpack.c.l.b16 %v441
      %v890 = vunpack.c.l.b16 %v442
      %v891 = vunpack.c.l.b16 %v443
      %v892 = vunpack.c.l.b16 %v444
      %v893 = vunpack.c.l.b16 %v445
      %v894 = vunpack.c.l.b16 %v446
      %v895 = vunpack.c.l.b16 %v447
      %v896 = vunpack.c.l.b16 %v448
      %v897 = vunpack.c.l.b16 %v449
      %v898 = vunpack.c.l.b16 %v450
      %v899 = vunpack.c.l.b16 %v451
      %v900 = vunpack.c.l.b16 %v452
      %v901 = vunpack.c.l.b16 %v453
      %v902 = vunpack.c.l.b16 %v454
      %v903 = vpack.c.b16 %v840, %v839
      %v904 = vpack.c.b16 %v842, %v841
      %v905 = vpack.c.b16 %v844, %v843
      %v906 = vpack.c.b16 %v846, %v845
      %v907 = vpack.c.b16 %v848, %v847
      %v908 = vpack.c.b16 %v850, %v849
      %v909 = vpack.c.b16 %v852, %v851
      %v910 = vpack.c.b16 %v854, %v853
      %v911 = vpack.c.b16 %v856, %v855
      %v912 = vpack.c.b16 %v858, %v857
      %v913 = vpack.c.b16 %v860, %v859
      %v914 = vpack.c.b16 %v862, %v861
      %v915 = vpack.c.b16 %v864, %v863
      %v916 = vpack.c.b16 %v866, %v865
      %v917 = vpack.c.b16 %v868, %v867
      %v918 = vpack.c.b16 %v870, %v869
      %v919 = vpack.c.b16 %v872, %v871
      %v920 = vpack.c.b16 %v874, %v873
      %v921 = vpack.c.b16 %v876, %v875
      %v922 = vpack.c.b16 %v878, %v877
      %v923 = vpack.c.b16 %v880, %v879
      %v924 = vpack.c.b16 %v882, %v881
      %v925 = vpack.c.b16 %v884, %v883
      %v926 = vpack.c.b16 %v886, %v885
      %v927 = vpack.c.b16 %v888, %v887
      %v928 = vpack.c.b16 %v890, %v889
      %v929 = vpack.c.b16 %v892, %v891
      %v930 = vpack.c.b16 %v894, %v893
      %v931 = vpack.c.b16 %v896, %v895
      %v932 = vpack.c.b16 %v898, %v897
      %v933 = vpack.c.b16 %v900, %v899
      %v934 = vpack.c.b16 %v902, %v901
      %967 = vmatpush.bf16.msra.mxu0 %v910
      %968 = vmatpush.bf16.msra.mxu0 %v909
      %969 = vmatpush.bf16.msra.mxu0 %v908
      %970 = vmatpush.bf16.msra.mxu0 %v907
      %971 = vmatpush.bf16.msra.mxu0 %v906
      %972 = vmatpush.bf16.msra.mxu0 %v905
      %973 = vmatpush.bf16.msra.mxu0 %v904
      %974 = vmatpush.bf16.msra.mxu0 %v903
      %975 = vmatmul.bf16.gmra.mxu0 %v647
      %v976 = vpop.f32.mrf.mxu0
      %v977 = vadd.f32 0.0, %v976
      %v978 = vpop.f32.mrf.mxu0
      %v979 = vadd.f32 0.0, %v978
      %980 = vmatmul.bf16.gmra.mxu0 %v651
      %v981 = vpop.f32.mrf.mxu0
      %v982 = vadd.f32 0.0, %v981
      %v983 = vpop.f32.mrf.mxu0
      %v984 = vadd.f32 0.0, %v983
      %985 = vmatmul.bf16.gmra.mxu0 %v655
      %v986 = vpop.f32.mrf.mxu0
      %v987 = vadd.f32 0.0, %v986
      %v988 = vpop.f32.mrf.mxu0
      %v989 = vadd.f32 0.0, %v988
      %990 = vmatmul.bf16.gmra.mxu0 %v659
      %v991 = vpop.f32.mrf.mxu0
      %v992 = vadd.f32 0.0, %v991
      %v993 = vpop.f32.mrf.mxu0
      %v994 = vadd.f32 0.0, %v993
      %995 = vmatmul.bf16.gmra.mxu0 %v663
      %v996 = vpop.f32.mrf.mxu0
      %v997 = vadd.f32 0.0, %v996
      %v998 = vpop.f32.mrf.mxu0
      %v999 = vadd.f32 0.0, %v998
      %1000 = vmatmul.bf16.gmra.mxu0 %v667
      %v1001 = vpop.f32.mrf.mxu0
      %v1002 = vadd.f32 0.0, %v1001
      %v1003 = vpop.f32.mrf.mxu0
      %v1004 = vadd.f32 0.0, %v1003
      %1005 = vmatmul.bf16.gmra.mxu0 %v671
      %v1006 = vpop.f32.mrf.mxu0
      %v1007 = vadd.f32 0.0, %v1006
      %v1008 = vpop.f32.mrf.mxu0
      %v1009 = vadd.f32 0.0, %v1008
      %1010 = vmatmul.bf16.gmra.mxu0 %v675
      %v1011 = vpop.f32.mrf.mxu0
      %v1012 = vadd.f32 0.0, %v1011
      %v1013 = vpop.f32.mrf.mxu0
      %v1014 = vadd.f32 0.0, %v1013
      %1015 = vmatmul.bf16.gmra.mxu0 %v679
      %v1016 = vpop.f32.mrf.mxu0
      %v1017 = vadd.f32 0.0, %v1016
      %v1018 = vpop.f32.mrf.mxu0
      %v1019 = vadd.f32 0.0, %v1018
      %1020 = vmatmul.bf16.gmra.mxu0 %v683
      %v1021 = vpop.f32.mrf.mxu0
      %v1022 = vadd.f32 0.0, %v1021
      %v1023 = vpop.f32.mrf.mxu0
      %v1024 = vadd.f32 0.0, %v1023
      %1025 = vmatmul.bf16.gmra.mxu0 %v687
      %v1026 = vpop.f32.mrf.mxu0
      %v1027 = vadd.f32 0.0, %v1026
      %v1028 = vpop.f32.mrf.mxu0
      %v1029 = vadd.f32 0.0, %v1028
      %1030 = vmatmul.bf16.gmra.mxu0 %v691
      %v1031 = vpop.f32.mrf.mxu0
      %v1032 = vadd.f32 0.0, %v1031
      %v1033 = vpop.f32.mrf.mxu0
      %v1034 = vadd.f32 0.0, %v1033
      %1035 = vmatmul.bf16.gmra.mxu0 %v695
      %v1036 = vpop.f32.mrf.mxu0
      %v1037 = vadd.f32 0.0, %v1036
      %v1038 = vpop.f32.mrf.mxu0
      %v1039 = vadd.f32 0.0, %v1038
      %1040 = vmatmul.bf16.gmra.mxu0 %v699
      %v1041 = vpop.f32.mrf.mxu0
      %v1042 = vadd.f32 0.0, %v1041
      %v1043 = vpop.f32.mrf.mxu0
      %v1044 = vadd.f32 0.0, %v1043
      %1045 = vmatmul.bf16.gmra.mxu0 %v703
      %v1046 = vpop.f32.mrf.mxu0
      %v1047 = vadd.f32 0.0, %v1046
      %v1048 = vpop.f32.mrf.mxu0
      %v1049 = vadd.f32 0.0, %v1048
      %1050 = vmatmul.bf16.gmra.mxu0 %v707
      %v1051 = vpop.f32.mrf.mxu0
      %v1052 = vadd.f32 0.0, %v1051
      %v1053 = vpop.f32.mrf.mxu0
      %v1054 = vadd.f32 0.0, %v1053
      %1055 = vdwg.mxu0
      %1056 = vmatpush.bf16.msra.mxu0 %v918
      %1057 = vmatpush.bf16.msra.mxu0 %v917
      %1058 = vmatpush.bf16.msra.mxu0 %v916
      %1059 = vmatpush.bf16.msra.mxu0 %v915
      %1060 = vmatpush.bf16.msra.mxu0 %v914
      %1061 = vmatpush.bf16.msra.mxu0 %v913
      %1062 = vmatpush.bf16.msra.mxu0 %v912
      %1063 = vmatpush.bf16.msra.mxu0 %v911
      %1064 = vmatmul.bf16.gmra.mxu0 %v648
      %v1065 = vpop.f32.mrf.mxu0
      %v1066 = vadd.f32 %v977, %v1065
      %v1067 = vpop.f32.mrf.mxu0
      %v1068 = vadd.f32 %v979, %v1067
      %1069 = vmatmul.bf16.gmra.mxu0 %v652
      %v1070 = vpop.f32.mrf.mxu0
      %v1071 = vadd.f32 %v982, %v1070
      %v1072 = vpop.f32.mrf.mxu0
      %v1073 = vadd.f32 %v984, %v1072
      %1074 = vmatmul.bf16.gmra.mxu0 %v656
      %v1075 = vpop.f32.mrf.mxu0
      %v1076 = vadd.f32 %v987, %v1075
      %v1077 = vpop.f32.mrf.mxu0
      %v1078 = vadd.f32 %v989, %v1077
      %1079 = vmatmul.bf16.gmra.mxu0 %v660
      %v1080 = vpop.f32.mrf.mxu0
      %v1081 = vadd.f32 %v992, %v1080
      %v1082 = vpop.f32.mrf.mxu0
      %v1083 = vadd.f32 %v994, %v1082
      %1084 = vmatmul.bf16.gmra.mxu0 %v664
      %v1085 = vpop.f32.mrf.mxu0
      %v1086 = vadd.f32 %v997, %v1085
      %v1087 = vpop.f32.mrf.mxu0
      %v1088 = vadd.f32 %v999, %v1087
      %1089 = vmatmul.bf16.gmra.mxu0 %v668
      %v1090 = vpop.f32.mrf.mxu0
      %v1091 = vadd.f32 %v1002, %v1090
      %v1092 = vpop.f32.mrf.mxu0
      %v1093 = vadd.f32 %v1004, %v1092
      %1094 = vmatmul.bf16.gmra.mxu0 %v672
      %v1095 = vpop.f32.mrf.mxu0
      %v1096 = vadd.f32 %v1007, %v1095
      %v1097 = vpop.f32.mrf.mxu0
      %v1098 = vadd.f32 %v1009, %v1097
      %1099 = vmatmul.bf16.gmra.mxu0 %v676
      %v1100 = vpop.f32.mrf.mxu0
      %v1101 = vadd.f32 %v1012, %v1100
      %v1102 = vpop.f32.mrf.mxu0
      %v1103 = vadd.f32 %v1014, %v1102
      %1104 = vmatmul.bf16.gmra.mxu0 %v680
      %v1105 = vpop.f32.mrf.mxu0
      %v1106 = vadd.f32 %v1017, %v1105
      %v1107 = vpop.f32.mrf.mxu0
      %v1108 = vadd.f32 %v1019, %v1107
      %1109 = vmatmul.bf16.gmra.mxu0 %v684
      %v1110 = vpop.f32.mrf.mxu0
      %v1111 = vadd.f32 %v1022, %v1110
      %v1112 = vpop.f32.mrf.mxu0
      %v1113 = vadd.f32 %v1024, %v1112
      %1114 = vmatmul.bf16.gmra.mxu0 %v688
      %v1115 = vpop.f32.mrf.mxu0
      %v1116 = vadd.f32 %v1027, %v1115
      %v1117 = vpop.f32.mrf.mxu0
      %v1118 = vadd.f32 %v1029, %v1117
      %1119 = vmatmul.bf16.gmra.mxu0 %v692
      %v1120 = vpop.f32.mrf.mxu0
      %v1121 = vadd.f32 %v1032, %v1120
      %v1122 = vpop.f32.mrf.mxu0
      %v1123 = vadd.f32 %v1034, %v1122
      %1124 = vmatmul.bf16.gmra.mxu0 %v696
      %v1125 = vpop.f32.mrf.mxu0
      %v1126 = vadd.f32 %v1037, %v1125
      %v1127 = vpop.f32.mrf.mxu0
      %v1128 = vadd.f32 %v1039, %v1127
      %1129 = vmatmul.bf16.gmra.mxu0 %v700
      %v1130 = vpop.f32.mrf.mxu0
      %v1131 = vadd.f32 %v1042, %v1130
      %v1132 = vpop.f32.mrf.mxu0
      %v1133 = vadd.f32 %v1044, %v1132
      %1134 = vmatmul.bf16.gmra.mxu0 %v704
      %v1135 = vpop.f32.mrf.mxu0
      %v1136 = vadd.f32 %v1047, %v1135
      %v1137 = vpop.f32.mrf.mxu0
      %v1138 = vadd.f32 %v1049, %v1137
      %1139 = vmatmul.bf16.gmra.mxu0 %v708
      %v1140 = vpop.f32.mrf.mxu0
      %v1141 = vadd.f32 %v1052, %v1140
      %v1142 = vpop.f32.mrf.mxu0
      %v1143 = vadd.f32 %v1054, %v1142
      %1144 = vdwg.mxu0
      %1145 = vmatpush.bf16.msra.mxu0 %v926
      %1146 = vmatpush.bf16.msra.mxu0 %v925
      %1147 = vmatpush.bf16.msra.mxu0 %v924
      %1148 = vmatpush.bf16.msra.mxu0 %v923
      %1149 = vmatpush.bf16.msra.mxu0 %v922
      %1150 = vmatpush.bf16.msra.mxu0 %v921
      %1151 = vmatpush.bf16.msra.mxu0 %v920
      %1152 = vmatpush.bf16.msra.mxu0 %v919
      %1153 = vmatmul.bf16.gmra.mxu0 %v649
      %v1154 = vpop.f32.mrf.mxu0
      %v1155 = vadd.f32 %v1066, %v1154
      %v1156 = vpop.f32.mrf.mxu0
      %v1157 = vadd.f32 %v1068, %v1156
      %1158 = vmatmul.bf16.gmra.mxu0 %v653
      %v1159 = vpop.f32.mrf.mxu0
      %v1160 = vadd.f32 %v1071, %v1159
      %v1161 = vpop.f32.mrf.mxu0
      %v1162 = vadd.f32 %v1073, %v1161
      %1163 = vmatmul.bf16.gmra.mxu0 %v657
      %v1164 = vpop.f32.mrf.mxu0
      %v1165 = vadd.f32 %v1076, %v1164
      %v1166 = vpop.f32.mrf.mxu0
      %v1167 = vadd.f32 %v1078, %v1166
      %1168 = vmatmul.bf16.gmra.mxu0 %v661
      %v1169 = vpop.f32.mrf.mxu0
      %v1170 = vadd.f32 %v1081, %v1169
      %v1171 = vpop.f32.mrf.mxu0
      %v1172 = vadd.f32 %v1083, %v1171
      %1173 = vmatmul.bf16.gmra.mxu0 %v665
      %v1174 = vpop.f32.mrf.mxu0
      %v1175 = vadd.f32 %v1086, %v1174
      %v1176 = vpop.f32.mrf.mxu0
      %v1177 = vadd.f32 %v1088, %v1176
      %1178 = vmatmul.bf16.gmra.mxu0 %v669
      %v1179 = vpop.f32.mrf.mxu0
      %v1180 = vadd.f32 %v1091, %v1179
      %v1181 = vpop.f32.mrf.mxu0
      %v1182 = vadd.f32 %v1093, %v1181
      %1183 = vmatmul.bf16.gmra.mxu0 %v673
      %v1184 = vpop.f32.mrf.mxu0
      %v1185 = vadd.f32 %v1096, %v1184
      %v1186 = vpop.f32.mrf.mxu0
      %v1187 = vadd.f32 %v1098, %v1186
      %1188 = vmatmul.bf16.gmra.mxu0 %v677
      %v1189 = vpop.f32.mrf.mxu0
      %v1190 = vadd.f32 %v1101, %v1189
      %v1191 = vpop.f32.mrf.mxu0
      %v1192 = vadd.f32 %v1103, %v1191
      %1193 = vmatmul.bf16.gmra.mxu0 %v681
      %v1194 = vpop.f32.mrf.mxu0
      %v1195 = vadd.f32 %v1106, %v1194
      %v1196 = vpop.f32.mrf.mxu0
      %v1197 = vadd.f32 %v1108, %v1196
      %1198 = vmatmul.bf16.gmra.mxu0 %v685
      %v1199 = vpop.f32.mrf.mxu0
      %v1200 = vadd.f32 %v1111, %v1199
      %v1201 = vpop.f32.mrf.mxu0
      %v1202 = vadd.f32 %v1113, %v1201
      %1203 = vmatmul.bf16.gmra.mxu0 %v689
      %v1204 = vpop.f32.mrf.mxu0
      %v1205 = vadd.f32 %v1116, %v1204
      %v1206 = vpop.f32.mrf.mxu0
      %v1207 = vadd.f32 %v1118, %v1206
      %1208 = vmatmul.bf16.gmra.mxu0 %v693
      %v1209 = vpop.f32.mrf.mxu0
      %v1210 = vadd.f32 %v1121, %v1209
      %v1211 = vpop.f32.mrf.mxu0
      %v1212 = vadd.f32 %v1123, %v1211
      %1213 = vmatmul.bf16.gmra.mxu0 %v697
      %v1214 = vpop.f32.mrf.mxu0
      %v1215 = vadd.f32 %v1126, %v1214
      %v1216 = vpop.f32.mrf.mxu0
      %v1217 = vadd.f32 %v1128, %v1216
      %1218 = vmatmul.bf16.gmra.mxu0 %v701
      %v1219 = vpop.f32.mrf.mxu0
      %v1220 = vadd.f32 %v1131, %v1219
      %v1221 = vpop.f32.mrf.mxu0
      %v1222 = vadd.f32 %v1133, %v1221
      %1223 = vmatmul.bf16.gmra.mxu0 %v705
      %v1224 = vpop.f32.mrf.mxu0
      %v1225 = vadd.f32 %v1136, %v1224
      %v1226 = vpop.f32.mrf.mxu0
      %v1227 = vadd.f32 %v1138, %v1226
      %1228 = vmatmul.bf16.gmra.mxu0 %v709
      %v1229 = vpop.f32.mrf.mxu0
      %v1230 = vadd.f32 %v1141, %v1229
      %v1231 = vpop.f32.mrf.mxu0
      %v1232 = vadd.f32 %v1143, %v1231
      %1233 = vdwg.mxu0
      %1234 = vmatpush.bf16.msra.mxu0 %v934
      %1235 = vmatpush.bf16.msra.mxu0 %v933
      %1236 = vmatpush.bf16.msra.mxu0 %v932
      %1237 = vmatpush.bf16.msra.mxu0 %v931
      %1238 = vmatpush.bf16.msra.mxu0 %v930
      %1239 = vmatpush.bf16.msra.mxu0 %v929
      %1240 = vmatpush.bf16.msra.mxu0 %v928
      %1241 = vmatpush.bf16.msra.mxu0 %v927
      %1242 = vmatmul.bf16.gmra.mxu0 %v650
      %v1243 = vpop.f32.mrf.mxu0
      %v1244 = vadd.f32 %v1155, %v1243
      %v1245 = vpop.f32.mrf.mxu0
      %v1246 = vadd.f32 %v1157, %v1245
      %1247 = vmatmul.bf16.gmra.mxu0 %v654
      %v1248 = vpop.f32.mrf.mxu0
      %v1249 = vadd.f32 %v1160, %v1248
      %v1250 = vpop.f32.mrf.mxu0
      %v1251 = vadd.f32 %v1162, %v1250
      %1252 = vmatmul.bf16.gmra.mxu0 %v658
      %v1253 = vpop.f32.mrf.mxu0
      %v1254 = vadd.f32 %v1165, %v1253
      %v1255 = vpop.f32.mrf.mxu0
      %v1256 = vadd.f32 %v1167, %v1255
      %1257 = vmatmul.bf16.gmra.mxu0 %v662
      %v1258 = vpop.f32.mrf.mxu0
      %v1259 = vadd.f32 %v1170, %v1258
      %v1260 = vpop.f32.mrf.mxu0
      %v1261 = vadd.f32 %v1172, %v1260
      %1262 = vmatmul.bf16.gmra.mxu0 %v666
      %v1263 = vpop.f32.mrf.mxu0
      %v1264 = vadd.f32 %v1175, %v1263
      %v1265 = vpop.f32.mrf.mxu0
      %v1266 = vadd.f32 %v1177, %v1265
      %1267 = vmatmul.bf16.gmra.mxu0 %v670
      %v1268 = vpop.f32.mrf.mxu0
      %v1269 = vadd.f32 %v1180, %v1268
      %v1270 = vpop.f32.mrf.mxu0
      %v1271 = vadd.f32 %v1182, %v1270
      %1272 = vmatmul.bf16.gmra.mxu0 %v674
      %v1273 = vpop.f32.mrf.mxu0
      %v1274 = vadd.f32 %v1185, %v1273
      %v1275 = vpop.f32.mrf.mxu0
      %v1276 = vadd.f32 %v1187, %v1275
      %1277 = vmatmul.bf16.gmra.mxu0 %v678
      %v1278 = vpop.f32.mrf.mxu0
      %v1279 = vadd.f32 %v1190, %v1278
      %v1280 = vpop.f32.mrf.mxu0
      %v1281 = vadd.f32 %v1192, %v1280
      %1282 = vmatmul.bf16.gmra.mxu0 %v682
      %v1283 = vpop.f32.mrf.mxu0
      %v1284 = vadd.f32 %v1195, %v1283
      %v1285 = vpop.f32.mrf.mxu0
      %v1286 = vadd.f32 %v1197, %v1285
      %1287 = vmatmul.bf16.gmra.mxu0 %v686
      %v1288 = vpop.f32.mrf.mxu0
      %v1289 = vadd.f32 %v1200, %v1288
      %v1290 = vpop.f32.mrf.mxu0
      %v1291 = vadd.f32 %v1202, %v1290
      %1292 = vmatmul.bf16.gmra.mxu0 %v690
      %v1293 = vpop.f32.mrf.mxu0
      %v1294 = vadd.f32 %v1205, %v1293
      %v1295 = vpop.f32.mrf.mxu0
      %v1296 = vadd.f32 %v1207, %v1295
      %1297 = vmatmul.bf16.gmra.mxu0 %v694
      %v1298 = vpop.f32.mrf.mxu0
      %v1299 = vadd.f32 %v1210, %v1298
      %v1300 = vpop.f32.mrf.mxu0
      %v1301 = vadd.f32 %v1212, %v1300
      %1302 = vmatmul.bf16.gmra.mxu0 %v698
      %v1303 = vpop.f32.mrf.mxu0
      %v1304 = vadd.f32 %v1215, %v1303
      %v1305 = vpop.f32.mrf.mxu0
      %v1306 = vadd.f32 %v1217, %v1305
      %1307 = vmatmul.bf16.gmra.mxu0 %v702
      %v1308 = vpop.f32.mrf.mxu0
      %v1309 = vadd.f32 %v1220, %v1308
      %v1310 = vpop.f32.mrf.mxu0
      %v1311 = vadd.f32 %v1222, %v1310
      %1312 = vmatmul.bf16.gmra.mxu0 %v706
      %v1313 = vpop.f32.mrf.mxu0
      %v1314 = vadd.f32 %v1225, %v1313
      %v1315 = vpop.f32.mrf.mxu0
      %v1316 = vadd.f32 %v1227, %v1315
      %1317 = vmatmul.bf16.gmra.mxu0 %v710
      %v1318 = vpop.f32.mrf.mxu0
      %v1319 = vadd.f32 %v1230, %v1318
      %v1320 = vpop.f32.mrf.mxu0
      %v1321 = vadd.f32 %v1232, %v1320
      %1322 = vdwg.mxu0
      %v1323 = vadd.f32 %v291, %v1244
      %v1324 = vadd.f32 %v292, %v1246
      %v1325 = vadd.f32 %v293, %v1249
      %v1326 = vadd.f32 %v294, %v1251
      %v1327 = vadd.f32 %v295, %v1254
      %v1328 = vadd.f32 %v296, %v1256
      %v1329 = vadd.f32 %v297, %v1259
      %v1330 = vadd.f32 %v298, %v1261
      %v1331 = vadd.f32 %v299, %v1264
      %v1332 = vadd.f32 %v300, %v1266
      %v1333 = vadd.f32 %v301, %v1269
      %v1334 = vadd.f32 %v302, %v1271
      %v1335 = vadd.f32 %v303, %v1274
      %v1336 = vadd.f32 %v304, %v1276
      %v1337 = vadd.f32 %v305, %v1279
      %v1338 = vadd.f32 %v306, %v1281
      %v1339 = vadd.f32 %v307, %v1284
      %v1340 = vadd.f32 %v308, %v1286
      %v1341 = vadd.f32 %v309, %v1289
      %v1342 = vadd.f32 %v310, %v1291
      %v1343 = vadd.f32 %v311, %v1294
      %v1344 = vadd.f32 %v312, %v1296
      %v1345 = vadd.f32 %v313, %v1299
      %v1346 = vadd.f32 %v314, %v1301
      %v1347 = vadd.f32 %v315, %v1304
      %v1348 = vadd.f32 %v316, %v1306
      %v1349 = vadd.f32 %v317, %v1309
      %v1350 = vadd.f32 %v318, %v1311
      %v1351 = vadd.f32 %v319, %v1314
      %v1352 = vadd.f32 %v320, %v1316
      %v1353 = vadd.f32 %v321, %v1319
      %v1354 = vadd.f32 %v322, %v1321
      %1355 = vst [vmem:[#allocation2] sm:$0xff] %v1323
      %1356 = vst [vmem:[#allocation2 + $0x8] sm:$0xff] %v1324
      %1357 = vst [vmem:[#allocation2 + $0x10] sm:$0xff] %v1325
      %1358 = vst [vmem:[#allocation2 + $0x18] sm:$0xff] %v1326
      %1359 = vst [vmem:[#allocation2 + $0x20] sm:$0xff] %v1327
      %1360 = vst [vmem:[#allocation2 + $0x28] sm:$0xff] %v1328
      %1361 = vst [vmem:[#allocation2 + $0x30] sm:$0xff] %v1329
      %1362 = vst [vmem:[#allocation2 + $0x38] sm:$0xff] %v1330
      %1363 = vst [vmem:[#allocation2 + $0x40] sm:$0xff] %v1331
      %1364 = vst [vmem:[#allocation2 + $0x48] sm:$0xff] %v1332
      %1365 = vst [vmem:[#allocation2 + $0x50] sm:$0xff] %v1333
      %1366 = vst [vmem:[#allocation2 + $0x58] sm:$0xff] %v1334
      %1367 = vst [vmem:[#allocation2 + $0x60] sm:$0xff] %v1335
      %1368 = vst [vmem:[#allocation2 + $0x68] sm:$0xff] %v1336
      %1369 = vst [vmem:[#allocation2 + $0x70] sm:$0xff] %v1337
      %1370 = vst [vmem:[#allocation2 + $0x78] sm:$0xff] %v1338
      %1371 = vst [vmem:[#allocation2 + $0x80] sm:$0xff] %v1339
      %1372 = vst [vmem:[#allocation2 + $0x88] sm:$0xff] %v1340
      %1373 = vst [vmem:[#allocation2 + $0x90] sm:$0xff] %v1341
      %1374 = vst [vmem:[#allocation2 + $0x98] sm:$0xff] %v1342
      %1375 = vst [vmem:[#allocation2 + $0xa0] sm:$0xff] %v1343
      %1376 = vst [vmem:[#allocation2 + $0xa8] sm:$0xff] %v1344
      %1377 = vst [vmem:[#allocation2 + $0xb0] sm:$0xff] %v1345
      %1378 = vst [vmem:[#allocation2 + $0xb8] sm:$0xff] %v1346
      %1379 = vst [vmem:[#allocation2 + $0xc0] sm:$0xff] %v1347
      %1380 = vst [vmem:[#allocation2 + $0xc8] sm:$0xff] %v1348
      %1381 = vst [vmem:[#allocation2 + $0xd0] sm:$0xff] %v1349
      %1382 = vst [vmem:[#allocation2 + $0xd8] sm:$0xff] %v1350
      %1383 = vst [vmem:[#allocation2 + $0xe0] sm:$0xff] %v1351
      %1384 = vst [vmem:[#allocation2 + $0xe8] sm:$0xff] %v1352
      %1385 = vst [vmem:[#allocation2 + $0xf0] sm:$0xff] %v1353
      %1386 = vst [vmem:[#allocation2 + $0xf8] sm:$0xff] %v1354
      // Predicated region
      $region41: #{gnn_apply.3} parent=35 // pred_check
        %p1387 = pneg %p254
      $region42: #{gnn_apply.3} parent=35 // pred_check_branch
        %1389 = sbr.rel (%p1387) target = $region44
      $region43: #{gnn_apply.3} parent=35 // pred_region
        %v1390 = vld [vmem:[%s246] sm:$0xff]
        %v1391 = vld [vmem:[%s246 + $0x8] sm:$0xff]
        %v1392 = vld [vmem:[%s246 + $0x10] sm:$0xff]
        %v1393 = vld [vmem:[%s246 + $0x18] sm:$0xff]
        %v1394 = vld [vmem:[%s246 + $0x20] sm:$0xff]
        %v1395 = vld [vmem:[%s246 + $0x28] sm:$0xff]
        %v1396 = vld [vmem:[%s246 + $0x30] sm:$0xff]
        %v1397 = vld [vmem:[%s246 + $0x38] sm:$0xff]
        %v1398 = vld [vmem:[%s246 + $0x40] sm:$0xff]
        %v1399 = vld [vmem:[%s246 + $0x48] sm:$0xff]
        %v1400 = vld [vmem:[%s246 + $0x50] sm:$0xff]
        %v1401 = vld [vmem:[%s246 + $0x58] sm:$0xff]
        %v1402 = vld [vmem:[%s246 + $0x60] sm:$0xff]
        %v1403 = vld [vmem:[%s246 + $0x68] sm:$0xff]
        %v1404 = vld [vmem:[%s246 + $0x70] sm:$0xff]
        %v1405 = vld [vmem:[%s246 + $0x78] sm:$0xff]
        %v1406 = vld [vmem:[%s246 + $0x80] sm:$0xff]
        %v1407 = vld [vmem:[%s246 + $0x88] sm:$0xff]
        %v1408 = vld [vmem:[%s246 + $0x90] sm:$0xff]
        %v1409 = vld [vmem:[%s246 + $0x98] sm:$0xff]
        %v1410 = vld [vmem:[%s246 + $0xa0] sm:$0xff]
        %v1411 = vld [vmem:[%s246 + $0xa8] sm:$0xff]
        %v1412 = vld [vmem:[%s246 + $0xb0] sm:$0xff]
        %v1413 = vld [vmem:[%s246 + $0xb8] sm:$0xff]
        %v1414 = vld [vmem:[%s246 + $0xc0] sm:$0xff]
        %v1415 = vld [vmem:[%s246 + $0xc8] sm:$0xff]
        %v1416 = vld [vmem:[%s246 + $0xd0] sm:$0xff]
        %v1417 = vld [vmem:[%s246 + $0xd8] sm:$0xff]
        %v1418 = vld [vmem:[%s246 + $0xe0] sm:$0xff]
        %v1419 = vld [vmem:[%s246 + $0xe8] sm:$0xff]
        %v1420 = vld [vmem:[%s246 + $0xf0] sm:$0xff]
        %v1421 = vld [vmem:[%s246 + $0xf8] sm:$0xff]
        %v1422 = vld [vmem:[#allocation2] sm:$0xff]
        %v1423 = vld [vmem:[#allocation2 + $0x8] sm:$0xff]
        %v1424 = vld [vmem:[#allocation2 + $0x10] sm:$0xff]
        %v1425 = vld [vmem:[#allocation2 + $0x18] sm:$0xff]
        %v1426 = vld [vmem:[#allocation2 + $0x20] sm:$0xff]
        %v1427 = vld [vmem:[#allocation2 + $0x28] sm:$0xff]
        %v1428 = vld [vmem:[#allocation2 + $0x30] sm:$0xff]
        %v1429 = vld [vmem:[#allocation2 + $0x38] sm:$0xff]
        %v1430 = vld [vmem:[#allocation2 + $0x40] sm:$0xff]
        %v1431 = vld [vmem:[#allocation2 + $0x48] sm:$0xff]
        %v1432 = vld [vmem:[#allocation2 + $0x50] sm:$0xff]
        %v1433 = vld [vmem:[#allocation2 + $0x58] sm:$0xff]
        %v1434 = vld [vmem:[#allocation2 + $0x60] sm:$0xff]
        %v1435 = vld [vmem:[#allocation2 + $0x68] sm:$0xff]
        %v1436 = vld [vmem:[#allocation2 + $0x70] sm:$0xff]
        %v1437 = vld [vmem:[#allocation2 + $0x78] sm:$0xff]
        %v1438 = vld [vmem:[#allocation2 + $0x80] sm:$0xff]
        %v1439 = vld [vmem:[#allocation2 + $0x88] sm:$0xff]
        %v1440 = vld [vmem:[#allocation2 + $0x90] sm:$0xff]
        %v1441 = vld [vmem:[#allocation2 + $0x98] sm:$0xff]
        %v1442 = vld [vmem:[#allocation2 + $0xa0] sm:$0xff]
        %v1443 = vld [vmem:[#allocation2 + $0xa8] sm:$0xff]
        %v1444 = vld [vmem:[#allocation2 + $0xb0] sm:$0xff]
        %v1445 = vld [vmem:[#allocation2 + $0xb8] sm:$0xff]
        %v1446 = vld [vmem:[#allocation2 + $0xc0] sm:$0xff]
        %v1447 = vld [vmem:[#allocation2 + $0xc8] sm:$0xff]
        %v1448 = vld [vmem:[#allocation2 + $0xd0] sm:$0xff]
        %v1449 = vld [vmem:[#allocation2 + $0xd8] sm:$0xff]
        %v1450 = vld [vmem:[#allocation2 + $0xe0] sm:$0xff]
        %v1451 = vld [vmem:[#allocation2 + $0xe8] sm:$0xff]
        %v1452 = vld [vmem:[#allocation2 + $0xf0] sm:$0xff]
        %v1453 = vld [vmem:[#allocation2 + $0xf8] sm:$0xff]
        %1455 = vset.pattern.permute.xlu0 0
        %1456 = vperm.xlu0 %1455, %v1390
        %v1457 = vpop.permute.xlu0 %1456
        %1460 = vset.pattern.permute.xlu0 0
        %1461 = vperm.xlu0 %1460, %v1391
        %v1462 = vpop.permute.xlu0 %1461
        %1465 = vset.pattern.permute.xlu0 0
        %1466 = vperm.xlu0 %1465, %v1392
        %v1467 = vpop.permute.xlu0 %1466
        %1470 = vset.pattern.permute.xlu0 0
        %1471 = vperm.xlu0 %1470, %v1393
        %v1472 = vpop.permute.xlu0 %1471
        %1475 = vset.pattern.permute.xlu0 0
        %1476 = vperm.xlu0 %1475, %v1394
        %v1477 = vpop.permute.xlu0 %1476
        %1480 = vset.pattern.permute.xlu0 0
        %1481 = vperm.xlu0 %1480, %v1395
        %v1482 = vpop.permute.xlu0 %1481
        %1485 = vset.pattern.permute.xlu0 0
        %1486 = vperm.xlu0 %1485, %v1396
        %v1487 = vpop.permute.xlu0 %1486
        %1490 = vset.pattern.permute.xlu0 0
        %1491 = vperm.xlu0 %1490, %v1397
        %v1492 = vpop.permute.xlu0 %1491
        %1495 = vset.pattern.permute.xlu0 0
        %1496 = vperm.xlu0 %1495, %v1398
        %v1497 = vpop.permute.xlu0 %1496
        %1500 = vset.pattern.permute.xlu0 0
        %1501 = vperm.xlu0 %1500, %v1399
        %v1502 = vpop.permute.xlu0 %1501
        %1505 = vset.pattern.permute.xlu0 0
        %1506 = vperm.xlu0 %1505, %v1400
        %v1507 = vpop.permute.xlu0 %1506
        %1510 = vset.pattern.permute.xlu0 0
        %1511 = vperm.xlu0 %1510, %v1401
        %v1512 = vpop.permute.xlu0 %1511
        %1515 = vset.pattern.permute.xlu0 0
        %1516 = vperm.xlu0 %1515, %v1402
        %v1517 = vpop.permute.xlu0 %1516
        %1520 = vset.pattern.permute.xlu0 0
        %1521 = vperm.xlu0 %1520, %v1403
        %v1522 = vpop.permute.xlu0 %1521
        %1525 = vset.pattern.permute.xlu0 0
        %1526 = vperm.xlu0 %1525, %v1404
        %v1527 = vpop.permute.xlu0 %1526
        %1530 = vset.pattern.permute.xlu0 0
        %1531 = vperm.xlu0 %1530, %v1405
        %v1532 = vpop.permute.xlu0 %1531
        %1535 = vset.pattern.permute.xlu0 0
        %1536 = vperm.xlu0 %1535, %v1406
        %v1537 = vpop.permute.xlu0 %1536
        %1540 = vset.pattern.permute.xlu0 0
        %1541 = vperm.xlu0 %1540, %v1407
        %v1542 = vpop.permute.xlu0 %1541
        %1545 = vset.pattern.permute.xlu0 0
        %1546 = vperm.xlu0 %1545, %v1408
        %v1547 = vpop.permute.xlu0 %1546
        %1550 = vset.pattern.permute.xlu0 0
        %1551 = vperm.xlu0 %1550, %v1409
        %v1552 = vpop.permute.xlu0 %1551
        %1555 = vset.pattern.permute.xlu0 0
        %1556 = vperm.xlu0 %1555, %v1410
        %v1557 = vpop.permute.xlu0 %1556
        %1560 = vset.pattern.permute.xlu0 0
        %1561 = vperm.xlu0 %1560, %v1411
        %v1562 = vpop.permute.xlu0 %1561
        %1565 = vset.pattern.permute.xlu0 0
        %1566 = vperm.xlu0 %1565, %v1412
        %v1567 = vpop.permute.xlu0 %1566
        %1570 = vset.pattern.permute.xlu0 0
        %1571 = vperm.xlu0 %1570, %v1413
        %v1572 = vpop.permute.xlu0 %1571
        %1575 = vset.pattern.permute.xlu0 0
        %1576 = vperm.xlu0 %1575, %v1414
        %v1577 = vpop.permute.xlu0 %1576
        %1580 = vset.pattern.permute.xlu0 0
        %1581 = vperm.xlu0 %1580, %v1415
        %v1582 = vpop.permute.xlu0 %1581
        %1585 = vset.pattern.permute.xlu0 0
        %1586 = vperm.xlu0 %1585, %v1416
        %v1587 = vpop.permute.xlu0 %1586
        %1590 = vset.pattern.permute.xlu0 0
        %1591 = vperm.xlu0 %1590, %v1417
        %v1592 = vpop.permute.xlu0 %1591
        %1595 = vset.pattern.permute.xlu0 0
        %1596 = vperm.xlu0 %1595, %v1418
        %v1597 = vpop.permute.xlu0 %1596
        %1600 = vset.pattern.permute.xlu0 0
        %1601 = vperm.xlu0 %1600, %v1419
        %v1602 = vpop.permute.xlu0 %1601
        %1605 = vset.pattern.permute.xlu0 0
        %1606 = vperm.xlu0 %1605, %v1420
        %v1607 = vpop.permute.xlu0 %1606
        %1610 = vset.pattern.permute.xlu0 0
        %1611 = vperm.xlu0 %1610, %v1421
        %v1612 = vpop.permute.xlu0 %1611
        %v1614 = vmul.f32 %v1457, %v1422
        %v1615 = vmul.f32 %v1462, %v1423
        %v1616 = vmul.f32 %v1467, %v1424
        %v1617 = vmul.f32 %v1472, %v1425
        %v1618 = vmul.f32 %v1477, %v1426
        %v1619 = vmul.f32 %v1482, %v1427
        %v1620 = vmul.f32 %v1487, %v1428
        %v1621 = vmul.f32 %v1492, %v1429
        %v1622 = vmul.f32 %v1497, %v1430
        %v1623 = vmul.f32 %v1502, %v1431
        %v1624 = vmul.f32 %v1507, %v1432
        %v1625 = vmul.f32 %v1512, %v1433
        %v1626 = vmul.f32 %v1517, %v1434
        %v1627 = vmul.f32 %v1522, %v1435
        %v1628 = vmul.f32 %v1527, %v1436
        %v1629 = vmul.f32 %v1532, %v1437
        %v1630 = vmul.f32 %v1537, %v1438
        %v1631 = vmul.f32 %v1542, %v1439
        %v1632 = vmul.f32 %v1547, %v1440
        %v1633 = vmul.f32 %v1552, %v1441
        %v1634 = vmul.f32 %v1557, %v1442
        %v1635 = vmul.f32 %v1562, %v1443
        %v1636 = vmul.f32 %v1567, %v1444
        %v1637 = vmul.f32 %v1572, %v1445
        %v1638 = vmul.f32 %v1577, %v1446
        %v1639 = vmul.f32 %v1582, %v1447
        %v1640 = vmul.f32 %v1587, %v1448
        %v1641 = vmul.f32 %v1592, %v1449
        %v1642 = vmul.f32 %v1597, %v1450
        %v1643 = vmul.f32 %v1602, %v1451
        %v1644 = vmul.f32 %v1607, %v1452
        %v1645 = vmul.f32 %v1612, %v1453
        %v1646 = vld [vmem:[%s3] sm:$0x1]
        %v1648 = vperm.slane %v1646, 0
        %v1650 = vadd.f32 %v1614, %v1648
        %v1651 = vadd.f32 %v1615, %v1648
        %v1652 = vadd.f32 %v1616, %v1648
        %v1653 = vadd.f32 %v1617, %v1648
        %v1654 = vadd.f32 %v1618, %v1648
        %v1655 = vadd.f32 %v1619, %v1648
        %v1656 = vadd.f32 %v1620, %v1648
        %v1657 = vadd.f32 %v1621, %v1648
        %v1658 = vadd.f32 %v1622, %v1648
        %v1659 = vadd.f32 %v1623, %v1648
        %v1660 = vadd.f32 %v1624, %v1648
        %v1661 = vadd.f32 %v1625, %v1648
        %v1662 = vadd.f32 %v1626, %v1648
        %v1663 = vadd.f32 %v1627, %v1648
        %v1664 = vadd.f32 %v1628, %v1648
        %v1665 = vadd.f32 %v1629, %v1648
        %v1666 = vadd.f32 %v1630, %v1648
        %v1667 = vadd.f32 %v1631, %v1648
        %v1668 = vadd.f32 %v1632, %v1648
        %v1669 = vadd.f32 %v1633, %v1648
        %v1670 = vadd.f32 %v1634, %v1648
        %v1671 = vadd.f32 %v1635, %v1648
        %v1672 = vadd.f32 %v1636, %v1648
        %v1673 = vadd.f32 %v1637, %v1648
        %v1674 = vadd.f32 %v1638, %v1648
        %v1675 = vadd.f32 %v1639, %v1648
        %v1676 = vadd.f32 %v1640, %v1648
        %v1677 = vadd.f32 %v1641, %v1648
        %v1678 = vadd.f32 %v1642, %v1648
        %v1679 = vadd.f32 %v1643, %v1648
        %v1680 = vadd.f32 %v1644, %v1648
        %v1681 = vadd.f32 %v1645, %v1648
        %v1682 = vmax.f32 %v1650, 0.0
        %v1683 = vmax.f32 %v1651, 0.0
        %v1684 = vmax.f32 %v1652, 0.0
        %v1685 = vmax.f32 %v1653, 0.0
        %v1686 = vmax.f32 %v1654, 0.0
        %v1687 = vmax.f32 %v1655, 0.0
        %v1688 = vmax.f32 %v1656, 0.0
        %v1689 = vmax.f32 %v1657, 0.0
        %v1690 = vmax.f32 %v1658, 0.0
        %v1691 = vmax.f32 %v1659, 0.0
        %v1692 = vmax.f32 %v1660, 0.0
        %v1693 = vmax.f32 %v1661, 0.0
        %v1694 = vmax.f32 %v1662, 0.0
        %v1695 = vmax.f32 %v1663, 0.0
        %v1696 = vmax.f32 %v1664, 0.0
        %v1697 = vmax.f32 %v1665, 0.0
        %v1698 = vmax.f32 %v1666, 0.0
        %v1699 = vmax.f32 %v1667, 0.0
        %v1700 = vmax.f32 %v1668, 0.0
        %v1701 = vmax.f32 %v1669, 0.0
        %v1702 = vmax.f32 %v1670, 0.0
        %v1703 = vmax.f32 %v1671, 0.0
        %v1704 = vmax.f32 %v1672, 0.0
        %v1705 = vmax.f32 %v1673, 0.0
        %v1706 = vmax.f32 %v1674, 0.0
        %v1707 = vmax.f32 %v1675, 0.0
        %v1708 = vmax.f32 %v1676, 0.0
        %v1709 = vmax.f32 %v1677, 0.0
        %v1710 = vmax.f32 %v1678, 0.0
        %v1711 = vmax.f32 %v1679, 0.0
        %v1712 = vmax.f32 %v1680, 0.0
        %v1713 = vmax.f32 %v1681, 0.0
        %v1714 = vpack.c.bf16 %v1682, %v1682
        %v1715 = vpack.c.bf16 %v1683, %v1683
        %v1716 = vpack.c.bf16 %v1684, %v1684
        %v1717 = vpack.c.bf16 %v1685, %v1685
        %v1718 = vpack.c.bf16 %v1686, %v1686
        %v1719 = vpack.c.bf16 %v1687, %v1687
        %v1720 = vpack.c.bf16 %v1688, %v1688
        %v1721 = vpack.c.bf16 %v1689, %v1689
        %v1722 = vpack.c.bf16 %v1690, %v1690
        %v1723 = vpack.c.bf16 %v1691, %v1691
        %v1724 = vpack.c.bf16 %v1692, %v1692
        %v1725 = vpack.c.bf16 %v1693, %v1693
        %v1726 = vpack.c.bf16 %v1694, %v1694
        %v1727 = vpack.c.bf16 %v1695, %v1695
        %v1728 = vpack.c.bf16 %v1696, %v1696
        %v1729 = vpack.c.bf16 %v1697, %v1697
        %v1730 = vpack.c.bf16 %v1698, %v1698
        %v1731 = vpack.c.bf16 %v1699, %v1699
        %v1732 = vpack.c.bf16 %v1700, %v1700
        %v1733 = vpack.c.bf16 %v1701, %v1701
        %v1734 = vpack.c.bf16 %v1702, %v1702
        %v1735 = vpack.c.bf16 %v1703, %v1703
        %v1736 = vpack.c.bf16 %v1704, %v1704
        %v1737 = vpack.c.bf16 %v1705, %v1705
        %v1738 = vpack.c.bf16 %v1706, %v1706
        %v1739 = vpack.c.bf16 %v1707, %v1707
        %v1740 = vpack.c.bf16 %v1708, %v1708
        %v1741 = vpack.c.bf16 %v1709, %v1709
        %v1742 = vpack.c.bf16 %v1710, %v1710
        %v1743 = vpack.c.bf16 %v1711, %v1711
        %v1744 = vpack.c.bf16 %v1712, %v1712
        %v1745 = vpack.c.bf16 %v1713, %v1713
        %1746 = vst [vmem:[%s252] sm:$0xf] %v1714
        %1747 = vst [vmem:[%s252 + $0x4] sm:$0xf] %v1715
        %1748 = vst [vmem:[%s252 + $0x8] sm:$0xf] %v1716
        %1749 = vst [vmem:[%s252 + $0xc] sm:$0xf] %v1717
        %1750 = vst [vmem:[%s252 + $0x10] sm:$0xf] %v1718
        %1751 = vst [vmem:[%s252 + $0x14] sm:$0xf] %v1719
        %1752 = vst [vmem:[%s252 + $0x18] sm:$0xf] %v1720
        %1753 = vst [vmem:[%s252 + $0x1c] sm:$0xf] %v1721
        %1754 = vst [vmem:[%s252 + $0x20] sm:$0xf] %v1722
        %1755 = vst [vmem:[%s252 + $0x24] sm:$0xf] %v1723
        %1756 = vst [vmem:[%s252 + $0x28] sm:$0xf] %v1724
        %1757 = vst [vmem:[%s252 + $0x2c] sm:$0xf] %v1725
        %1758 = vst [vmem:[%s252 + $0x30] sm:$0xf] %v1726
        %1759 = vst [vmem:[%s252 + $0x34] sm:$0xf] %v1727
        %1760 = vst [vmem:[%s252 + $0x38] sm:$0xf] %v1728
        %1761 = vst [vmem:[%s252 + $0x3c] sm:$0xf] %v1729
        %1762 = vst [vmem:[%s252 + $0x40] sm:$0xf] %v1730
        %1763 = vst [vmem:[%s252 + $0x44] sm:$0xf] %v1731
        %1764 = vst [vmem:[%s252 + $0x48] sm:$0xf] %v1732
        %1765 = vst [vmem:[%s252 + $0x4c] sm:$0xf] %v1733
        %1766 = vst [vmem:[%s252 + $0x50] sm:$0xf] %v1734
        %1767 = vst [vmem:[%s252 + $0x54] sm:$0xf] %v1735
        %1768 = vst [vmem:[%s252 + $0x58] sm:$0xf] %v1736
        %1769 = vst [vmem:[%s252 + $0x5c] sm:$0xf] %v1737
        %1770 = vst [vmem:[%s252 + $0x60] sm:$0xf] %v1738
        %1771 = vst [vmem:[%s252 + $0x64] sm:$0xf] %v1739
        %1772 = vst [vmem:[%s252 + $0x68] sm:$0xf] %v1740
        %1773 = vst [vmem:[%s252 + $0x6c] sm:$0xf] %v1741
        %1774 = vst [vmem:[%s252 + $0x70] sm:$0xf] %v1742
        %1775 = vst [vmem:[%s252 + $0x74] sm:$0xf] %v1743
        %1776 = vst [vmem:[%s252 + $0x78] sm:$0xf] %v1744
        %1777 = vst [vmem:[%s252 + $0x7c] sm:$0xf] %v1745
      $region44: #{gnn_apply.3} parent=35 // pred_fallthru
        _
      %s1778 = smul.u32 32, %s19
      %p1779 = scmp.lt.s32.totalorder %s1778, 63
      %s1780 = scalar_select %p1779, %s1778, 63
      %s1781 = smul.addr %s1780, 4
      %s1782 = scalar_lea.vmem %s4, %s1781
      // Predicated region
      $region45: #{gnn_apply.3} parent=35 // pred_check
        %p1783 = pneg %p141
      $region46: #{gnn_apply.3} parent=35 // pred_check_branch
        %1785 = sbr.rel (%p1783) target = $region48
      $region47: #{gnn_apply.3} parent=35 // pred_region
        %s1786 = smul.u32 32, %s19
      $region48: #{gnn_apply.3} parent=35 // pred_fallthru
        _
    $region36: #{gnn_apply.3} parent=5 // pred_fallthru
      _
    %p1787 = scmp.le.s32.totalorder 2, %s10
    // Predicated region
    $region49: #{gnn_apply.3} parent=5 // pred_check
      %p1788 = pneg %p1787
    $region50: #{gnn_apply.3} parent=5 // pred_check_branch
      %1790 = sbr.rel (%p1788) target = $region52
    $region51: #{gnn_apply.3} parent=5 // pred_region
      %s1791 = ssub.s32 %s10, 2
      // Predicated region
      $region53: #{gnn_apply.3} parent=51 // pred_check
        %p1792 = pneg %p147
      $region54: #{gnn_apply.3} parent=51 // pred_check_branch
        %1794 = sbr.rel (%p1792) target = $region56
      $region55: #{gnn_apply.3} parent=51 // pred_region
        %s1795 = smul.u32 32, %s21
        %p1796 = scmp.lt.s32.totalorder %s1795, 63
        %s1797 = scalar_select %p1796, %s1795, 63
        %s1798 = smul.addr %s1797, 4
        %s1799 = scalar_lea.vmem %s4, %s1798
      $region56: #{gnn_apply.3} parent=51 // pred_fallthru
        _
    $region52: #{gnn_apply.3} parent=5 // pred_fallthru
      _
  $region6: #{gnn_apply.3} parent=0 // loop_footer
    %s14 = sadd.s32 1, %s10
  $region7: #{gnn_apply.3} parent=0 // loop_footer_branch
    %9 = sbr.rel target = $region3
  $region8: #{gnn_apply.3} parent=0 // loop_exit
    _

// kernel: gnn_apply.2
$region0: #{gnn_apply.2}
  #allocation0 [shape = 'u32[]', space=smem, size = 0x4, offset = 0x4, fixed_abs, tag = 'smem constant byte address 0x4 - core index']
  #allocation1 [shape = 'u32[72,128]{1,0:T(1,128)}', space=vmem, size = 0x9000, scoped, tag = 'internal scratch']
  #allocation2 [shape = 'f32[256,128]{1,0:T(8,128)}', space=vmem, size = 0x20000, scoped, tag = 'scratch operand']
  %s0 = inlined_call_operand.vmem [shape: bf16[512,512], index: 0, kind: input, shape index: {}]
  %s1 = inlined_call_operand.vmem [shape: bf16[512,128], index: 1, kind: input, shape index: {}]
  %s2 = inlined_call_operand.vmem [shape: f32[512,1], index: 2, kind: input, shape index: {}]
  %s3 = inlined_call_operand.vmem [shape: f32[1,128], index: 3, kind: input, shape index: {}]
  %s4 = inlined_call_operand.vmem [shape: bf16[128,128], index: 4, kind: input, shape index: {}]
  %s5 = inlined_call_operand.vmem [shape: bf16[512,128], index: 5, kind: output, shape index: {}]
  %s6 = sld [smem:[#allocation0]]
  $region61: #{gnn_apply.2} parent=0
    _
  %s8 = ssub.s32 1, %s6
  %s9 = scalar_select 0, %s8, %s6
  loop: start=0, step=1, limit=4
  $region2: #{gnn_apply.2} parent=0 // loop_pre_header
    _
  $region3: #{gnn_apply.2} parent=0 // loop_header
    %s11 = sphi 0, %s15
    %p12 = scmp.ge.s32.totalorder %s11, 4
    %s18 = sphi 0, %s30
    %s19 = sphi 0, %s26
    %s20 = sphi 0, %s18
    %s21 = sphi 0, %s19
    %s22 = sphi 0, %s20
    %s23 = sphi 0, %s21
    %s35 = sphi 0, %s37
    %s38 = sphi 0, %s35
    %s39 = sphi 0, %s38
    %s55 = sphi 0, %s39
    %s59 = sphi 0, %s59
    %s61 = sphi 0, %s59
    %s62 = sphi 0, %s61
    %s76 = sphi 0, %s62
    %s82 = sphi 0, %s84
    %s85 = sphi 0, %s82
    %s86 = sphi 0, %s85
    %s102 = sphi 0, %s86
    %s106 = sphi 0, %s106
    %s108 = sphi 0, %s106
    %s109 = sphi 0, %s108
    %s123 = sphi 0, %s109
    %s127 = sphi 0, %s127
    %s129 = sphi 0, %s127
    %s130 = sphi 0, %s129
    %s144 = sphi 0, %s130
    %s150 = sphi 0, %s152
    %s153 = sphi 0, %s150
    %s154 = sphi 0, %s153
    %s170 = sphi 0, %s154
  $region4: #{gnn_apply.2} parent=0 // loop_header_branch
    %14 = sbr.rel (%p12) target = $region8
  $region5: #{gnn_apply.2} parent=0 // loop_body
    %s16 = ssub.s32 %s11, 1
    %s17 = ssub.s32 %s11, 2
    %s24 = sadd.s32 1, %s19
    %p25 = scmp.ge.s32.totalorder %s24, 1
    %s26 = scalar_select %p25, 0, %s24
    %s27 = sadd.s32 1, %s18
    %s28 = scalar_select %p25, %s27, %s18
    %p29 = scmp.ge.s32.totalorder %s28, 2
    %s30 = scalar_select %p29, 0, %s28
    %s31 = ssub.s32 %s18, %s30
    %s32 = ssub.s32 %s19, %s26
    %s33 = sor.u32 %s31, %s32
    %p34 = scmp.eq.s32.totalorder %s33, 0
    %s36 = sadd.s32 %s35, 1
    %s37 = scalar_select %p34, %s35, %s36
    %p40 = pneg %p34
    %p41 = scmp.eq.s32.totalorder %s11, 1
    %p42 = por %p40, %p41
    %p43 = scmp.ne.s32.totalorder %s35, %s38
    %p44 = scmp.eq.s32.totalorder %s11, 0
    %p45 = por %p43, %p44
    %p46 = scmp.ne.s32.totalorder %s35, %s38
    %p47 = scmp.eq.s32.totalorder %s16, 1
    %p48 = por %p46, %p47
    %p49 = scmp.ne.s32.totalorder %s38, %s39
    %p50 = scmp.eq.s32.totalorder %s16, 0
    %p51 = por %p49, %p50
    %p52 = scmp.ne.s32.totalorder %s38, %s39
    %p53 = scmp.eq.s32.totalorder %s17, 1
    %p54 = por %p52, %p53
    %p56 = scmp.ne.s32.totalorder %s39, %s55
    %p57 = scmp.eq.s32.totalorder %s17, 0
    %p58 = por %p56, %p57
    %s60 = sadd.s32 %s59, 1
    %p63 = scmp.eq.s32.totalorder %s11, 1
    %p64 = scmp.ne.s32.totalorder %s59, %s61
    %p65 = scmp.eq.s32.totalorder %s11, 0
    %p66 = por %p64, %p65
    %p67 = scmp.ne.s32.totalorder %s59, %s61
    %p68 = scmp.eq.s32.totalorder %s16, 1
    %p69 = por %p67, %p68
    %p70 = scmp.ne.s32.totalorder %s61, %s62
    %p71 = scmp.eq.s32.totalorder %s16, 0
    %p72 = por %p70, %p71
    %p73 = scmp.ne.s32.totalorder %s61, %s62
    %p74 = scmp.eq.s32.totalorder %s17, 1
    %p75 = por %p73, %p74
    %p77 = scmp.ne.s32.totalorder %s62, %s76
    %p78 = scmp.eq.s32.totalorder %s17, 0
    %p79 = por %p77, %p78
    %s80 = ssub.s32 %s18, %s30
    %p81 = scmp.eq.s32.totalorder %s80, 0
    %s83 = sadd.s32 %s82, 1
    %s84 = scalar_select %p81, %s82, %s83
    %p87 = pneg %p81
    %p88 = scmp.eq.s32.totalorder %s11, 1
    %p89 = por %p87, %p88
    %p90 = scmp.ne.s32.totalorder %s82, %s85
    %p91 = scmp.eq.s32.totalorder %s11, 0
    %p92 = por %p90, %p91
    %p93 = scmp.ne.s32.totalorder %s82, %s85
    %p94 = scmp.eq.s32.totalorder %s16, 1
    %p95 = por %p93, %p94
    %p96 = scmp.ne.s32.totalorder %s85, %s86
    %p97 = scmp.eq.s32.totalorder %s16, 0
    %p98 = por %p96, %p97
    %p99 = scmp.ne.s32.totalorder %s85, %s86
    %p100 = scmp.eq.s32.totalorder %s17, 1
    %p101 = por %p99, %p100
    %p103 = scmp.ne.s32.totalorder %s86, %s102
    %p104 = scmp.eq.s32.totalorder %s17, 0
    %p105 = por %p103, %p104
    %s107 = sadd.s32 %s106, 1
    %p110 = scmp.eq.s32.totalorder %s11, 1
    %p111 = scmp.ne.s32.totalorder %s106, %s108
    %p112 = scmp.eq.s32.totalorder %s11, 0
    %p113 = por %p111, %p112
    %p114 = scmp.ne.s32.totalorder %s106, %s108
    %p115 = scmp.eq.s32.totalorder %s16, 1
    %p116 = por %p114, %p115
    %p117 = scmp.ne.s32.totalorder %s108, %s109
    %p118 = scmp.eq.s32.totalorder %s16, 0
    %p119 = por %p117, %p118
    %p120 = scmp.ne.s32.totalorder %s108, %s109
    %p121 = scmp.eq.s32.totalorder %s17, 1
    %p122 = por %p120, %p121
    %p124 = scmp.ne.s32.totalorder %s109, %s123
    %p125 = scmp.eq.s32.totalorder %s17, 0
    %p126 = por %p124, %p125
    %s128 = sadd.s32 %s127, 1
    %p131 = scmp.eq.s32.totalorder %s11, 1
    %p132 = scmp.ne.s32.totalorder %s127, %s129
    %p133 = scmp.eq.s32.totalorder %s11, 0
    %p134 = por %p132, %p133
    %p135 = scmp.ne.s32.totalorder %s127, %s129
    %p136 = scmp.eq.s32.totalorder %s16, 1
    %p137 = por %p135, %p136
    %p138 = scmp.ne.s32.totalorder %s129, %s130
    %p139 = scmp.eq.s32.totalorder %s16, 0
    %p140 = por %p138, %p139
    %p141 = scmp.ne.s32.totalorder %s129, %s130
    %p142 = scmp.eq.s32.totalorder %s17, 1
    %p143 = por %p141, %p142
    %p145 = scmp.ne.s32.totalorder %s130, %s144
    %p146 = scmp.eq.s32.totalorder %s17, 0
    %p147 = por %p145, %p146
    %s148 = ssub.s32 %s18, %s30
    %p149 = scmp.eq.s32.totalorder %s148, 0
    %s151 = sadd.s32 %s150, 1
    %s152 = scalar_select %p149, %s150, %s151
    %p155 = pneg %p149
    %p156 = scmp.eq.s32.totalorder %s11, 1
    %p157 = por %p155, %p156
    %p158 = scmp.ne.s32.totalorder %s150, %s153
    %p159 = scmp.eq.s32.totalorder %s11, 0
    %p160 = por %p158, %p159
    %p161 = scmp.ne.s32.totalorder %s150, %s153
    %p162 = scmp.eq.s32.totalorder %s16, 1
    %p163 = por %p161, %p162
    %p164 = scmp.ne.s32.totalorder %s153, %s154
    %p165 = scmp.eq.s32.totalorder %s16, 0
    %p166 = por %p164, %p165
    %p167 = scmp.ne.s32.totalorder %s153, %s154
    %p168 = scmp.eq.s32.totalorder %s17, 1
    %p169 = por %p167, %p168
    %p171 = scmp.ne.s32.totalorder %s154, %s170
    %p172 = scmp.eq.s32.totalorder %s17, 0
    %p173 = por %p171, %p172
    %p174 = scmp.le.s32.totalorder 1, %s11
    %p175 = scmp.lt.s32.totalorder %s11, 3
    %p176 = pnand %p174, %p175
    %p177 = pneg %p176
    // Predicated region
    $region9: #{gnn_apply.2} parent=5 // pred_check
      _
    $region10: #{gnn_apply.2} parent=5 // pred_check_branch
      %179 = sbr.rel (%p176) target = $region12
    $region11: #{gnn_apply.2} parent=5 // pred_region
      %s180 = ssub.s32 %s11, 1
      // Predicated region
      $region13: #{gnn_apply.2} parent=11 // pred_check
        %p181 = pneg %p72
      $region14: #{gnn_apply.2} parent=11 // pred_check_branch
        %183 = sbr.rel (%p181) target = $region16
      $region15: #{gnn_apply.2} parent=11 // pred_region
        _
      $region16: #{gnn_apply.2} parent=11 // pred_fallthru
        _
      // Predicated region
      $region17: #{gnn_apply.2} parent=11 // pred_check
        %p184 = pneg %p119
      $region18: #{gnn_apply.2} parent=11 // pred_check_branch
        %186 = sbr.rel (%p184) target = $region20
      $region19: #{gnn_apply.2} parent=11 // pred_region
        _
      $region20: #{gnn_apply.2} parent=11 // pred_fallthru
        _
      // Predicated region
      $region21: #{gnn_apply.2} parent=11 // pred_check
        %p187 = pneg %p140
      $region22: #{gnn_apply.2} parent=11 // pred_check_branch
        %189 = sbr.rel (%p187) target = $region24
      $region23: #{gnn_apply.2} parent=11 // pred_region
        _
      $region24: #{gnn_apply.2} parent=11 // pred_fallthru
        _
    $region12: #{gnn_apply.2} parent=5 // pred_fallthru
      _
    %p190 = scmp.lt.s32.totalorder %s11, 2
    // Predicated region
    $region25: #{gnn_apply.2} parent=5 // pred_check
      %p191 = pneg %p190
    $region26: #{gnn_apply.2} parent=5 // pred_check_branch
      %193 = sbr.rel (%p191) target = $region28
    $region27: #{gnn_apply.2} parent=5 // pred_region
      // Predicated region
      $region29: #{gnn_apply.2} parent=27 // pred_check
        %p194 = pneg %p45
      $region30: #{gnn_apply.2} parent=27 // pred_check_branch
        %196 = sbr.rel (%p194) target = $region32
      $region31: #{gnn_apply.2} parent=27 // pred_region
        %s197 = smul.u32 32, %s18
        %s198 = smul.u32 4, %s19
        %p199 = scmp.lt.s32.totalorder %s197, 63
        %s200 = scalar_select %p199, %s197, 63
        %p201 = scmp.lt.s32.totalorder %s198, 3
        %s202 = scalar_select %p201, %s198, 3
        %s203 = smul.addr %s200, 4
        %s204 = sadd.s32 %s202, %s203
        %s205 = smul.addr %s204, 4
        %s206 = scalar_lea.vmem %s0, %s205
        %s207 = smul.u32 32, %s18
        %s208 = smul.u32 4, %s19
      $region32: #{gnn_apply.2} parent=27 // pred_fallthru
        _
      // Predicated region
      $region33: #{gnn_apply.2} parent=27 // pred_check
        %p209 = pneg %p92
      $region34: #{gnn_apply.2} parent=27 // pred_check_branch
        %211 = sbr.rel (%p209) target = $region36
      $region35: #{gnn_apply.2} parent=27 // pred_region
        %s212 = smul.u32 32, %s18
        %p213 = scmp.lt.s32.totalorder %s212, 63
        %s214 = scalar_select %p213, %s212, 63
        %s215 = smul.addr %s214, 8
        %s216 = scalar_lea.vmem %s2, %s215
        %s217 = smul.u32 32, %s18
      $region36: #{gnn_apply.2} parent=27 // pred_fallthru
        _
    $region28: #{gnn_apply.2} parent=5 // pred_fallthru
      _
    %p218 = scmp.le.s32.totalorder 1, %s11
    %p219 = scmp.lt.s32.totalorder %s11, 3
    %p220 = pnand %p218, %p219
    %p221 = pneg %p220
    // Predicated region
    $region37: #{gnn_apply.2} parent=5 // pred_check
      _
    $region38: #{gnn_apply.2} parent=5 // pred_check_branch
      %223 = sbr.rel (%p220) target = $region40
    $region39: #{gnn_apply.2} parent=5 // pred_region
      %s224 = ssub.s32 %s11, 1
      %s225 = smul.u32 32, %s20
      %s226 = smul.u32 4, %s21
      %p227 = scmp.lt.s32.totalorder %s225, 63
      %s228 = scalar_select %p227, %s225, 63
      %p229 = scmp.lt.s32.totalorder %s226, 3
      %s230 = scalar_select %p229, %s226, 3
      %s231 = smul.addr %s228, 4
      %s232 = sadd.s32 %s230, %s231
      %s233 = smul.addr %s232, 4
      %s234 = scalar_lea.vmem %s0, %s233
      %p235 = pneg %p51
      %p236 = pneg %p48
      %p237 = pneg %p72
      %p238 = pneg %p69
      %s239 = smul.u32 32, %s20
      %p240 = scmp.lt.s32.totalorder %s239, 63
      %s241 = scalar_select %p240, %s239, 63
      %s242 = smul.addr %s241, 8
      %s243 = scalar_lea.vmem %s2, %s242
      %p244 = pneg %p98
      %p245 = pneg %p95
      %p246 = pneg %p119
      %p247 = pneg %p116
      %p248 = pneg %p140
      %p249 = pneg %p137
      %p250 = pneg %p166
      %p251 = pneg %p163
      %s252 = smul.u32 32, %s20
      %p253 = scmp.lt.s32.totalorder %s252, 63
      %s254 = scalar_select %p253, %s252, 63
      %s255 = smul.addr %s254, 4
      %s256 = scalar_lea.vmem %s5, %s255
      %s257 = smul.u32 32, %s20
      %s258 = smul.u32 4, %s21
      %p259 = scmp.lt.s32.totalorder %s257, 63
      %s260 = scalar_select %p259, %s257, 63
      %p261 = scmp.lt.s32.totalorder %s258, 3
      %s262 = scalar_select %p261, %s258, 3
      %s263 = smul.addr %s260, 4
      %s264 = sadd.s32 %s262, %s263
      %s265 = smul.addr %s264, 4
      %s266 = scalar_lea.vmem %s0, %s265
      %s267 = smul.u32 32, %s20
      %s268 = smul.u32 4, %s21
      %s269 = smul.u32 32, %s20
      %p270 = scmp.lt.s32.totalorder %s269, 63
      %s271 = scalar_select %p270, %s269, 63
      %s272 = smul.addr %s271, 8
      %s273 = scalar_lea.vmem %s2, %s272
      %s274 = smul.u32 32, %s20
      %s275 = smul.u32 32, %s20
      %p276 = scmp.lt.s32.totalorder %s275, 63
      %s277 = scalar_select %p276, %s275, 63
      %s278 = smul.addr %s277, 4
      %s279 = scalar_lea.vmem %s5, %s278
      %s280 = smul.u32 32, %s20
      %p281 = scmp.eq.s32.totalorder %s21, 0
      // Predicated region
      $region41: #{gnn_apply.2} parent=39 // pred_check
        %p282 = pneg %p281
      $region42: #{gnn_apply.2} parent=39 // pred_check_branch
        %284 = sbr.rel (%p282) target = $region44
      $region43: #{gnn_apply.2} parent=39 // pred_region
        %285 = vst [vmem:[#allocation2] sm:$0xff] 0.0
        %286 = vst [vmem:[#allocation2 + $0x8] sm:$0xff] 0.0
        %287 = vst [vmem:[#allocation2 + $0x10] sm:$0xff] 0.0
        %288 = vst [vmem:[#allocation2 + $0x18] sm:$0xff] 0.0
        %289 = vst [vmem:[#allocation2 + $0x20] sm:$0xff] 0.0
        %290 = vst [vmem:[#allocation2 + $0x28] sm:$0xff] 0.0
        %291 = vst [vmem:[#allocation2 + $0x30] sm:$0xff] 0.0
        %292 = vst [vmem:[#allocation2 + $0x38] sm:$0xff] 0.0
        %293 = vst [vmem:[#allocation2 + $0x40] sm:$0xff] 0.0
        %294 = vst [vmem:[#allocation2 + $0x48] sm:$0xff] 0.0
        %295 = vst [vmem:[#allocation2 + $0x50] sm:$0xff] 0.0
        %296 = vst [vmem:[#allocation2 + $0x58] sm:$0xff] 0.0
        %297 = vst [vmem:[#allocation2 + $0x60] sm:$0xff] 0.0
        %298 = vst [vmem:[#allocation2 + $0x68] sm:$0xff] 0.0
        %299 = vst [vmem:[#allocation2 + $0x70] sm:$0xff] 0.0
        %300 = vst [vmem:[#allocation2 + $0x78] sm:$0xff] 0.0
        %301 = vst [vmem:[#allocation2 + $0x80] sm:$0xff] 0.0
        %302 = vst [vmem:[#allocation2 + $0x88] sm:$0xff] 0.0
        %303 = vst [vmem:[#allocation2 + $0x90] sm:$0xff] 0.0
        %304 = vst [vmem:[#allocation2 + $0x98] sm:$0xff] 0.0
        %305 = vst [vmem:[#allocation2 + $0xa0] sm:$0xff] 0.0
        %306 = vst [vmem:[#allocation2 + $0xa8] sm:$0xff] 0.0
        %307 = vst [vmem:[#allocation2 + $0xb0] sm:$0xff] 0.0
        %308 = vst [vmem:[#allocation2 + $0xb8] sm:$0xff] 0.0
        %309 = vst [vmem:[#allocation2 + $0xc0] sm:$0xff] 0.0
        %310 = vst [vmem:[#allocation2 + $0xc8] sm:$0xff] 0.0
        %311 = vst [vmem:[#allocation2 + $0xd0] sm:$0xff] 0.0
        %312 = vst [vmem:[#allocation2 + $0xd8] sm:$0xff] 0.0
        %313 = vst [vmem:[#allocation2 + $0xe0] sm:$0xff] 0.0
        %314 = vst [vmem:[#allocation2 + $0xe8] sm:$0xff] 0.0
        %315 = vst [vmem:[#allocation2 + $0xf0] sm:$0xff] 0.0
        %316 = vst [vmem:[#allocation2 + $0xf8] sm:$0xff] 0.0
      $region44: #{gnn_apply.2} parent=39 // pred_fallthru
        _
      %s317 = smul.u32 %s21, 512
      %v318 = vld [vmem:[#allocation2] sm:$0xff]
      %v319 = vld [vmem:[#allocation2 + $0x8] sm:$0xff]
      %v320 = vld [vmem:[#allocation2 + $0x10] sm:$0xff]
      %v321 = vld [vmem:[#allocation2 + $0x18] sm:$0xff]
      %v322 = vld [vmem:[#allocation2 + $0x20] sm:$0xff]
      %v323 = vld [vmem:[#allocation2 + $0x28] sm:$0xff]
      %v324 = vld [vmem:[#allocation2 + $0x30] sm:$0xff]
      %v325 = vld [vmem:[#allocation2 + $0x38] sm:$0xff]
      %v326 = vld [vmem:[#allocation2 + $0x40] sm:$0xff]
      %v327 = vld [vmem:[#allocation2 + $0x48] sm:$0xff]
      %v328 = vld [vmem:[#allocation2 + $0x50] sm:$0xff]
      %v329 = vld [vmem:[#allocation2 + $0x58] sm:$0xff]
      %v330 = vld [vmem:[#allocation2 + $0x60] sm:$0xff]
      %v331 = vld [vmem:[#allocation2 + $0x68] sm:$0xff]
      %v332 = vld [vmem:[#allocation2 + $0x70] sm:$0xff]
      %v333 = vld [vmem:[#allocation2 + $0x78] sm:$0xff]
      %v334 = vld [vmem:[#allocation2 + $0x80] sm:$0xff]
      %v335 = vld [vmem:[#allocation2 + $0x88] sm:$0xff]
      %v336 = vld [vmem:[#allocation2 + $0x90] sm:$0xff]
      %v337 = vld [vmem:[#allocation2 + $0x98] sm:$0xff]
      %v338 = vld [vmem:[#allocation2 + $0xa0] sm:$0xff]
      %v339 = vld [vmem:[#allocation2 + $0xa8] sm:$0xff]
      %v340 = vld [vmem:[#allocation2 + $0xb0] sm:$0xff]
      %v341 = vld [vmem:[#allocation2 + $0xb8] sm:$0xff]
      %v342 = vld [vmem:[#allocation2 + $0xc0] sm:$0xff]
      %v343 = vld [vmem:[#allocation2 + $0xc8] sm:$0xff]
      %v344 = vld [vmem:[#allocation2 + $0xd0] sm:$0xff]
      %v345 = vld [vmem:[#allocation2 + $0xd8] sm:$0xff]
      %v346 = vld [vmem:[#allocation2 + $0xe0] sm:$0xff]
      %v347 = vld [vmem:[#allocation2 + $0xe8] sm:$0xff]
      %v348 = vld [vmem:[#allocation2 + $0xf0] sm:$0xff]
      %v349 = vld [vmem:[#allocation2 + $0xf8] sm:$0xff]
      %v350 = vld [vmem:[%s266] sm:$0xff]
      %v351 = vld [vmem:[%s266 + $0x8] sm:$0xff]
      %v352 = vld [vmem:[%s266 + $0x10] sm:$0xff]
      %v353 = vld [vmem:[%s266 + $0x18] sm:$0xff]
      %v354 = vld [vmem:[%s266 + $0x20] sm:$0xff]
      %v355 = vld [vmem:[%s266 + $0x28] sm:$0xff]
      %v356 = vld [vmem:[%s266 + $0x30] sm:$0xff]
      %v357 = vld [vmem:[%s266 + $0x38] sm:$0xff]
      %v358 = vld [vmem:[%s266 + $0x40] sm:$0xff]
      %v359 = vld [vmem:[%s266 + $0x48] sm:$0xff]
      %v360 = vld [vmem:[%s266 + $0x50] sm:$0xff]
      %v361 = vld [vmem:[%s266 + $0x58] sm:$0xff]
      %v362 = vld [vmem:[%s266 + $0x60] sm:$0xff]
      %v363 = vld [vmem:[%s266 + $0x68] sm:$0xff]
      %v364 = vld [vmem:[%s266 + $0x70] sm:$0xff]
      %v365 = vld [vmem:[%s266 + $0x78] sm:$0xff]
      %v366 = vld [vmem:[%s266 + $0x80] sm:$0xff]
      %v367 = vld [vmem:[%s266 + $0x88] sm:$0xff]
      %v368 = vld [vmem:[%s266 + $0x90] sm:$0xff]
      %v369 = vld [vmem:[%s266 + $0x98] sm:$0xff]
      %v370 = vld [vmem:[%s266 + $0xa0] sm:$0xff]
      %v371 = vld [vmem:[%s266 + $0xa8] sm:$0xff]
      %v372 = vld [vmem:[%s266 + $0xb0] sm:$0xff]
      %v373 = vld [vmem:[%s266 + $0xb8] sm:$0xff]
      %v374 = vld [vmem:[%s266 + $0xc0] sm:$0xff]
      %v375 = vld [vmem:[%s266 + $0xc8] sm:$0xff]
      %v376 = vld [vmem:[%s266 + $0xd0] sm:$0xff]
      %v377 = vld [vmem:[%s266 + $0xd8] sm:$0xff]
      %v378 = vld [vmem:[%s266 + $0xe0] sm:$0xff]
      %v379 = vld [vmem:[%s266 + $0xe8] sm:$0xff]
      %v380 = vld [vmem:[%s266 + $0xf0] sm:$0xff]
      %v381 = vld [vmem:[%s266 + $0xf8] sm:$0xff]
      %v382 = vld [vmem:[%s266 + $0x100] sm:$0xff]
      %v383 = vld [vmem:[%s266 + $0x108] sm:$0xff]
      %v384 = vld [vmem:[%s266 + $0x110] sm:$0xff]
      %v385 = vld [vmem:[%s266 + $0x118] sm:$0xff]
      %v386 = vld [vmem:[%s266 + $0x120] sm:$0xff]
      %v387 = vld [vmem:[%s266 + $0x128] sm:$0xff]
      %v388 = vld [vmem:[%s266 + $0x130] sm:$0xff]
      %v389 = vld [vmem:[%s266 + $0x138] sm:$0xff]
      %v390 = vld [vmem:[%s266 + $0x140] sm:$0xff]
      %v391 = vld [vmem:[%s266 + $0x148] sm:$0xff]
      %v392 = vld [vmem:[%s266 + $0x150] sm:$0xff]
      %v393 = vld [vmem:[%s266 + $0x158] sm:$0xff]
      %v394 = vld [vmem:[%s266 + $0x160] sm:$0xff]
      %v395 = vld [vmem:[%s266 + $0x168] sm:$0xff]
      %v396 = vld [vmem:[%s266 + $0x170] sm:$0xff]
      %v397 = vld [vmem:[%s266 + $0x178] sm:$0xff]
      %v398 = vld [vmem:[%s266 + $0x180] sm:$0xff]
      %v399 = vld [vmem:[%s266 + $0x188] sm:$0xff]
      %v400 = vld [vmem:[%s266 + $0x190] sm:$0xff]
      %v401 = vld [vmem:[%s266 + $0x198] sm:$0xff]
      %v402 = vld [vmem:[%s266 + $0x1a0] sm:$0xff]
      %v403 = vld [vmem:[%s266 + $0x1a8] sm:$0xff]
      %v404 = vld [vmem:[%s266 + $0x1b0] sm:$0xff]
      %v405 = vld [vmem:[%s266 + $0x1b8] sm:$0xff]
      %v406 = vld [vmem:[%s266 + $0x1c0] sm:$0xff]
      %v407 = vld [vmem:[%s266 + $0x1c8] sm:$0xff]
      %v408 = vld [vmem:[%s266 + $0x1d0] sm:$0xff]
      %v409 = vld [vmem:[%s266 + $0x1d8] sm:$0xff]
      %v410 = vld [vmem:[%s266 + $0x1e0] sm:$0xff]
      %v411 = vld [vmem:[%s266 + $0x1e8] sm:$0xff]
      %v412 = vld [vmem:[%s266 + $0x1f0] sm:$0xff]
      %v413 = vld [vmem:[%s266 + $0x1f8] sm:$0xff]
      %s414 = sshra.s32 %s317, 3
      %s415 = sand.u32 %s317, 7
      %s416 = smul.addr %s414, 4
      %s417 = scalar_lea.vmem %s1, %s416
      %v418 = vld [vmem:[%s417] sm:$0xf]
      %v419 = vld [vmem:[%s417 + $0x4] sm:$0xf]
      %v420 = vld [vmem:[%s417 + $0x8] sm:$0xf]
      %v421 = vld [vmem:[%s417 + $0xc] sm:$0xf]
      %v422 = vld [vmem:[%s417 + $0x10] sm:$0xf]
      %v423 = vld [vmem:[%s417 + $0x14] sm:$0xf]
      %v424 = vld [vmem:[%s417 + $0x18] sm:$0xf]
      %v425 = vld [vmem:[%s417 + $0x1c] sm:$0xf]
      %v426 = vld [vmem:[%s417 + $0x20] sm:$0xf]
      %v427 = vld [vmem:[%s417 + $0x24] sm:$0xf]
      %v428 = vld [vmem:[%s417 + $0x28] sm:$0xf]
      %v429 = vld [vmem:[%s417 + $0x2c] sm:$0xf]
      %v430 = vld [vmem:[%s417 + $0x30] sm:$0xf]
      %v431 = vld [vmem:[%s417 + $0x34] sm:$0xf]
      %v432 = vld [vmem:[%s417 + $0x38] sm:$0xf]
      %v433 = vld [vmem:[%s417 + $0x3c] sm:$0xf]
      %v434 = vld [vmem:[%s417 + $0x40] sm:$0xf]
      %v435 = vld [vmem:[%s417 + $0x44] sm:$0xf]
      %v436 = vld [vmem:[%s417 + $0x48] sm:$0xf]
      %v437 = vld [vmem:[%s417 + $0x4c] sm:$0xf]
      %v438 = vld [vmem:[%s417 + $0x50] sm:$0xf]
      %v439 = vld [vmem:[%s417 + $0x54] sm:$0xf]
      %v440 = vld [vmem:[%s417 + $0x58] sm:$0xf]
      %v441 = vld [vmem:[%s417 + $0x5c] sm:$0xf]
      %v442 = vld [vmem:[%s417 + $0x60] sm:$0xf]
      %v443 = vld [vmem:[%s417 + $0x64] sm:$0xf]
      %v444 = vld [vmem:[%s417 + $0x68] sm:$0xf]
      %v445 = vld [vmem:[%s417 + $0x6c] sm:$0xf]
      %v446 = vld [vmem:[%s417 + $0x70] sm:$0xf]
      %v447 = vld [vmem:[%s417 + $0x74] sm:$0xf]
      %v448 = vld [vmem:[%s417 + $0x78] sm:$0xf]
      %v449 = vld [vmem:[%s417 + $0x7c] sm:$0xf]
      %v450 = vld [vmem:[%s417 + $0x80] sm:$0xf]
      %v451 = vld [vmem:[%s417 + $0x84] sm:$0xf]
      %v452 = vld [vmem:[%s417 + $0x88] sm:$0xf]
      %v453 = vld [vmem:[%s417 + $0x8c] sm:$0xf]
      %v454 = vld [vmem:[%s417 + $0x90] sm:$0xf]
      %v455 = vld [vmem:[%s417 + $0x94] sm:$0xf]
      %v456 = vld [vmem:[%s417 + $0x98] sm:$0xf]
      %v457 = vld [vmem:[%s417 + $0x9c] sm:$0xf]
      %v458 = vld [vmem:[%s417 + $0xa0] sm:$0xf]
      %v459 = vld [vmem:[%s417 + $0xa4] sm:$0xf]
      %v460 = vld [vmem:[%s417 + $0xa8] sm:$0xf]
      %v461 = vld [vmem:[%s417 + $0xac] sm:$0xf]
      %v462 = vld [vmem:[%s417 + $0xb0] sm:$0xf]
      %v463 = vld [vmem:[%s417 + $0xb4] sm:$0xf]
      %v464 = vld [vmem:[%s417 + $0xb8] sm:$0xf]
      %v465 = vld [vmem:[%s417 + $0xbc] sm:$0xf]
      %v466 = vld [vmem:[%s417 + $0xc0] sm:$0xf]
      %v467 = vld [vmem:[%s417 + $0xc4] sm:$0xf]
      %v468 = vld [vmem:[%s417 + $0xc8] sm:$0xf]
      %v469 = vld [vmem:[%s417 + $0xcc] sm:$0xf]
      %v470 = vld [vmem:[%s417 + $0xd0] sm:$0xf]
      %v471 = vld [vmem:[%s417 + $0xd4] sm:$0xf]
      %v472 = vld [vmem:[%s417 + $0xd8] sm:$0xf]
      %v473 = vld [vmem:[%s417 + $0xdc] sm:$0xf]
      %v474 = vld [vmem:[%s417 + $0xe0] sm:$0xf]
      %v475 = vld [vmem:[%s417 + $0xe4] sm:$0xf]
      %v476 = vld [vmem:[%s417 + $0xe8] sm:$0xf]
      %v477 = vld [vmem:[%s417 + $0xec] sm:$0xf]
      %v478 = vld [vmem:[%s417 + $0xf0] sm:$0xf]
      %v479 = vld [vmem:[%s417 + $0xf4] sm:$0xf]
      %v480 = vld [vmem:[%s417 + $0xf8] sm:$0xf]
      %v481 = vld [vmem:[%s417 + $0xfc] sm:$0xf]
      %v546 = vunpack.c.l.b16 %v350
      %v547 = vunpack.c.h.b16 %v350
      %v548 = vunpack.c.l.b16 %v351
      %v549 = vunpack.c.h.b16 %v351
      %v550 = vunpack.c.l.b16 %v352
      %v551 = vunpack.c.h.b16 %v352
      %v552 = vunpack.c.l.b16 %v353
      %v553 = vunpack.c.h.b16 %v353
      %v554 = vunpack.c.l.b16 %v354
      %v555 = vunpack.c.h.b16 %v354
      %v556 = vunpack.c.l.b16 %v355
      %v557 = vunpack.c.h.b16 %v355
      %v558 = vunpack.c.l.b16 %v356
      %v559 = vunpack.c.h.b16 %v356
      %v560 = vunpack.c.l.b16 %v357
      %v561 = vunpack.c.h.b16 %v357
      %v562 = vunpack.c.l.b16 %v358
      %v563 = vunpack.c.h.b16 %v358
      %v564 = vunpack.c.l.b16 %v359
      %v565 = vunpack.c.h.b16 %v359
      %v566 = vunpack.c.l.b16 %v360
      %v567 = vunpack.c.h.b16 %v360
      %v568 = vunpack.c.l.b16 %v361
      %v569 = vunpack.c.h.b16 %v361
      %v570 = vunpack.c.l.b16 %v362
      %v571 = vunpack.c.h.b16 %v362
      %v572 = vunpack.c.l.b16 %v363
      %v573 = vunpack.c.h.b16 %v363
      %v574 = vunpack.c.l.b16 %v364
      %v575 = vunpack.c.h.b16 %v364
      %v576 = vunpack.c.l.b16 %v365
      %v577 = vunpack.c.h.b16 %v365
      %v578 = vunpack.c.l.b16 %v366
      %v579 = vunpack.c.h.b16 %v366
      %v580 = vunpack.c.l.b16 %v367
      %v581 = vunpack.c.h.b16 %v367
      %v582 = vunpack.c.l.b16 %v368
      %v583 = vunpack.c.h.b16 %v368
      %v584 = vunpack.c.l.b16 %v369
      %v585 = vunpack.c.h.b16 %v369
      %v586 = vunpack.c.l.b16 %v370
      %v587 = vunpack.c.h.b16 %v370
      %v588 = vunpack.c.l.b16 %v371
      %v589 = vunpack.c.h.b16 %v371
      %v590 = vunpack.c.l.b16 %v372
      %v591 = vunpack.c.h.b16 %v372
      %v592 = vunpack.c.l.b16 %v373
      %v593 = vunpack.c.h.b16 %v373
      %v594 = vunpack.c.l.b16 %v374
      %v595 = vunpack.c.h.b16 %v374
      %v596 = vunpack.c.l.b16 %v375
      %v597 = vunpack.c.h.b16 %v375
      %v598 = vunpack.c.l.b16 %v376
      %v599 = vunpack.c.h.b16 %v376
      %v600 = vunpack.c.l.b16 %v377
      %v601 = vunpack.c.h.b16 %v377
      %v602 = vunpack.c.l.b16 %v378
      %v603 = vunpack.c.h.b16 %v378
      %v604 = vunpack.c.l.b16 %v379
      %v605 = vunpack.c.h.b16 %v379
      %v606 = vunpack.c.l.b16 %v380
      %v607 = vunpack.c.h.b16 %v380
      %v608 = vunpack.c.l.b16 %v381
      %v609 = vunpack.c.h.b16 %v381
      %v610 = vunpack.c.l.b16 %v382
      %v611 = vunpack.c.h.b16 %v382
      %v612 = vunpack.c.l.b16 %v383
      %v613 = vunpack.c.h.b16 %v383
      %v614 = vunpack.c.l.b16 %v384
      %v615 = vunpack.c.h.b16 %v384
      %v616 = vunpack.c.l.b16 %v385
      %v617 = vunpack.c.h.b16 %v385
      %v618 = vunpack.c.l.b16 %v386
      %v619 = vunpack.c.h.b16 %v386
      %v620 = vunpack.c.l.b16 %v387
      %v621 = vunpack.c.h.b16 %v387
      %v622 = vunpack.c.l.b16 %v388
      %v623 = vunpack.c.h.b16 %v388
      %v624 = vunpack.c.l.b16 %v389
      %v625 = vunpack.c.h.b16 %v389
      %v626 = vunpack.c.l.b16 %v390
      %v627 = vunpack.c.h.b16 %v390
      %v628 = vunpack.c.l.b16 %v391
      %v629 = vunpack.c.h.b16 %v391
      %v630 = vunpack.c.l.b16 %v392
      %v631 = vunpack.c.h.b16 %v392
      %v632 = vunpack.c.l.b16 %v393
      %v633 = vunpack.c.h.b16 %v393
      %v634 = vunpack.c.l.b16 %v394
      %v635 = vunpack.c.h.b16 %v394
      %v636 = vunpack.c.l.b16 %v395
      %v637 = vunpack.c.h.b16 %v395
      %v638 = vunpack.c.l.b16 %v396
      %v639 = vunpack.c.h.b16 %v396
      %v640 = vunpack.c.l.b16 %v397
      %v641 = vunpack.c.h.b16 %v397
      %v642 = vunpack.c.l.b16 %v398
      %v643 = vunpack.c.h.b16 %v398
      %v644 = vunpack.c.l.b16 %v399
      %v645 = vunpack.c.h.b16 %v399
      %v646 = vunpack.c.l.b16 %v400
      %v647 = vunpack.c.h.b16 %v400
      %v648 = vunpack.c.l.b16 %v401
      %v649 = vunpack.c.h.b16 %v401
      %v650 = vunpack.c.l.b16 %v402
      %v651 = vunpack.c.h.b16 %v402
      %v652 = vunpack.c.l.b16 %v403
      %v653 = vunpack.c.h.b16 %v403
      %v654 = vunpack.c.l.b16 %v404
      %v655 = vunpack.c.h.b16 %v404
      %v656 = vunpack.c.l.b16 %v405
      %v657 = vunpack.c.h.b16 %v405
      %v658 = vunpack.c.l.b16 %v406
      %v659 = vunpack.c.h.b16 %v406
      %v660 = vunpack.c.l.b16 %v407
      %v661 = vunpack.c.h.b16 %v407
      %v662 = vunpack.c.l.b16 %v408
      %v663 = vunpack.c.h.b16 %v408
      %v664 = vunpack.c.l.b16 %v409
      %v665 = vunpack.c.h.b16 %v409
      %v666 = vunpack.c.l.b16 %v410
      %v667 = vunpack.c.h.b16 %v410
      %v668 = vunpack.c.l.b16 %v411
      %v669 = vunpack.c.h.b16 %v411
      %v670 = vunpack.c.l.b16 %v412
      %v671 = vunpack.c.h.b16 %v412
      %v672 = vunpack.c.l.b16 %v413
      %v673 = vunpack.c.h.b16 %v413
      %v674 = vpack.c.b16 %v550, %v546
      %v675 = vpack.c.b16 %v551, %v547
      %v676 = vpack.c.b16 %v552, %v548
      %v677 = vpack.c.b16 %v553, %v549
      %v678 = vpack.c.b16 %v558, %v554
      %v679 = vpack.c.b16 %v559, %v555
      %v680 = vpack.c.b16 %v560, %v556
      %v681 = vpack.c.b16 %v561, %v557
      %v682 = vpack.c.b16 %v566, %v562
      %v683 = vpack.c.b16 %v567, %v563
      %v684 = vpack.c.b16 %v568, %v564
      %v685 = vpack.c.b16 %v569, %v565
      %v686 = vpack.c.b16 %v574, %v570
      %v687 = vpack.c.b16 %v575, %v571
      %v688 = vpack.c.b16 %v576, %v572
      %v689 = vpack.c.b16 %v577, %v573
      %v690 = vpack.c.b16 %v582, %v578
      %v691 = vpack.c.b16 %v583, %v579
      %v692 = vpack.c.b16 %v584, %v580
      %v693 = vpack.c.b16 %v585, %v581
      %v694 = vpack.c.b16 %v590, %v586
      %v695 = vpack.c.b16 %v591, %v587
      %v696 = vpack.c.b16 %v592, %v588
      %v697 = vpack.c.b16 %v593, %v589
      %v698 = vpack.c.b16 %v598, %v594
      %v699 = vpack.c.b16 %v599, %v595
      %v700 = vpack.c.b16 %v600, %v596
      %v701 = vpack.c.b16 %v601, %v597
      %v702 = vpack.c.b16 %v606, %v602
      %v703 = vpack.c.b16 %v607, %v603
      %v704 = vpack.c.b16 %v608, %v604
      %v705 = vpack.c.b16 %v609, %v605
      %v706 = vpack.c.b16 %v614, %v610
      %v707 = vpack.c.b16 %v615, %v611
      %v708 = vpack.c.b16 %v616, %v612
      %v709 = vpack.c.b16 %v617, %v613
      %v710 = vpack.c.b16 %v622, %v618
      %v711 = vpack.c.b16 %v623, %v619
      %v712 = vpack.c.b16 %v624, %v620
      %v713 = vpack.c.b16 %v625, %v621
      %v714 = vpack.c.b16 %v630, %v626
      %v715 = vpack.c.b16 %v631, %v627
      %v716 = vpack.c.b16 %v632, %v628
      %v717 = vpack.c.b16 %v633, %v629
      %v718 = vpack.c.b16 %v638, %v634
      %v719 = vpack.c.b16 %v639, %v635
      %v720 = vpack.c.b16 %v640, %v636
      %v721 = vpack.c.b16 %v641, %v637
      %v722 = vpack.c.b16 %v646, %v642
      %v723 = vpack.c.b16 %v647, %v643
      %v724 = vpack.c.b16 %v648, %v644
      %v725 = vpack.c.b16 %v649, %v645
      %v726 = vpack.c.b16 %v654, %v650
      %v727 = vpack.c.b16 %v655, %v651
      %v728 = vpack.c.b16 %v656, %v652
      %v729 = vpack.c.b16 %v657, %v653
      %v730 = vpack.c.b16 %v662, %v658
      %v731 = vpack.c.b16 %v663, %v659
      %v732 = vpack.c.b16 %v664, %v660
      %v733 = vpack.c.b16 %v665, %v661
      %v734 = vpack.c.b16 %v670, %v666
      %v735 = vpack.c.b16 %v671, %v667
      %v736 = vpack.c.b16 %v672, %v668
      %v737 = vpack.c.b16 %v673, %v669
      %v866 = vunpack.c.l.b16 %v418
      %v867 = vunpack.c.l.b16 %v419
      %v868 = vunpack.c.l.b16 %v420
      %v869 = vunpack.c.l.b16 %v421
      %v870 = vunpack.c.l.b16 %v422
      %v871 = vunpack.c.l.b16 %v423
      %v872 = vunpack.c.l.b16 %v424
      %v873 = vunpack.c.l.b16 %v425
      %v874 = vunpack.c.l.b16 %v426
      %v875 = vunpack.c.l.b16 %v427
      %v876 = vunpack.c.l.b16 %v428
      %v877 = vunpack.c.l.b16 %v429
      %v878 = vunpack.c.l.b16 %v430
      %v879 = vunpack.c.l.b16 %v431
      %v880 = vunpack.c.l.b16 %v432
      %v881 = vunpack.c.l.b16 %v433
      %v882 = vunpack.c.l.b16 %v434
      %v883 = vunpack.c.l.b16 %v435
      %v884 = vunpack.c.l.b16 %v436
      %v885 = vunpack.c.l.b16 %v437
      %v886 = vunpack.c.l.b16 %v438
      %v887 = vunpack.c.l.b16 %v439
      %v888 = vunpack.c.l.b16 %v440
      %v889 = vunpack.c.l.b16 %v441
      %v890 = vunpack.c.l.b16 %v442
      %v891 = vunpack.c.l.b16 %v443
      %v892 = vunpack.c.l.b16 %v444
      %v893 = vunpack.c.l.b16 %v445
      %v894 = vunpack.c.l.b16 %v446
      %v895 = vunpack.c.l.b16 %v447
      %v896 = vunpack.c.l.b16 %v448
      %v897 = vunpack.c.l.b16 %v449
      %v898 = vunpack.c.l.b16 %v450
      %v899 = vunpack.c.l.b16 %v451
      %v900 = vunpack.c.l.b16 %v452
      %v901 = vunpack.c.l.b16 %v453
      %v902 = vunpack.c.l.b16 %v454
      %v903 = vunpack.c.l.b16 %v455
      %v904 = vunpack.c.l.b16 %v456
      %v905 = vunpack.c.l.b16 %v457
      %v906 = vunpack.c.l.b16 %v458
      %v907 = vunpack.c.l.b16 %v459
      %v908 = vunpack.c.l.b16 %v460
      %v909 = vunpack.c.l.b16 %v461
      %v910 = vunpack.c.l.b16 %v462
      %v911 = vunpack.c.l.b16 %v463
      %v912 = vunpack.c.l.b16 %v464
      %v913 = vunpack.c.l.b16 %v465
      %v914 = vunpack.c.l.b16 %v466
      %v915 = vunpack.c.l.b16 %v467
      %v916 = vunpack.c.l.b16 %v468
      %v917 = vunpack.c.l.b16 %v469
      %v918 = vunpack.c.l.b16 %v470
      %v919 = vunpack.c.l.b16 %v471
      %v920 = vunpack.c.l.b16 %v472
      %v921 = vunpack.c.l.b16 %v473
      %v922 = vunpack.c.l.b16 %v474
      %v923 = vunpack.c.l.b16 %v475
      %v924 = vunpack.c.l.b16 %v476
      %v925 = vunpack.c.l.b16 %v477
      %v926 = vunpack.c.l.b16 %v478
      %v927 = vunpack.c.l.b16 %v479
      %v928 = vunpack.c.l.b16 %v480
      %v929 = vunpack.c.l.b16 %v481
      %v930 = vpack.c.b16 %v867, %v866
      %v931 = vpack.c.b16 %v869, %v868
      %v932 = vpack.c.b16 %v871, %v870
      %v933 = vpack.c.b16 %v873, %v872
      %v934 = vpack.c.b16 %v875, %v874
      %v935 = vpack.c.b16 %v877, %v876
      %v936 = vpack.c.b16 %v879, %v878
      %v937 = vpack.c.b16 %v881, %v880
      %v938 = vpack.c.b16 %v883, %v882
      %v939 = vpack.c.b16 %v885, %v884
      %v940 = vpack.c.b16 %v887, %v886
      %v941 = vpack.c.b16 %v889, %v888
      %v942 = vpack.c.b16 %v891, %v890
      %v943 = vpack.c.b16 %v893, %v892
      %v944 = vpack.c.b16 %v895, %v894
      %v945 = vpack.c.b16 %v897, %v896
      %v946 = vpack.c.b16 %v899, %v898
      %v947 = vpack.c.b16 %v901, %v900
      %v948 = vpack.c.b16 %v903, %v902
      %v949 = vpack.c.b16 %v905, %v904
      %v950 = vpack.c.b16 %v907, %v906
      %v951 = vpack.c.b16 %v909, %v908
      %v952 = vpack.c.b16 %v911, %v910
      %v953 = vpack.c.b16 %v913, %v912
      %v954 = vpack.c.b16 %v915, %v914
      %v955 = vpack.c.b16 %v917, %v916
      %v956 = vpack.c.b16 %v919, %v918
      %v957 = vpack.c.b16 %v921, %v920
      %v958 = vpack.c.b16 %v923, %v922
      %v959 = vpack.c.b16 %v925, %v924
      %v960 = vpack.c.b16 %v927, %v926
      %v961 = vpack.c.b16 %v929, %v928
      %994 = vmatpush.bf16.msra.mxu0 %v937
      %995 = vmatpush.bf16.msra.mxu0 %v936
      %996 = vmatpush.bf16.msra.mxu0 %v935
      %997 = vmatpush.bf16.msra.mxu0 %v934
      %998 = vmatpush.bf16.msra.mxu0 %v933
      %999 = vmatpush.bf16.msra.mxu0 %v932
      %1000 = vmatpush.bf16.msra.mxu0 %v931
      %1001 = vmatpush.bf16.msra.mxu0 %v930
      %1002 = vmatmul.bf16.gmra.mxu0 %v674
      %v1003 = vpop.f32.mrf.mxu0
      %v1004 = vadd.f32 0.0, %v1003
      %v1005 = vpop.f32.mrf.mxu0
      %v1006 = vadd.f32 0.0, %v1005
      %1007 = vmatmul.bf16.gmra.mxu0 %v678
      %v1008 = vpop.f32.mrf.mxu0
      %v1009 = vadd.f32 0.0, %v1008
      %v1010 = vpop.f32.mrf.mxu0
      %v1011 = vadd.f32 0.0, %v1010
      %1012 = vmatmul.bf16.gmra.mxu0 %v682
      %v1013 = vpop.f32.mrf.mxu0
      %v1014 = vadd.f32 0.0, %v1013
      %v1015 = vpop.f32.mrf.mxu0
      %v1016 = vadd.f32 0.0, %v1015
      %1017 = vmatmul.bf16.gmra.mxu0 %v686
      %v1018 = vpop.f32.mrf.mxu0
      %v1019 = vadd.f32 0.0, %v1018
      %v1020 = vpop.f32.mrf.mxu0
      %v1021 = vadd.f32 0.0, %v1020
      %1022 = vmatmul.bf16.gmra.mxu0 %v690
      %v1023 = vpop.f32.mrf.mxu0
      %v1024 = vadd.f32 0.0, %v1023
      %v1025 = vpop.f32.mrf.mxu0
      %v1026 = vadd.f32 0.0, %v1025
      %1027 = vmatmul.bf16.gmra.mxu0 %v694
      %v1028 = vpop.f32.mrf.mxu0
      %v1029 = vadd.f32 0.0, %v1028
      %v1030 = vpop.f32.mrf.mxu0
      %v1031 = vadd.f32 0.0, %v1030
      %1032 = vmatmul.bf16.gmra.mxu0 %v698
      %v1033 = vpop.f32.mrf.mxu0
      %v1034 = vadd.f32 0.0, %v1033
      %v1035 = vpop.f32.mrf.mxu0
      %v1036 = vadd.f32 0.0, %v1035
      %1037 = vmatmul.bf16.gmra.mxu0 %v702
      %v1038 = vpop.f32.mrf.mxu0
      %v1039 = vadd.f32 0.0, %v1038
      %v1040 = vpop.f32.mrf.mxu0
      %v1041 = vadd.f32 0.0, %v1040
      %1042 = vmatmul.bf16.gmra.mxu0 %v706
      %v1043 = vpop.f32.mrf.mxu0
      %v1044 = vadd.f32 0.0, %v1043
      %v1045 = vpop.f32.mrf.mxu0
      %v1046 = vadd.f32 0.0, %v1045
      %1047 = vmatmul.bf16.gmra.mxu0 %v710
      %v1048 = vpop.f32.mrf.mxu0
      %v1049 = vadd.f32 0.0, %v1048
      %v1050 = vpop.f32.mrf.mxu0
      %v1051 = vadd.f32 0.0, %v1050
      %1052 = vmatmul.bf16.gmra.mxu0 %v714
      %v1053 = vpop.f32.mrf.mxu0
      %v1054 = vadd.f32 0.0, %v1053
      %v1055 = vpop.f32.mrf.mxu0
      %v1056 = vadd.f32 0.0, %v1055
      %1057 = vmatmul.bf16.gmra.mxu0 %v718
      %v1058 = vpop.f32.mrf.mxu0
      %v1059 = vadd.f32 0.0, %v1058
      %v1060 = vpop.f32.mrf.mxu0
      %v1061 = vadd.f32 0.0, %v1060
      %1062 = vmatmul.bf16.gmra.mxu0 %v722
      %v1063 = vpop.f32.mrf.mxu0
      %v1064 = vadd.f32 0.0, %v1063
      %v1065 = vpop.f32.mrf.mxu0
      %v1066 = vadd.f32 0.0, %v1065
      %1067 = vmatmul.bf16.gmra.mxu0 %v726
      %v1068 = vpop.f32.mrf.mxu0
      %v1069 = vadd.f32 0.0, %v1068
      %v1070 = vpop.f32.mrf.mxu0
      %v1071 = vadd.f32 0.0, %v1070
      %1072 = vmatmul.bf16.gmra.mxu0 %v730
      %v1073 = vpop.f32.mrf.mxu0
      %v1074 = vadd.f32 0.0, %v1073
      %v1075 = vpop.f32.mrf.mxu0
      %v1076 = vadd.f32 0.0, %v1075
      %1077 = vmatmul.bf16.gmra.mxu0 %v734
      %v1078 = vpop.f32.mrf.mxu0
      %v1079 = vadd.f32 0.0, %v1078
      %v1080 = vpop.f32.mrf.mxu0
      %v1081 = vadd.f32 0.0, %v1080
      %1082 = vdwg.mxu0
      %1083 = vmatpush.bf16.msra.mxu0 %v945
      %1084 = vmatpush.bf16.msra.mxu0 %v944
      %1085 = vmatpush.bf16.msra.mxu0 %v943
      %1086 = vmatpush.bf16.msra.mxu0 %v942
      %1087 = vmatpush.bf16.msra.mxu0 %v941
      %1088 = vmatpush.bf16.msra.mxu0 %v940
      %1089 = vmatpush.bf16.msra.mxu0 %v939
      %1090 = vmatpush.bf16.msra.mxu0 %v938
      %1091 = vmatmul.bf16.gmra.mxu0 %v675
      %v1092 = vpop.f32.mrf.mxu0
      %v1093 = vadd.f32 %v1004, %v1092
      %v1094 = vpop.f32.mrf.mxu0
      %v1095 = vadd.f32 %v1006, %v1094
      %1096 = vmatmul.bf16.gmra.mxu0 %v679
      %v1097 = vpop.f32.mrf.mxu0
      %v1098 = vadd.f32 %v1009, %v1097
      %v1099 = vpop.f32.mrf.mxu0
      %v1100 = vadd.f32 %v1011, %v1099
      %1101 = vmatmul.bf16.gmra.mxu0 %v683
      %v1102 = vpop.f32.mrf.mxu0
      %v1103 = vadd.f32 %v1014, %v1102
      %v1104 = vpop.f32.mrf.mxu0
      %v1105 = vadd.f32 %v1016, %v1104
      %1106 = vmatmul.bf16.gmra.mxu0 %v687
      %v1107 = vpop.f32.mrf.mxu0
      %v1108 = vadd.f32 %v1019, %v1107
      %v1109 = vpop.f32.mrf.mxu0
      %v1110 = vadd.f32 %v1021, %v1109
      %1111 = vmatmul.bf16.gmra.mxu0 %v691
      %v1112 = vpop.f32.mrf.mxu0
      %v1113 = vadd.f32 %v1024, %v1112
      %v1114 = vpop.f32.mrf.mxu0
      %v1115 = vadd.f32 %v1026, %v1114
      %1116 = vmatmul.bf16.gmra.mxu0 %v695
      %v1117 = vpop.f32.mrf.mxu0
      %v1118 = vadd.f32 %v1029, %v1117
      %v1119 = vpop.f32.mrf.mxu0
      %v1120 = vadd.f32 %v1031, %v1119
      %1121 = vmatmul.bf16.gmra.mxu0 %v699
      %v1122 = vpop.f32.mrf.mxu0
      %v1123 = vadd.f32 %v1034, %v1122
      %v1124 = vpop.f32.mrf.mxu0
      %v1125 = vadd.f32 %v1036, %v1124
      %1126 = vmatmul.bf16.gmra.mxu0 %v703
      %v1127 = vpop.f32.mrf.mxu0
      %v1128 = vadd.f32 %v1039, %v1127
      %v1129 = vpop.f32.mrf.mxu0
      %v1130 = vadd.f32 %v1041, %v1129
      %1131 = vmatmul.bf16.gmra.mxu0 %v707
      %v1132 = vpop.f32.mrf.mxu0
      %v1133 = vadd.f32 %v1044, %v1132
      %v1134 = vpop.f32.mrf.mxu0
      %v1135 = vadd.f32 %v1046, %v1134
      %1136 = vmatmul.bf16.gmra.mxu0 %v711
      %v1137 = vpop.f32.mrf.mxu0
      %v1138 = vadd.f32 %v1049, %v1137
      %v1139 = vpop.f32.mrf.mxu0
      %v1140 = vadd.f32 %v1051, %v1139
      %1141 = vmatmul.bf16.gmra.mxu0 %v715
      %v1142 = vpop.f32.mrf.mxu0
      %v1143 = vadd.f32 %v1054, %v1142
      %v1144 = vpop.f32.mrf.mxu0
      %v1145 = vadd.f32 %v1056, %v1144
      %1146 = vmatmul.bf16.gmra.mxu0 %v719
      %v1147 = vpop.f32.mrf.mxu0
      %v1148 = vadd.f32 %v1059, %v1147
      %v1149 = vpop.f32.mrf.mxu0
      %v1150 = vadd.f32 %v1061, %v1149
      %1151 = vmatmul.bf16.gmra.mxu0 %v723
      %v1152 = vpop.f32.mrf.mxu0
      %v1153 = vadd.f32 %v1064, %v1152
      %v1154 = vpop.f32.mrf.mxu0
      %v1155 = vadd.f32 %v1066, %v1154
      %1156 = vmatmul.bf16.gmra.mxu0 %v727
      %v1157 = vpop.f32.mrf.mxu0
      %v1158 = vadd.f32 %v1069, %v1157
      %v1159 = vpop.f32.mrf.mxu0
      %v1160 = vadd.f32 %v1071, %v1159
      %1161 = vmatmul.bf16.gmra.mxu0 %v731
      %v1162 = vpop.f32.mrf.mxu0
      %v1163 = vadd.f32 %v1074, %v1162
      %v1164 = vpop.f32.mrf.mxu0
      %v1165 = vadd.f32 %v1076, %v1164
      %1166 = vmatmul.bf16.gmra.mxu0 %v735
      %v1167 = vpop.f32.mrf.mxu0
      %v1168 = vadd.f32 %v1079, %v1167
      %v1169 = vpop.f32.mrf.mxu0
      %v1170 = vadd.f32 %v1081, %v1169
      %1171 = vdwg.mxu0
      %1172 = vmatpush.bf16.msra.mxu0 %v953
      %1173 = vmatpush.bf16.msra.mxu0 %v952
      %1174 = vmatpush.bf16.msra.mxu0 %v951
      %1175 = vmatpush.bf16.msra.mxu0 %v950
      %1176 = vmatpush.bf16.msra.mxu0 %v949
      %1177 = vmatpush.bf16.msra.mxu0 %v948
      %1178 = vmatpush.bf16.msra.mxu0 %v947
      %1179 = vmatpush.bf16.msra.mxu0 %v946
      %1180 = vmatmul.bf16.gmra.mxu0 %v676
      %v1181 = vpop.f32.mrf.mxu0
      %v1182 = vadd.f32 %v1093, %v1181
      %v1183 = vpop.f32.mrf.mxu0
      %v1184 = vadd.f32 %v1095, %v1183
      %1185 = vmatmul.bf16.gmra.mxu0 %v680
      %v1186 = vpop.f32.mrf.mxu0
      %v1187 = vadd.f32 %v1098, %v1186
      %v1188 = vpop.f32.mrf.mxu0
      %v1189 = vadd.f32 %v1100, %v1188
      %1190 = vmatmul.bf16.gmra.mxu0 %v684
      %v1191 = vpop.f32.mrf.mxu0
      %v1192 = vadd.f32 %v1103, %v1191
      %v1193 = vpop.f32.mrf.mxu0
      %v1194 = vadd.f32 %v1105, %v1193
      %1195 = vmatmul.bf16.gmra.mxu0 %v688
      %v1196 = vpop.f32.mrf.mxu0
      %v1197 = vadd.f32 %v1108, %v1196
      %v1198 = vpop.f32.mrf.mxu0
      %v1199 = vadd.f32 %v1110, %v1198
      %1200 = vmatmul.bf16.gmra.mxu0 %v692
      %v1201 = vpop.f32.mrf.mxu0
      %v1202 = vadd.f32 %v1113, %v1201
      %v1203 = vpop.f32.mrf.mxu0
      %v1204 = vadd.f32 %v1115, %v1203
      %1205 = vmatmul.bf16.gmra.mxu0 %v696
      %v1206 = vpop.f32.mrf.mxu0
      %v1207 = vadd.f32 %v1118, %v1206
      %v1208 = vpop.f32.mrf.mxu0
      %v1209 = vadd.f32 %v1120, %v1208
      %1210 = vmatmul.bf16.gmra.mxu0 %v700
      %v1211 = vpop.f32.mrf.mxu0
      %v1212 = vadd.f32 %v1123, %v1211
      %v1213 = vpop.f32.mrf.mxu0
      %v1214 = vadd.f32 %v1125, %v1213
      %1215 = vmatmul.bf16.gmra.mxu0 %v704
      %v1216 = vpop.f32.mrf.mxu0
      %v1217 = vadd.f32 %v1128, %v1216
      %v1218 = vpop.f32.mrf.mxu0
      %v1219 = vadd.f32 %v1130, %v1218
      %1220 = vmatmul.bf16.gmra.mxu0 %v708
      %v1221 = vpop.f32.mrf.mxu0
      %v1222 = vadd.f32 %v1133, %v1221
      %v1223 = vpop.f32.mrf.mxu0
      %v1224 = vadd.f32 %v1135, %v1223
      %1225 = vmatmul.bf16.gmra.mxu0 %v712
      %v1226 = vpop.f32.mrf.mxu0
      %v1227 = vadd.f32 %v1138, %v1226
      %v1228 = vpop.f32.mrf.mxu0
      %v1229 = vadd.f32 %v1140, %v1228
      %1230 = vmatmul.bf16.gmra.mxu0 %v716
      %v1231 = vpop.f32.mrf.mxu0
      %v1232 = vadd.f32 %v1143, %v1231
      %v1233 = vpop.f32.mrf.mxu0
      %v1234 = vadd.f32 %v1145, %v1233
      %1235 = vmatmul.bf16.gmra.mxu0 %v720
      %v1236 = vpop.f32.mrf.mxu0
      %v1237 = vadd.f32 %v1148, %v1236
      %v1238 = vpop.f32.mrf.mxu0
      %v1239 = vadd.f32 %v1150, %v1238
      %1240 = vmatmul.bf16.gmra.mxu0 %v724
      %v1241 = vpop.f32.mrf.mxu0
      %v1242 = vadd.f32 %v1153, %v1241
      %v1243 = vpop.f32.mrf.mxu0
      %v1244 = vadd.f32 %v1155, %v1243
      %1245 = vmatmul.bf16.gmra.mxu0 %v728
      %v1246 = vpop.f32.mrf.mxu0
      %v1247 = vadd.f32 %v1158, %v1246
      %v1248 = vpop.f32.mrf.mxu0
      %v1249 = vadd.f32 %v1160, %v1248
      %1250 = vmatmul.bf16.gmra.mxu0 %v732
      %v1251 = vpop.f32.mrf.mxu0
      %v1252 = vadd.f32 %v1163, %v1251
      %v1253 = vpop.f32.mrf.mxu0
      %v1254 = vadd.f32 %v1165, %v1253
      %1255 = vmatmul.bf16.gmra.mxu0 %v736
      %v1256 = vpop.f32.mrf.mxu0
      %v1257 = vadd.f32 %v1168, %v1256
      %v1258 = vpop.f32.mrf.mxu0
      %v1259 = vadd.f32 %v1170, %v1258
      %1260 = vdwg.mxu0
      %1261 = vmatpush.bf16.msra.mxu0 %v961
      %1262 = vmatpush.bf16.msra.mxu0 %v960
      %1263 = vmatpush.bf16.msra.mxu0 %v959
      %1264 = vmatpush.bf16.msra.mxu0 %v958
      %1265 = vmatpush.bf16.msra.mxu0 %v957
      %1266 = vmatpush.bf16.msra.mxu0 %v956
      %1267 = vmatpush.bf16.msra.mxu0 %v955
      %1268 = vmatpush.bf16.msra.mxu0 %v954
      %1269 = vmatmul.bf16.gmra.mxu0 %v677
      %v1270 = vpop.f32.mrf.mxu0
      %v1271 = vadd.f32 %v1182, %v1270
      %v1272 = vpop.f32.mrf.mxu0
      %v1273 = vadd.f32 %v1184, %v1272
      %1274 = vmatmul.bf16.gmra.mxu0 %v681
      %v1275 = vpop.f32.mrf.mxu0
      %v1276 = vadd.f32 %v1187, %v1275
      %v1277 = vpop.f32.mrf.mxu0
      %v1278 = vadd.f32 %v1189, %v1277
      %1279 = vmatmul.bf16.gmra.mxu0 %v685
      %v1280 = vpop.f32.mrf.mxu0
      %v1281 = vadd.f32 %v1192, %v1280
      %v1282 = vpop.f32.mrf.mxu0
      %v1283 = vadd.f32 %v1194, %v1282
      %1284 = vmatmul.bf16.gmra.mxu0 %v689
      %v1285 = vpop.f32.mrf.mxu0
      %v1286 = vadd.f32 %v1197, %v1285
      %v1287 = vpop.f32.mrf.mxu0
      %v1288 = vadd.f32 %v1199, %v1287
      %1289 = vmatmul.bf16.gmra.mxu0 %v693
      %v1290 = vpop.f32.mrf.mxu0
      %v1291 = vadd.f32 %v1202, %v1290
      %v1292 = vpop.f32.mrf.mxu0
      %v1293 = vadd.f32 %v1204, %v1292
      %1294 = vmatmul.bf16.gmra.mxu0 %v697
      %v1295 = vpop.f32.mrf.mxu0
      %v1296 = vadd.f32 %v1207, %v1295
      %v1297 = vpop.f32.mrf.mxu0
      %v1298 = vadd.f32 %v1209, %v1297
      %1299 = vmatmul.bf16.gmra.mxu0 %v701
      %v1300 = vpop.f32.mrf.mxu0
      %v1301 = vadd.f32 %v1212, %v1300
      %v1302 = vpop.f32.mrf.mxu0
      %v1303 = vadd.f32 %v1214, %v1302
      %1304 = vmatmul.bf16.gmra.mxu0 %v705
      %v1305 = vpop.f32.mrf.mxu0
      %v1306 = vadd.f32 %v1217, %v1305
      %v1307 = vpop.f32.mrf.mxu0
      %v1308 = vadd.f32 %v1219, %v1307
      %1309 = vmatmul.bf16.gmra.mxu0 %v709
      %v1310 = vpop.f32.mrf.mxu0
      %v1311 = vadd.f32 %v1222, %v1310
      %v1312 = vpop.f32.mrf.mxu0
      %v1313 = vadd.f32 %v1224, %v1312
      %1314 = vmatmul.bf16.gmra.mxu0 %v713
      %v1315 = vpop.f32.mrf.mxu0
      %v1316 = vadd.f32 %v1227, %v1315
      %v1317 = vpop.f32.mrf.mxu0
      %v1318 = vadd.f32 %v1229, %v1317
      %1319 = vmatmul.bf16.gmra.mxu0 %v717
      %v1320 = vpop.f32.mrf.mxu0
      %v1321 = vadd.f32 %v1232, %v1320
      %v1322 = vpop.f32.mrf.mxu0
      %v1323 = vadd.f32 %v1234, %v1322
      %1324 = vmatmul.bf16.gmra.mxu0 %v721
      %v1325 = vpop.f32.mrf.mxu0
      %v1326 = vadd.f32 %v1237, %v1325
      %v1327 = vpop.f32.mrf.mxu0
      %v1328 = vadd.f32 %v1239, %v1327
      %1329 = vmatmul.bf16.gmra.mxu0 %v725
      %v1330 = vpop.f32.mrf.mxu0
      %v1331 = vadd.f32 %v1242, %v1330
      %v1332 = vpop.f32.mrf.mxu0
      %v1333 = vadd.f32 %v1244, %v1332
      %1334 = vmatmul.bf16.gmra.mxu0 %v729
      %v1335 = vpop.f32.mrf.mxu0
      %v1336 = vadd.f32 %v1247, %v1335
      %v1337 = vpop.f32.mrf.mxu0
      %v1338 = vadd.f32 %v1249, %v1337
      %1339 = vmatmul.bf16.gmra.mxu0 %v733
      %v1340 = vpop.f32.mrf.mxu0
      %v1341 = vadd.f32 %v1252, %v1340
      %v1342 = vpop.f32.mrf.mxu0
      %v1343 = vadd.f32 %v1254, %v1342
      %1344 = vmatmul.bf16.gmra.mxu0 %v737
      %v1345 = vpop.f32.mrf.mxu0
      %v1346 = vadd.f32 %v1257, %v1345
      %v1347 = vpop.f32.mrf.mxu0
      %v1348 = vadd.f32 %v1259, %v1347
      %1349 = vdwg.mxu0
      %v1350 = vadd.f32 %v318, %v1271
      %v1351 = vadd.f32 %v319, %v1273
      %v1352 = vadd.f32 %v320, %v1276
      %v1353 = vadd.f32 %v321, %v1278
      %v1354 = vadd.f32 %v322, %v1281
      %v1355 = vadd.f32 %v323, %v1283
      %v1356 = vadd.f32 %v324, %v1286
      %v1357 = vadd.f32 %v325, %v1288
      %v1358 = vadd.f32 %v326, %v1291
      %v1359 = vadd.f32 %v327, %v1293
      %v1360 = vadd.f32 %v328, %v1296
      %v1361 = vadd.f32 %v329, %v1298
      %v1362 = vadd.f32 %v330, %v1301
      %v1363 = vadd.f32 %v331, %v1303
      %v1364 = vadd.f32 %v332, %v1306
      %v1365 = vadd.f32 %v333, %v1308
      %v1366 = vadd.f32 %v334, %v1311
      %v1367 = vadd.f32 %v335, %v1313
      %v1368 = vadd.f32 %v336, %v1316
      %v1369 = vadd.f32 %v337, %v1318
      %v1370 = vadd.f32 %v338, %v1321
      %v1371 = vadd.f32 %v339, %v1323
      %v1372 = vadd.f32 %v340, %v1326
      %v1373 = vadd.f32 %v341, %v1328
      %v1374 = vadd.f32 %v342, %v1331
      %v1375 = vadd.f32 %v343, %v1333
      %v1376 = vadd.f32 %v344, %v1336
      %v1377 = vadd.f32 %v345, %v1338
      %v1378 = vadd.f32 %v346, %v1341
      %v1379 = vadd.f32 %v347, %v1343
      %v1380 = vadd.f32 %v348, %v1346
      %v1381 = vadd.f32 %v349, %v1348
      %1382 = vst [vmem:[#allocation2] sm:$0xff] %v1350
      %1383 = vst [vmem:[#allocation2 + $0x8] sm:$0xff] %v1351
      %1384 = vst [vmem:[#allocation2 + $0x10] sm:$0xff] %v1352
      %1385 = vst [vmem:[#allocation2 + $0x18] sm:$0xff] %v1353
      %1386 = vst [vmem:[#allocation2 + $0x20] sm:$0xff] %v1354
      %1387 = vst [vmem:[#allocation2 + $0x28] sm:$0xff] %v1355
      %1388 = vst [vmem:[#allocation2 + $0x30] sm:$0xff] %v1356
      %1389 = vst [vmem:[#allocation2 + $0x38] sm:$0xff] %v1357
      %1390 = vst [vmem:[#allocation2 + $0x40] sm:$0xff] %v1358
      %1391 = vst [vmem:[#allocation2 + $0x48] sm:$0xff] %v1359
      %1392 = vst [vmem:[#allocation2 + $0x50] sm:$0xff] %v1360
      %1393 = vst [vmem:[#allocation2 + $0x58] sm:$0xff] %v1361
      %1394 = vst [vmem:[#allocation2 + $0x60] sm:$0xff] %v1362
      %1395 = vst [vmem:[#allocation2 + $0x68] sm:$0xff] %v1363
      %1396 = vst [vmem:[#allocation2 + $0x70] sm:$0xff] %v1364
      %1397 = vst [vmem:[#allocation2 + $0x78] sm:$0xff] %v1365
      %1398 = vst [vmem:[#allocation2 + $0x80] sm:$0xff] %v1366
      %1399 = vst [vmem:[#allocation2 + $0x88] sm:$0xff] %v1367
      %1400 = vst [vmem:[#allocation2 + $0x90] sm:$0xff] %v1368
      %1401 = vst [vmem:[#allocation2 + $0x98] sm:$0xff] %v1369
      %1402 = vst [vmem:[#allocation2 + $0xa0] sm:$0xff] %v1370
      %1403 = vst [vmem:[#allocation2 + $0xa8] sm:$0xff] %v1371
      %1404 = vst [vmem:[#allocation2 + $0xb0] sm:$0xff] %v1372
      %1405 = vst [vmem:[#allocation2 + $0xb8] sm:$0xff] %v1373
      %1406 = vst [vmem:[#allocation2 + $0xc0] sm:$0xff] %v1374
      %1407 = vst [vmem:[#allocation2 + $0xc8] sm:$0xff] %v1375
      %1408 = vst [vmem:[#allocation2 + $0xd0] sm:$0xff] %v1376
      %1409 = vst [vmem:[#allocation2 + $0xd8] sm:$0xff] %v1377
      %1410 = vst [vmem:[#allocation2 + $0xe0] sm:$0xff] %v1378
      %1411 = vst [vmem:[#allocation2 + $0xe8] sm:$0xff] %v1379
      %1412 = vst [vmem:[#allocation2 + $0xf0] sm:$0xff] %v1380
      %1413 = vst [vmem:[#allocation2 + $0xf8] sm:$0xff] %v1381
      // Predicated region
      $region45: #{gnn_apply.2} parent=39 // pred_check
        %p1414 = pneg %p281
      $region46: #{gnn_apply.2} parent=39 // pred_check_branch
        %1416 = sbr.rel (%p1414) target = $region48
      $region47: #{gnn_apply.2} parent=39 // pred_region
        %v1417 = vld [vmem:[%s273] sm:$0xff]
        %v1418 = vld [vmem:[%s273 + $0x8] sm:$0xff]
        %v1419 = vld [vmem:[%s273 + $0x10] sm:$0xff]
        %v1420 = vld [vmem:[%s273 + $0x18] sm:$0xff]
        %v1421 = vld [vmem:[%s273 + $0x20] sm:$0xff]
        %v1422 = vld [vmem:[%s273 + $0x28] sm:$0xff]
        %v1423 = vld [vmem:[%s273 + $0x30] sm:$0xff]
        %v1424 = vld [vmem:[%s273 + $0x38] sm:$0xff]
        %v1425 = vld [vmem:[%s273 + $0x40] sm:$0xff]
        %v1426 = vld [vmem:[%s273 + $0x48] sm:$0xff]
        %v1427 = vld [vmem:[%s273 + $0x50] sm:$0xff]
        %v1428 = vld [vmem:[%s273 + $0x58] sm:$0xff]
        %v1429 = vld [vmem:[%s273 + $0x60] sm:$0xff]
        %v1430 = vld [vmem:[%s273 + $0x68] sm:$0xff]
        %v1431 = vld [vmem:[%s273 + $0x70] sm:$0xff]
        %v1432 = vld [vmem:[%s273 + $0x78] sm:$0xff]
        %v1433 = vld [vmem:[%s273 + $0x80] sm:$0xff]
        %v1434 = vld [vmem:[%s273 + $0x88] sm:$0xff]
        %v1435 = vld [vmem:[%s273 + $0x90] sm:$0xff]
        %v1436 = vld [vmem:[%s273 + $0x98] sm:$0xff]
        %v1437 = vld [vmem:[%s273 + $0xa0] sm:$0xff]
        %v1438 = vld [vmem:[%s273 + $0xa8] sm:$0xff]
        %v1439 = vld [vmem:[%s273 + $0xb0] sm:$0xff]
        %v1440 = vld [vmem:[%s273 + $0xb8] sm:$0xff]
        %v1441 = vld [vmem:[%s273 + $0xc0] sm:$0xff]
        %v1442 = vld [vmem:[%s273 + $0xc8] sm:$0xff]
        %v1443 = vld [vmem:[%s273 + $0xd0] sm:$0xff]
        %v1444 = vld [vmem:[%s273 + $0xd8] sm:$0xff]
        %v1445 = vld [vmem:[%s273 + $0xe0] sm:$0xff]
        %v1446 = vld [vmem:[%s273 + $0xe8] sm:$0xff]
        %v1447 = vld [vmem:[%s273 + $0xf0] sm:$0xff]
        %v1448 = vld [vmem:[%s273 + $0xf8] sm:$0xff]
        %v1449 = vld [vmem:[#allocation2] sm:$0xff]
        %v1450 = vld [vmem:[#allocation2 + $0x8] sm:$0xff]
        %v1451 = vld [vmem:[#allocation2 + $0x10] sm:$0xff]
        %v1452 = vld [vmem:[#allocation2 + $0x18] sm:$0xff]
        %v1453 = vld [vmem:[#allocation2 + $0x20] sm:$0xff]
        %v1454 = vld [vmem:[#allocation2 + $0x28] sm:$0xff]
        %v1455 = vld [vmem:[#allocation2 + $0x30] sm:$0xff]
        %v1456 = vld [vmem:[#allocation2 + $0x38] sm:$0xff]
        %v1457 = vld [vmem:[#allocation2 + $0x40] sm:$0xff]
        %v1458 = vld [vmem:[#allocation2 + $0x48] sm:$0xff]
        %v1459 = vld [vmem:[#allocation2 + $0x50] sm:$0xff]
        %v1460 = vld [vmem:[#allocation2 + $0x58] sm:$0xff]
        %v1461 = vld [vmem:[#allocation2 + $0x60] sm:$0xff]
        %v1462 = vld [vmem:[#allocation2 + $0x68] sm:$0xff]
        %v1463 = vld [vmem:[#allocation2 + $0x70] sm:$0xff]
        %v1464 = vld [vmem:[#allocation2 + $0x78] sm:$0xff]
        %v1465 = vld [vmem:[#allocation2 + $0x80] sm:$0xff]
        %v1466 = vld [vmem:[#allocation2 + $0x88] sm:$0xff]
        %v1467 = vld [vmem:[#allocation2 + $0x90] sm:$0xff]
        %v1468 = vld [vmem:[#allocation2 + $0x98] sm:$0xff]
        %v1469 = vld [vmem:[#allocation2 + $0xa0] sm:$0xff]
        %v1470 = vld [vmem:[#allocation2 + $0xa8] sm:$0xff]
        %v1471 = vld [vmem:[#allocation2 + $0xb0] sm:$0xff]
        %v1472 = vld [vmem:[#allocation2 + $0xb8] sm:$0xff]
        %v1473 = vld [vmem:[#allocation2 + $0xc0] sm:$0xff]
        %v1474 = vld [vmem:[#allocation2 + $0xc8] sm:$0xff]
        %v1475 = vld [vmem:[#allocation2 + $0xd0] sm:$0xff]
        %v1476 = vld [vmem:[#allocation2 + $0xd8] sm:$0xff]
        %v1477 = vld [vmem:[#allocation2 + $0xe0] sm:$0xff]
        %v1478 = vld [vmem:[#allocation2 + $0xe8] sm:$0xff]
        %v1479 = vld [vmem:[#allocation2 + $0xf0] sm:$0xff]
        %v1480 = vld [vmem:[#allocation2 + $0xf8] sm:$0xff]
        %1482 = vset.pattern.permute.xlu0 0
        %1483 = vperm.xlu0 %1482, %v1417
        %v1484 = vpop.permute.xlu0 %1483
        %1487 = vset.pattern.permute.xlu0 0
        %1488 = vperm.xlu0 %1487, %v1418
        %v1489 = vpop.permute.xlu0 %1488
        %1492 = vset.pattern.permute.xlu0 0
        %1493 = vperm.xlu0 %1492, %v1419
        %v1494 = vpop.permute.xlu0 %1493
        %1497 = vset.pattern.permute.xlu0 0
        %1498 = vperm.xlu0 %1497, %v1420
        %v1499 = vpop.permute.xlu0 %1498
        %1502 = vset.pattern.permute.xlu0 0
        %1503 = vperm.xlu0 %1502, %v1421
        %v1504 = vpop.permute.xlu0 %1503
        %1507 = vset.pattern.permute.xlu0 0
        %1508 = vperm.xlu0 %1507, %v1422
        %v1509 = vpop.permute.xlu0 %1508
        %1512 = vset.pattern.permute.xlu0 0
        %1513 = vperm.xlu0 %1512, %v1423
        %v1514 = vpop.permute.xlu0 %1513
        %1517 = vset.pattern.permute.xlu0 0
        %1518 = vperm.xlu0 %1517, %v1424
        %v1519 = vpop.permute.xlu0 %1518
        %1522 = vset.pattern.permute.xlu0 0
        %1523 = vperm.xlu0 %1522, %v1425
        %v1524 = vpop.permute.xlu0 %1523
        %1527 = vset.pattern.permute.xlu0 0
        %1528 = vperm.xlu0 %1527, %v1426
        %v1529 = vpop.permute.xlu0 %1528
        %1532 = vset.pattern.permute.xlu0 0
        %1533 = vperm.xlu0 %1532, %v1427
        %v1534 = vpop.permute.xlu0 %1533
        %1537 = vset.pattern.permute.xlu0 0
        %1538 = vperm.xlu0 %1537, %v1428
        %v1539 = vpop.permute.xlu0 %1538
        %1542 = vset.pattern.permute.xlu0 0
        %1543 = vperm.xlu0 %1542, %v1429
        %v1544 = vpop.permute.xlu0 %1543
        %1547 = vset.pattern.permute.xlu0 0
        %1548 = vperm.xlu0 %1547, %v1430
        %v1549 = vpop.permute.xlu0 %1548
        %1552 = vset.pattern.permute.xlu0 0
        %1553 = vperm.xlu0 %1552, %v1431
        %v1554 = vpop.permute.xlu0 %1553
        %1557 = vset.pattern.permute.xlu0 0
        %1558 = vperm.xlu0 %1557, %v1432
        %v1559 = vpop.permute.xlu0 %1558
        %1562 = vset.pattern.permute.xlu0 0
        %1563 = vperm.xlu0 %1562, %v1433
        %v1564 = vpop.permute.xlu0 %1563
        %1567 = vset.pattern.permute.xlu0 0
        %1568 = vperm.xlu0 %1567, %v1434
        %v1569 = vpop.permute.xlu0 %1568
        %1572 = vset.pattern.permute.xlu0 0
        %1573 = vperm.xlu0 %1572, %v1435
        %v1574 = vpop.permute.xlu0 %1573
        %1577 = vset.pattern.permute.xlu0 0
        %1578 = vperm.xlu0 %1577, %v1436
        %v1579 = vpop.permute.xlu0 %1578
        %1582 = vset.pattern.permute.xlu0 0
        %1583 = vperm.xlu0 %1582, %v1437
        %v1584 = vpop.permute.xlu0 %1583
        %1587 = vset.pattern.permute.xlu0 0
        %1588 = vperm.xlu0 %1587, %v1438
        %v1589 = vpop.permute.xlu0 %1588
        %1592 = vset.pattern.permute.xlu0 0
        %1593 = vperm.xlu0 %1592, %v1439
        %v1594 = vpop.permute.xlu0 %1593
        %1597 = vset.pattern.permute.xlu0 0
        %1598 = vperm.xlu0 %1597, %v1440
        %v1599 = vpop.permute.xlu0 %1598
        %1602 = vset.pattern.permute.xlu0 0
        %1603 = vperm.xlu0 %1602, %v1441
        %v1604 = vpop.permute.xlu0 %1603
        %1607 = vset.pattern.permute.xlu0 0
        %1608 = vperm.xlu0 %1607, %v1442
        %v1609 = vpop.permute.xlu0 %1608
        %1612 = vset.pattern.permute.xlu0 0
        %1613 = vperm.xlu0 %1612, %v1443
        %v1614 = vpop.permute.xlu0 %1613
        %1617 = vset.pattern.permute.xlu0 0
        %1618 = vperm.xlu0 %1617, %v1444
        %v1619 = vpop.permute.xlu0 %1618
        %1622 = vset.pattern.permute.xlu0 0
        %1623 = vperm.xlu0 %1622, %v1445
        %v1624 = vpop.permute.xlu0 %1623
        %1627 = vset.pattern.permute.xlu0 0
        %1628 = vperm.xlu0 %1627, %v1446
        %v1629 = vpop.permute.xlu0 %1628
        %1632 = vset.pattern.permute.xlu0 0
        %1633 = vperm.xlu0 %1632, %v1447
        %v1634 = vpop.permute.xlu0 %1633
        %1637 = vset.pattern.permute.xlu0 0
        %1638 = vperm.xlu0 %1637, %v1448
        %v1639 = vpop.permute.xlu0 %1638
        %v1641 = vmul.f32 %v1484, %v1449
        %v1642 = vmul.f32 %v1489, %v1450
        %v1643 = vmul.f32 %v1494, %v1451
        %v1644 = vmul.f32 %v1499, %v1452
        %v1645 = vmul.f32 %v1504, %v1453
        %v1646 = vmul.f32 %v1509, %v1454
        %v1647 = vmul.f32 %v1514, %v1455
        %v1648 = vmul.f32 %v1519, %v1456
        %v1649 = vmul.f32 %v1524, %v1457
        %v1650 = vmul.f32 %v1529, %v1458
        %v1651 = vmul.f32 %v1534, %v1459
        %v1652 = vmul.f32 %v1539, %v1460
        %v1653 = vmul.f32 %v1544, %v1461
        %v1654 = vmul.f32 %v1549, %v1462
        %v1655 = vmul.f32 %v1554, %v1463
        %v1656 = vmul.f32 %v1559, %v1464
        %v1657 = vmul.f32 %v1564, %v1465
        %v1658 = vmul.f32 %v1569, %v1466
        %v1659 = vmul.f32 %v1574, %v1467
        %v1660 = vmul.f32 %v1579, %v1468
        %v1661 = vmul.f32 %v1584, %v1469
        %v1662 = vmul.f32 %v1589, %v1470
        %v1663 = vmul.f32 %v1594, %v1471
        %v1664 = vmul.f32 %v1599, %v1472
        %v1665 = vmul.f32 %v1604, %v1473
        %v1666 = vmul.f32 %v1609, %v1474
        %v1667 = vmul.f32 %v1614, %v1475
        %v1668 = vmul.f32 %v1619, %v1476
        %v1669 = vmul.f32 %v1624, %v1477
        %v1670 = vmul.f32 %v1629, %v1478
        %v1671 = vmul.f32 %v1634, %v1479
        %v1672 = vmul.f32 %v1639, %v1480
        %v1673 = vld [vmem:[%s3] sm:$0x1]
        %v1675 = vperm.slane %v1673, 0
        %v1677 = vadd.f32 %v1641, %v1675
        %v1678 = vadd.f32 %v1642, %v1675
        %v1679 = vadd.f32 %v1643, %v1675
        %v1680 = vadd.f32 %v1644, %v1675
        %v1681 = vadd.f32 %v1645, %v1675
        %v1682 = vadd.f32 %v1646, %v1675
        %v1683 = vadd.f32 %v1647, %v1675
        %v1684 = vadd.f32 %v1648, %v1675
        %v1685 = vadd.f32 %v1649, %v1675
        %v1686 = vadd.f32 %v1650, %v1675
        %v1687 = vadd.f32 %v1651, %v1675
        %v1688 = vadd.f32 %v1652, %v1675
        %v1689 = vadd.f32 %v1653, %v1675
        %v1690 = vadd.f32 %v1654, %v1675
        %v1691 = vadd.f32 %v1655, %v1675
        %v1692 = vadd.f32 %v1656, %v1675
        %v1693 = vadd.f32 %v1657, %v1675
        %v1694 = vadd.f32 %v1658, %v1675
        %v1695 = vadd.f32 %v1659, %v1675
        %v1696 = vadd.f32 %v1660, %v1675
        %v1697 = vadd.f32 %v1661, %v1675
        %v1698 = vadd.f32 %v1662, %v1675
        %v1699 = vadd.f32 %v1663, %v1675
        %v1700 = vadd.f32 %v1664, %v1675
        %v1701 = vadd.f32 %v1665, %v1675
        %v1702 = vadd.f32 %v1666, %v1675
        %v1703 = vadd.f32 %v1667, %v1675
        %v1704 = vadd.f32 %v1668, %v1675
        %v1705 = vadd.f32 %v1669, %v1675
        %v1706 = vadd.f32 %v1670, %v1675
        %v1707 = vadd.f32 %v1671, %v1675
        %v1708 = vadd.f32 %v1672, %v1675
        %v1709 = vmax.f32 %v1677, 0.0
        %v1710 = vmax.f32 %v1678, 0.0
        %v1711 = vmax.f32 %v1679, 0.0
        %v1712 = vmax.f32 %v1680, 0.0
        %v1713 = vmax.f32 %v1681, 0.0
        %v1714 = vmax.f32 %v1682, 0.0
        %v1715 = vmax.f32 %v1683, 0.0
        %v1716 = vmax.f32 %v1684, 0.0
        %v1717 = vmax.f32 %v1685, 0.0
        %v1718 = vmax.f32 %v1686, 0.0
        %v1719 = vmax.f32 %v1687, 0.0
        %v1720 = vmax.f32 %v1688, 0.0
        %v1721 = vmax.f32 %v1689, 0.0
        %v1722 = vmax.f32 %v1690, 0.0
        %v1723 = vmax.f32 %v1691, 0.0
        %v1724 = vmax.f32 %v1692, 0.0
        %v1725 = vmax.f32 %v1693, 0.0
        %v1726 = vmax.f32 %v1694, 0.0
        %v1727 = vmax.f32 %v1695, 0.0
        %v1728 = vmax.f32 %v1696, 0.0
        %v1729 = vmax.f32 %v1697, 0.0
        %v1730 = vmax.f32 %v1698, 0.0
        %v1731 = vmax.f32 %v1699, 0.0
        %v1732 = vmax.f32 %v1700, 0.0
        %v1733 = vmax.f32 %v1701, 0.0
        %v1734 = vmax.f32 %v1702, 0.0
        %v1735 = vmax.f32 %v1703, 0.0
        %v1736 = vmax.f32 %v1704, 0.0
        %v1737 = vmax.f32 %v1705, 0.0
        %v1738 = vmax.f32 %v1706, 0.0
        %v1739 = vmax.f32 %v1707, 0.0
        %v1740 = vmax.f32 %v1708, 0.0
        %v1741 = vpack.c.bf16 %v1710, %v1709
        %v1742 = vpack.c.bf16 %v1712, %v1711
        %v1743 = vpack.c.bf16 %v1714, %v1713
        %v1744 = vpack.c.bf16 %v1716, %v1715
        %v1745 = vpack.c.bf16 %v1718, %v1717
        %v1746 = vpack.c.bf16 %v1720, %v1719
        %v1747 = vpack.c.bf16 %v1722, %v1721
        %v1748 = vpack.c.bf16 %v1724, %v1723
        %v1749 = vpack.c.bf16 %v1726, %v1725
        %v1750 = vpack.c.bf16 %v1728, %v1727
        %v1751 = vpack.c.bf16 %v1730, %v1729
        %v1752 = vpack.c.bf16 %v1732, %v1731
        %v1753 = vpack.c.bf16 %v1734, %v1733
        %v1754 = vpack.c.bf16 %v1736, %v1735
        %v1755 = vpack.c.bf16 %v1738, %v1737
        %v1756 = vpack.c.bf16 %v1740, %v1739
        %v1757 = vld [vmem:[%s4] sm:$0xf]
        %v1758 = vld [vmem:[%s4 + $0x4] sm:$0xf]
        %v1759 = vld [vmem:[%s4 + $0x8] sm:$0xf]
        %v1760 = vld [vmem:[%s4 + $0xc] sm:$0xf]
        %v1761 = vld [vmem:[%s4 + $0x10] sm:$0xf]
        %v1762 = vld [vmem:[%s4 + $0x14] sm:$0xf]
        %v1763 = vld [vmem:[%s4 + $0x18] sm:$0xf]
        %v1764 = vld [vmem:[%s4 + $0x1c] sm:$0xf]
        %v1765 = vld [vmem:[%s4 + $0x20] sm:$0xf]
        %v1766 = vld [vmem:[%s4 + $0x24] sm:$0xf]
        %v1767 = vld [vmem:[%s4 + $0x28] sm:$0xf]
        %v1768 = vld [vmem:[%s4 + $0x2c] sm:$0xf]
        %v1769 = vld [vmem:[%s4 + $0x30] sm:$0xf]
        %v1770 = vld [vmem:[%s4 + $0x34] sm:$0xf]
        %v1771 = vld [vmem:[%s4 + $0x38] sm:$0xf]
        %v1772 = vld [vmem:[%s4 + $0x3c] sm:$0xf]
        %v1789 = vunpack.c.l.b16 %v1757
        %v1790 = vunpack.c.l.b16 %v1758
        %v1791 = vunpack.c.l.b16 %v1759
        %v1792 = vunpack.c.l.b16 %v1760
        %v1793 = vunpack.c.l.b16 %v1761
        %v1794 = vunpack.c.l.b16 %v1762
        %v1795 = vunpack.c.l.b16 %v1763
        %v1796 = vunpack.c.l.b16 %v1764
        %v1797 = vunpack.c.l.b16 %v1765
        %v1798 = vunpack.c.l.b16 %v1766
        %v1799 = vunpack.c.l.b16 %v1767
        %v1800 = vunpack.c.l.b16 %v1768
        %v1801 = vunpack.c.l.b16 %v1769
        %v1802 = vunpack.c.l.b16 %v1770
        %v1803 = vunpack.c.l.b16 %v1771
        %v1804 = vunpack.c.l.b16 %v1772
        %v1805 = vpack.c.b16 %v1790, %v1789
        %v1806 = vpack.c.b16 %v1792, %v1791
        %v1807 = vpack.c.b16 %v1794, %v1793
        %v1808 = vpack.c.b16 %v1796, %v1795
        %v1809 = vpack.c.b16 %v1798, %v1797
        %v1810 = vpack.c.b16 %v1800, %v1799
        %v1811 = vpack.c.b16 %v1802, %v1801
        %v1812 = vpack.c.b16 %v1804, %v1803
        %1821 = vmatpush.bf16.msra.mxu0 %v1812
        %1822 = vmatpush.bf16.msra.mxu0 %v1811
        %1823 = vmatpush.bf16.msra.mxu0 %v1810
        %1824 = vmatpush.bf16.msra.mxu0 %v1809
        %1825 = vmatpush.bf16.msra.mxu0 %v1808
        %1826 = vmatpush.bf16.msra.mxu0 %v1807
        %1827 = vmatpush.bf16.msra.mxu0 %v1806
        %1828 = vmatpush.bf16.msra.mxu0 %v1805
        %1829 = vmatmul.bf16.gmra.mxu0 %v1741
        %v1830 = vpop.f32.mrf.mxu0
        %v1831 = vadd.f32 0.0, %v1830
        %v1832 = vpop.f32.mrf.mxu0
        %v1833 = vadd.f32 0.0, %v1832
        %1834 = vmatmul.bf16.gmra.mxu0 %v1742
        %v1835 = vpop.f32.mrf.mxu0
        %v1836 = vadd.f32 0.0, %v1835
        %v1837 = vpop.f32.mrf.mxu0
        %v1838 = vadd.f32 0.0, %v1837
        %1839 = vmatmul.bf16.gmra.mxu0 %v1743
        %v1840 = vpop.f32.mrf.mxu0
        %v1841 = vadd.f32 0.0, %v1840
        %v1842 = vpop.f32.mrf.mxu0
        %v1843 = vadd.f32 0.0, %v1842
        %1844 = vmatmul.bf16.gmra.mxu0 %v1744
        %v1845 = vpop.f32.mrf.mxu0
        %v1846 = vadd.f32 0.0, %v1845
        %v1847 = vpop.f32.mrf.mxu0
        %v1848 = vadd.f32 0.0, %v1847
        %1849 = vmatmul.bf16.gmra.mxu0 %v1745
        %v1850 = vpop.f32.mrf.mxu0
        %v1851 = vadd.f32 0.0, %v1850
        %v1852 = vpop.f32.mrf.mxu0
        %v1853 = vadd.f32 0.0, %v1852
        %1854 = vmatmul.bf16.gmra.mxu0 %v1746
        %v1855 = vpop.f32.mrf.mxu0
        %v1856 = vadd.f32 0.0, %v1855
        %v1857 = vpop.f32.mrf.mxu0
        %v1858 = vadd.f32 0.0, %v1857
        %1859 = vmatmul.bf16.gmra.mxu0 %v1747
        %v1860 = vpop.f32.mrf.mxu0
        %v1861 = vadd.f32 0.0, %v1860
        %v1862 = vpop.f32.mrf.mxu0
        %v1863 = vadd.f32 0.0, %v1862
        %1864 = vmatmul.bf16.gmra.mxu0 %v1748
        %v1865 = vpop.f32.mrf.mxu0
        %v1866 = vadd.f32 0.0, %v1865
        %v1867 = vpop.f32.mrf.mxu0
        %v1868 = vadd.f32 0.0, %v1867
        %1869 = vmatmul.bf16.gmra.mxu0 %v1749
        %v1870 = vpop.f32.mrf.mxu0
        %v1871 = vadd.f32 0.0, %v1870
        %v1872 = vpop.f32.mrf.mxu0
        %v1873 = vadd.f32 0.0, %v1872
        %1874 = vmatmul.bf16.gmra.mxu0 %v1750
        %v1875 = vpop.f32.mrf.mxu0
        %v1876 = vadd.f32 0.0, %v1875
        %v1877 = vpop.f32.mrf.mxu0
        %v1878 = vadd.f32 0.0, %v1877
        %1879 = vmatmul.bf16.gmra.mxu0 %v1751
        %v1880 = vpop.f32.mrf.mxu0
        %v1881 = vadd.f32 0.0, %v1880
        %v1882 = vpop.f32.mrf.mxu0
        %v1883 = vadd.f32 0.0, %v1882
        %1884 = vmatmul.bf16.gmra.mxu0 %v1752
        %v1885 = vpop.f32.mrf.mxu0
        %v1886 = vadd.f32 0.0, %v1885
        %v1887 = vpop.f32.mrf.mxu0
        %v1888 = vadd.f32 0.0, %v1887
        %1889 = vmatmul.bf16.gmra.mxu0 %v1753
        %v1890 = vpop.f32.mrf.mxu0
        %v1891 = vadd.f32 0.0, %v1890
        %v1892 = vpop.f32.mrf.mxu0
        %v1893 = vadd.f32 0.0, %v1892
        %1894 = vmatmul.bf16.gmra.mxu0 %v1754
        %v1895 = vpop.f32.mrf.mxu0
        %v1896 = vadd.f32 0.0, %v1895
        %v1897 = vpop.f32.mrf.mxu0
        %v1898 = vadd.f32 0.0, %v1897
        %1899 = vmatmul.bf16.gmra.mxu0 %v1755
        %v1900 = vpop.f32.mrf.mxu0
        %v1901 = vadd.f32 0.0, %v1900
        %v1902 = vpop.f32.mrf.mxu0
        %v1903 = vadd.f32 0.0, %v1902
        %1904 = vmatmul.bf16.gmra.mxu0 %v1756
        %v1905 = vpop.f32.mrf.mxu0
        %v1906 = vadd.f32 0.0, %v1905
        %v1907 = vpop.f32.mrf.mxu0
        %v1908 = vadd.f32 0.0, %v1907
        %1909 = vdwg.mxu0
        %v1910 = vmul.f32 %v1484, %v1831
        %v1911 = vmul.f32 %v1489, %v1833
        %v1912 = vmul.f32 %v1494, %v1836
        %v1913 = vmul.f32 %v1499, %v1838
        %v1914 = vmul.f32 %v1504, %v1841
        %v1915 = vmul.f32 %v1509, %v1843
        %v1916 = vmul.f32 %v1514, %v1846
        %v1917 = vmul.f32 %v1519, %v1848
        %v1918 = vmul.f32 %v1524, %v1851
        %v1919 = vmul.f32 %v1529, %v1853
        %v1920 = vmul.f32 %v1534, %v1856
        %v1921 = vmul.f32 %v1539, %v1858
        %v1922 = vmul.f32 %v1544, %v1861
        %v1923 = vmul.f32 %v1549, %v1863
        %v1924 = vmul.f32 %v1554, %v1866
        %v1925 = vmul.f32 %v1559, %v1868
        %v1926 = vmul.f32 %v1564, %v1871
        %v1927 = vmul.f32 %v1569, %v1873
        %v1928 = vmul.f32 %v1574, %v1876
        %v1929 = vmul.f32 %v1579, %v1878
        %v1930 = vmul.f32 %v1584, %v1881
        %v1931 = vmul.f32 %v1589, %v1883
        %v1932 = vmul.f32 %v1594, %v1886
        %v1933 = vmul.f32 %v1599, %v1888
        %v1934 = vmul.f32 %v1604, %v1891
        %v1935 = vmul.f32 %v1609, %v1893
        %v1936 = vmul.f32 %v1614, %v1896
        %v1937 = vmul.f32 %v1619, %v1898
        %v1938 = vmul.f32 %v1624, %v1901
        %v1939 = vmul.f32 %v1629, %v1903
        %v1940 = vmul.f32 %v1634, %v1906
        %v1941 = vmul.f32 %v1639, %v1908
        %v1942 = vpack.c.bf16 %v1910, %v1910
        %v1943 = vpack.c.bf16 %v1911, %v1911
        %v1944 = vpack.c.bf16 %v1912, %v1912
        %v1945 = vpack.c.bf16 %v1913, %v1913
        %v1946 = vpack.c.bf16 %v1914, %v1914
        %v1947 = vpack.c.bf16 %v1915, %v1915
        %v1948 = vpack.c.bf16 %v1916, %v1916
        %v1949 = vpack.c.bf16 %v1917, %v1917
        %v1950 = vpack.c.bf16 %v1918, %v1918
        %v1951 = vpack.c.bf16 %v1919, %v1919
        %v1952 = vpack.c.bf16 %v1920, %v1920
        %v1953 = vpack.c.bf16 %v1921, %v1921
        %v1954 = vpack.c.bf16 %v1922, %v1922
        %v1955 = vpack.c.bf16 %v1923, %v1923
        %v1956 = vpack.c.bf16 %v1924, %v1924
        %v1957 = vpack.c.bf16 %v1925, %v1925
        %v1958 = vpack.c.bf16 %v1926, %v1926
        %v1959 = vpack.c.bf16 %v1927, %v1927
        %v1960 = vpack.c.bf16 %v1928, %v1928
        %v1961 = vpack.c.bf16 %v1929, %v1929
        %v1962 = vpack.c.bf16 %v1930, %v1930
        %v1963 = vpack.c.bf16 %v1931, %v1931
        %v1964 = vpack.c.bf16 %v1932, %v1932
        %v1965 = vpack.c.bf16 %v1933, %v1933
        %v1966 = vpack.c.bf16 %v1934, %v1934
        %v1967 = vpack.c.bf16 %v1935, %v1935
        %v1968 = vpack.c.bf16 %v1936, %v1936
        %v1969 = vpack.c.bf16 %v1937, %v1937
        %v1970 = vpack.c.bf16 %v1938, %v1938
        %v1971 = vpack.c.bf16 %v1939, %v1939
        %v1972 = vpack.c.bf16 %v1940, %v1940
        %v1973 = vpack.c.bf16 %v1941, %v1941
        %1974 = vst [vmem:[%s279] sm:$0xf] %v1942
        %1975 = vst [vmem:[%s279 + $0x4] sm:$0xf] %v1943
        %1976 = vst [vmem:[%s279 + $0x8] sm:$0xf] %v1944
        %1977 = vst [vmem:[%s279 + $0xc] sm:$0xf] %v1945
        %1978 = vst [vmem:[%s279 + $0x10] sm:$0xf] %v1946
        %1979 = vst [vmem:[%s279 + $0x14] sm:$0xf] %v1947
        %1980 = vst [vmem:[%s279 + $0x18] sm:$0xf] %v1948
        %1981 = vst [vmem:[%s279 + $0x1c] sm:$0xf] %v1949
        %1982 = vst [vmem:[%s279 + $0x20] sm:$0xf] %v1950
        %1983 = vst [vmem:[%s279 + $0x24] sm:$0xf] %v1951
        %1984 = vst [vmem:[%s279 + $0x28] sm:$0xf] %v1952
        %1985 = vst [vmem:[%s279 + $0x2c] sm:$0xf] %v1953
        %1986 = vst [vmem:[%s279 + $0x30] sm:$0xf] %v1954
        %1987 = vst [vmem:[%s279 + $0x34] sm:$0xf] %v1955
        %1988 = vst [vmem:[%s279 + $0x38] sm:$0xf] %v1956
        %1989 = vst [vmem:[%s279 + $0x3c] sm:$0xf] %v1957
        %1990 = vst [vmem:[%s279 + $0x40] sm:$0xf] %v1958
        %1991 = vst [vmem:[%s279 + $0x44] sm:$0xf] %v1959
        %1992 = vst [vmem:[%s279 + $0x48] sm:$0xf] %v1960
        %1993 = vst [vmem:[%s279 + $0x4c] sm:$0xf] %v1961
        %1994 = vst [vmem:[%s279 + $0x50] sm:$0xf] %v1962
        %1995 = vst [vmem:[%s279 + $0x54] sm:$0xf] %v1963
        %1996 = vst [vmem:[%s279 + $0x58] sm:$0xf] %v1964
        %1997 = vst [vmem:[%s279 + $0x5c] sm:$0xf] %v1965
        %1998 = vst [vmem:[%s279 + $0x60] sm:$0xf] %v1966
        %1999 = vst [vmem:[%s279 + $0x64] sm:$0xf] %v1967
        %2000 = vst [vmem:[%s279 + $0x68] sm:$0xf] %v1968
        %2001 = vst [vmem:[%s279 + $0x6c] sm:$0xf] %v1969
        %2002 = vst [vmem:[%s279 + $0x70] sm:$0xf] %v1970
        %2003 = vst [vmem:[%s279 + $0x74] sm:$0xf] %v1971
        %2004 = vst [vmem:[%s279 + $0x78] sm:$0xf] %v1972
        %2005 = vst [vmem:[%s279 + $0x7c] sm:$0xf] %v1973
      $region48: #{gnn_apply.2} parent=39 // pred_fallthru
        _
      %s2006 = smul.u32 32, %s20
      %p2007 = scmp.lt.s32.totalorder %s2006, 63
      %s2008 = scalar_select %p2007, %s2006, 63
      %s2009 = smul.addr %s2008, 4
      %s2010 = scalar_lea.vmem %s5, %s2009
      // Predicated region
      $region49: #{gnn_apply.2} parent=39 // pred_check
        %p2011 = pneg %p163
      $region50: #{gnn_apply.2} parent=39 // pred_check_branch
        %2013 = sbr.rel (%p2011) target = $region52
      $region51: #{gnn_apply.2} parent=39 // pred_region
        %s2014 = smul.u32 32, %s20
      $region52: #{gnn_apply.2} parent=39 // pred_fallthru
        _
    $region40: #{gnn_apply.2} parent=5 // pred_fallthru
      _
    %p2015 = scmp.le.s32.totalorder 2, %s11
    // Predicated region
    $region53: #{gnn_apply.2} parent=5 // pred_check
      %p2016 = pneg %p2015
    $region54: #{gnn_apply.2} parent=5 // pred_check_branch
      %2018 = sbr.rel (%p2016) target = $region56
    $region55: #{gnn_apply.2} parent=5 // pred_region
      %s2019 = ssub.s32 %s11, 2
      // Predicated region
      $region57: #{gnn_apply.2} parent=55 // pred_check
        %p2020 = pneg %p169
      $region58: #{gnn_apply.2} parent=55 // pred_check_branch
        %2022 = sbr.rel (%p2020) target = $region60
      $region59: #{gnn_apply.2} parent=55 // pred_region
        %s2023 = smul.u32 32, %s22
        %p2024 = scmp.lt.s32.totalorder %s2023, 63
        %s2025 = scalar_select %p2024, %s2023, 63
        %s2026 = smul.addr %s2025, 4
        %s2027 = scalar_lea.vmem %s5, %s2026
      $region60: #{gnn_apply.2} parent=55 // pred_fallthru
        _
    $region56: #{gnn_apply.2} parent=5 // pred_fallthru
      _
  $region6: #{gnn_apply.2} parent=0 // loop_footer
    %s15 = sadd.s32 1, %s11
  $region7: #{gnn_apply.2} parent=0 // loop_footer_branch
    %10 = sbr.rel target = $region3
  $region8: #{gnn_apply.2} parent=0 // loop_exit
    _

</llo_original>
